<compile_context>
chip_gen: v5e
topology: v5e:2x2
jax: 0.10.0
libtpu: 0.0.40
codegen_flags: <defaults>
</compile_context>

<pallas_src>
import math

import jax
import jax.numpy as jnp
from jax.experimental import pallas as pl
from jax.experimental.pallas import tpu as pltpu


def tsp_encoder_kernel(data_ref, w_emb_ref, b_emb_ref,
                       wq_ref, wk_ref, wv_ref,
                       wc_ref, bc_ref,
                       w1_ref, b1_ref, w2_ref, b2_ref,
                       out_ref):
    bblk, n, _ = data_ref.shape
    h_num, e_dim, d_dim = wq_ref.shape
    m = bblk * n
    scale = 1.0 / math.sqrt(d_dim)

    # ---- flatten the batch block: all dense GEMMs see M = bblk*n rows ----
    x = data_ref[...].reshape(m, 2)                       # (M, 2)

    # ---- embedding Linear(2, E): two broadcast-FMAs on the VPU ----
    w_emb = w_emb_ref[...]                                # (2, E), pre-transposed
    emb = (x[:, 0:1] * w_emb[0:1, :]
           + x[:, 1:2] * w_emb[1:2, :]
           + b_emb_ref[...])                              # (M, E)

    # ---- multi-head attention with head-decomposed combine ----
    mh = jnp.zeros((m, e_dim), jnp.float32)
    for h in range(h_num):                                # static, unrolled
        qh = jnp.dot(emb, wq_ref[h], preferred_element_type=jnp.float32)  # (M, D)
        kh = jnp.dot(emb, wk_ref[h], preferred_element_type=jnp.float32)
        vh = jnp.dot(emb, wv_ref[h], preferred_element_type=jnp.float32)

        qb = qh.reshape(bblk, n, d_dim)
        kb = kh.reshape(bblk, n, d_dim)
        vb = vh.reshape(bblk, n, d_dim)

        s = jnp.einsum("bnd,bmd->bnm", qb, kb,
                       preferred_element_type=jnp.float32) * scale        # (Bblk,N,N)
        s = s - jnp.max(s, axis=-1, keepdims=True)
        es = jnp.exp(s)
        inv = pl.reciprocal(jnp.sum(es, axis=-1, keepdims=True), approx=False)
        p = es * inv                                                       # softmax
        oh = jnp.einsum("bnm,bmd->bnd", p, vb,
                        preferred_element_type=jnp.float32)                # (Bblk,N,D)

        # multi_head_combine decomposed: mh += head_out_h @ Wc_h
        mh = mh + jnp.dot(oh.reshape(m, d_dim), wc_ref[h],
                          preferred_element_type=jnp.float32)              # (M, E)
    mh = mh + bc_ref[...]

    # ---- residual 1 ----
    out1 = emb + mh

    # ---- feed-forward: W2(relu(W1(out1))) ----
    hdd = jnp.maximum(
        jnp.dot(out1, w1_ref[...], preferred_element_type=jnp.float32) + b1_ref[...],
        0.0)
    ff = jnp.dot(hdd, w2_ref[...], preferred_element_type=jnp.float32) + b2_ref[...]

    # ---- residual 2 ----
    out_ref[...] = (out1 + ff).reshape(bblk, n, e_dim)


def prepare_kernel_params(params, *, head_num, qkv_dim):
    """Pre-transpose / pre-split PyTorch-convention weights outside the kernel."""
    E = params["w_emb"].shape[0]
    return [
        params["w_emb"].T,                                                # (2, E)
        params["b_emb"],                                                  # (1, E)
        params["wq"].reshape(head_num, qkv_dim, E).transpose(0, 2, 1),    # (H, E, D)
        params["wk"].reshape(head_num, qkv_dim, E).transpose(0, 2, 1),    # (H, E, D)
        params["wv"].reshape(head_num, qkv_dim, E).transpose(0, 2, 1),    # (H, E, D)
        params["wc"].T.reshape(head_num, qkv_dim, E),                     # (H, D, E)
        params["bc"],                                                     # (1, E)
        params["w1"].T,                                                   # (E, F)
        params["b1"],                                                     # (1, F)
        params["w2"].T,                                                   # (F, E)
        params["b2"],                                                     # (1, E)
    ]


def tsp_encoder_pallas(data, params, *, head_num, qkv_dim, block_b=8):
    B, N, _ = data.shape
    E = params["w_emb"].shape[0]

    # Pick a batch block that divides B (keeps >=1 grid steps; ideally even).
    block_b = min(block_b, B)
    while B % block_b:
        block_b -= 1

    kparams = prepare_kernel_params(params, head_num=head_num, qkv_dim=qkv_dim)

    def full_spec(arr):
        nd = arr.ndim
        return pl.BlockSpec(arr.shape, lambda b, nd=nd: (0,) * nd)

    in_specs = [pl.BlockSpec((block_b, N, 2), lambda b: (b, 0, 0))]
    in_specs += [full_spec(p) for p in kparams]

    return pl.pallas_call(
        tsp_encoder_kernel,
        out_shape=jax.ShapeDtypeStruct((B, N, E), jnp.float32),
        grid=(B // block_b,),
        in_specs=in_specs,
        out_specs=pl.BlockSpec((block_b, N, E), lambda b: (b, 0, 0)),
        compiler_params=pltpu.CompilerParams(
            dimension_semantics=("parallel",)),
    )(data, *kparams)


def tsp_encoder_reference(data, params, *, head_num, qkv_dim):
    """Pure-JAX reference matching the PyTorch forward semantics."""
    emb = data @ params["w_emb"].T + params["b_emb"][0]                   # (B,N,E)
    B, N, E = emb.shape
    q = emb @ params["wq"].T
    k = emb @ params["wk"].T
    v = emb @ params["wv"].T

    def rbh(t):  # reshape_by_heads: (B, N, H*D) -> (B, H, N, D)
        return t.reshape(B, N, head_num, qkv_dim).transpose(0, 2, 1, 3)

    q, k, v = rbh(q), rbh(k), rbh(v)
    score = jnp.einsum("bhnd,bhmd->bhnm", q, k) / math.sqrt(qkv_dim)
    w = jax.nn.softmax(score, axis=-1)
    out = jnp.einsum("bhnm,bhmd->bhnd", w, v)                             # (B,H,N,D)
    out_concat = out.transpose(0, 2, 1, 3).reshape(B, N, head_num * qkv_dim)
    mh = out_concat @ params["wc"].T + params["bc"][0]
    out1 = emb + mh
    hdd = jax.nn.relu(out1 @ params["w1"].T + params["b1"][0])
    ff = hdd @ params["w2"].T + params["b2"][0]
    return out1 + ff


def init_params(key, embedding_dim, head_num, qkv_dim, ff_hidden_dim):
    ks = jax.random.split(key, 11)
    hd = head_num * qkv_dim
    s = 0.1
    return {
        "w_emb": s * jax.random.normal(ks[0], (embedding_dim, 2), jnp.float32),
        "b_emb": s * jax.random.normal(ks[1], (1, embedding_dim), jnp.float32),
        "wq":    s * jax.random.normal(ks[2], (hd, embedding_dim), jnp.float32),
        "wk":    s * jax.random.normal(ks[3], (hd, embedding_dim), jnp.float32),
        "wv":    s * jax.random.normal(ks[4], (hd, embedding_dim), jnp.float32),
        "wc":    s * jax.random.normal(ks[5], (embedding_dim, hd), jnp.float32),
        "bc":    s * jax.random.normal(ks[6], (1, embedding_dim), jnp.float32),
        "w1":    s * jax.random.normal(ks[7], (ff_hidden_dim, embedding_dim), jnp.float32),
        "b1":    s * jax.random.normal(ks[8], (1, ff_hidden_dim), jnp.float32),
        "w2":    s * jax.random.normal(ks[9], (embedding_dim, ff_hidden_dim), jnp.float32),
        "b2":    s * jax.random.normal(ks[10], (1, embedding_dim), jnp.float32),
    }


if __name__ == "__main__":
    # Small deterministic config consistent with the module.
    batch = 16            # 2 grid steps of block_b=8 (even -> both v7x TCs busy)
    n_cities = 8
    embedding_dim = 32
    head_num = 4
    qkv_dim = 8
    ff_hidden_dim = 64

    key = jax.random.PRNGKey(0)
    k_data, k_params = jax.random.split(key)

    data = jax.random.uniform(k_data, (batch, n_cities, 2), jnp.float32)
    params = init_params(k_params, embedding_dim, head_num, qkv_dim, ff_hidden_dim)

    out = tsp_encoder_pallas(data, params, head_num=head_num, qkv_dim=qkv_dim,
                             block_b=8)
    out = jax.block_until_ready(out)

    ref = tsp_encoder_reference(data, params, head_num=head_num, qkv_dim=qkv_dim)
    assert out.shape == (batch, n_cities, embedding_dim)
    assert jnp.allclose(out, ref, atol=1e-3, rtol=1e-3), "mismatch vs reference"

    print("KERNEL_OK")
</pallas_src>

<mosaic_0001>
module attributes {stable_mosaic.version = 11 : i64} {
  func.func @tsp_encoder_kernel(%arg0: i32, %arg1: memref<8x8x2xf32, #tpu.memory_space<vmem>>, %arg2: memref<2x32xf32, #tpu.memory_space<vmem>>, %arg3: memref<1x32xf32, #tpu.memory_space<vmem>>, %arg4: memref<4x32x8xf32, #tpu.memory_space<vmem>>, %arg5: memref<4x32x8xf32, #tpu.memory_space<vmem>>, %arg6: memref<4x32x8xf32, #tpu.memory_space<vmem>>, %arg7: memref<4x8x32xf32, #tpu.memory_space<vmem>>, %arg8: memref<1x32xf32, #tpu.memory_space<vmem>>, %arg9: memref<32x64xf32, #tpu.memory_space<vmem>>, %arg10: memref<1x64xf32, #tpu.memory_space<vmem>>, %arg11: memref<64x32xf32, #tpu.memory_space<vmem>>, %arg12: memref<1x32xf32, #tpu.memory_space<vmem>>, %arg13: memref<8x8x32xf32, #tpu.memory_space<vmem>>) attributes {dimension_semantics = [#tpu.dimension_semantics<parallel>], iteration_bounds = array<i64: 2>, scalar_prefetch = 0 : i64, scratch_operands = 0 : i64, tpu.core_type = #tpu.core_type<tc>, window_params = [{transform_indices = @transform_0, window_bounds = array<i64: 8, 8, 2>}, {pipeline_mode = #tpu.pipeline_mode<synchronous>, transform_indices = @transform_1, window_bounds = array<i64: 2, 32>}, {pipeline_mode = #tpu.pipeline_mode<synchronous>, transform_indices = @transform_2, window_bounds = array<i64: 1, 32>}, {pipeline_mode = #tpu.pipeline_mode<synchronous>, transform_indices = @transform_3, window_bounds = array<i64: 4, 32, 8>}, {pipeline_mode = #tpu.pipeline_mode<synchronous>, transform_indices = @transform_4, window_bounds = array<i64: 4, 32, 8>}, {pipeline_mode = #tpu.pipeline_mode<synchronous>, transform_indices = @transform_5, window_bounds = array<i64: 4, 32, 8>}, {pipeline_mode = #tpu.pipeline_mode<synchronous>, transform_indices = @transform_6, window_bounds = array<i64: 4, 8, 32>}, {pipeline_mode = #tpu.pipeline_mode<synchronous>, transform_indices = @transform_7, window_bounds = array<i64: 1, 32>}, {pipeline_mode = #tpu.pipeline_mode<synchronous>, transform_indices = @transform_8, window_bounds = array<i64: 32, 64>}, {pipeline_mode = #tpu.pipeline_mode<synchronous>, transform_indices = @transform_9, window_bounds = array<i64: 1, 64>}, {pipeline_mode = #tpu.pipeline_mode<synchronous>, transform_indices = @transform_10, window_bounds = array<i64: 64, 32>}, {pipeline_mode = #tpu.pipeline_mode<synchronous>, transform_indices = @transform_11, window_bounds = array<i64: 1, 32>}, {transform_indices = @transform_12, window_bounds = array<i64: 8, 8, 32>}]} {
    %c0 = arith.constant 0 : index
    %c0_0 = arith.constant 0 : index
    %c0_1 = arith.constant 0 : index
    %0 = vector.load %arg1[%c0, %c0_0, %c0_1] : memref<8x8x2xf32, #tpu.memory_space<vmem>>, vector<8x8x2xf32>
    %1 = vector.shape_cast %0 : vector<8x8x2xf32> to vector<64x2xf32>
    %c0_2 = arith.constant 0 : index
    %c0_3 = arith.constant 0 : index
    %2 = vector.load %arg2[%c0_2, %c0_3] : memref<2x32xf32, #tpu.memory_space<vmem>>, vector<2x32xf32>
    %3 = vector.extract_strided_slice %1 {offsets = [0, 0], sizes = [64, 1], strides = [1, 1]} : vector<64x2xf32> to vector<64x1xf32>
    %4 = vector.extract_strided_slice %2 {offsets = [0, 0], sizes = [1, 32], strides = [1, 1]} : vector<2x32xf32> to vector<1x32xf32>
    %5 = vector.broadcast %3 : vector<64x1xf32> to vector<64x32xf32>
    %6 = vector.broadcast %4 : vector<1x32xf32> to vector<64x32xf32>
    %7 = arith.mulf %5, %6 : vector<64x32xf32>
    %8 = vector.extract_strided_slice %1 {offsets = [0, 1], sizes = [64, 1], strides = [1, 1]} : vector<64x2xf32> to vector<64x1xf32>
    %9 = vector.extract_strided_slice %2 {offsets = [1, 0], sizes = [1, 32], strides = [1, 1]} : vector<2x32xf32> to vector<1x32xf32>
    %10 = vector.broadcast %8 : vector<64x1xf32> to vector<64x32xf32>
    %11 = vector.broadcast %9 : vector<1x32xf32> to vector<64x32xf32>
    %12 = arith.mulf %10, %11 : vector<64x32xf32>
    %13 = arith.addf %7, %12 : vector<64x32xf32>
    %c0_4 = arith.constant 0 : index
    %c0_5 = arith.constant 0 : index
    %14 = vector.load %arg3[%c0_4, %c0_5] : memref<1x32xf32, #tpu.memory_space<vmem>>, vector<1x32xf32>
    %15 = vector.broadcast %14 : vector<1x32xf32> to vector<64x32xf32>
    %16 = arith.addf %13, %15 : vector<64x32xf32>
    %cst = arith.constant 0.000000e+00 : f32
    %17 = vector.broadcast %cst : f32 to vector<64x32xf32>
    %c0_6 = arith.constant 0 : index
    %c0_7 = arith.constant 0 : index
    %c0_8 = arith.constant 0 : index
    %18 = vector.load %arg4[%c0_6, %c0_7, %c0_8] : memref<4x32x8xf32, #tpu.memory_space<vmem>>, vector<1x32x8xf32>
    %19 = vector.shape_cast %18 : vector<1x32x8xf32> to vector<32x8xf32>
    %cst_9 = arith.constant dense<0.000000e+00> : vector<64x8xf32>
    %20 = tpu.matmul %16, %19, %cst_9 {dimension_numbers = #tpu.dot_dimension_numbers<[1], [0], [0], [1], [0, 0, 1, 1], [], []>} : vector<64x32xf32>, vector<32x8xf32>, vector<64x8xf32> -> vector<64x8xf32>
    %c0_10 = arith.constant 0 : index
    %c0_11 = arith.constant 0 : index
    %c0_12 = arith.constant 0 : index
    %21 = vector.load %arg5[%c0_10, %c0_11, %c0_12] : memref<4x32x8xf32, #tpu.memory_space<vmem>>, vector<1x32x8xf32>
    %22 = vector.shape_cast %21 : vector<1x32x8xf32> to vector<32x8xf32>
    %cst_13 = arith.constant dense<0.000000e+00> : vector<64x8xf32>
    %23 = tpu.matmul %16, %22, %cst_13 {dimension_numbers = #tpu.dot_dimension_numbers<[1], [0], [0], [1], [0, 0, 1, 1], [], []>} : vector<64x32xf32>, vector<32x8xf32>, vector<64x8xf32> -> vector<64x8xf32>
    %c0_14 = arith.constant 0 : index
    %c0_15 = arith.constant 0 : index
    %c0_16 = arith.constant 0 : index
    %24 = vector.load %arg6[%c0_14, %c0_15, %c0_16] : memref<4x32x8xf32, #tpu.memory_space<vmem>>, vector<1x32x8xf32>
    %25 = vector.shape_cast %24 : vector<1x32x8xf32> to vector<32x8xf32>
    %cst_17 = arith.constant dense<0.000000e+00> : vector<64x8xf32>
    %26 = tpu.matmul %16, %25, %cst_17 {dimension_numbers = #tpu.dot_dimension_numbers<[1], [0], [0], [1], [0, 0, 1, 1], [], []>} : vector<64x32xf32>, vector<32x8xf32>, vector<64x8xf32> -> vector<64x8xf32>
    %27 = vector.shape_cast %20 : vector<64x8xf32> to vector<8x8x8xf32>
    %28 = vector.shape_cast %23 : vector<64x8xf32> to vector<8x8x8xf32>
    %29 = vector.shape_cast %26 : vector<64x8xf32> to vector<8x8x8xf32>
    "tpu.trace_start"() <{level = 10 : i32, message = "bnd,bmd->bnm"}> : () -> ()
    %cst_18 = arith.constant dense<0.000000e+00> : vector<8x8x8xf32>
    %30 = tpu.matmul %27, %28, %cst_18 {dimension_numbers = #tpu.dot_dimension_numbers<[2], [2], [1], [1], [0, 0, 0, 1, 1, 1], [0], [0]>} : vector<8x8x8xf32>, vector<8x8x8xf32>, vector<8x8x8xf32> -> vector<8x8x8xf32>
    "tpu.trace_stop"() : () -> ()
    %cst_19 = arith.constant 0.353553385 : f32
    %31 = vector.broadcast %cst_19 : f32 to vector<8x8x8xf32>
    %32 = arith.mulf %30, %31 : vector<8x8x8xf32>
    %cst_20 = arith.constant dense<0xFF800000> : vector<8x8xf32>
    %33 = vector.multi_reduction <maximumf>, %32, %cst_20 [2] : vector<8x8x8xf32> to vector<8x8xf32>
    %34 = vector.shape_cast %33 : vector<8x8xf32> to vector<8x8x1xf32>
    %35 = vector.broadcast %34 : vector<8x8x1xf32> to vector<8x8x8xf32>
    %36 = arith.subf %32, %35 : vector<8x8x8xf32>
    %37 = math.exp %36 : vector<8x8x8xf32>
    %cst_21 = arith.constant dense<0.000000e+00> : vector<8x8xf32>
    %38 = vector.multi_reduction <add>, %37, %cst_21 [2] : vector<8x8x8xf32> to vector<8x8xf32>
    %39 = vector.shape_cast %38 : vector<8x8xf32> to vector<8x8x1xf32>
    %40 = tpu.reciprocal %39 : vector<8x8x1xf32> -> vector<8x8x1xf32>
    %41 = vector.broadcast %40 : vector<8x8x1xf32> to vector<8x8x8xf32>
    %42 = arith.mulf %37, %41 : vector<8x8x8xf32>
    "tpu.trace_start"() <{level = 10 : i32, message = "bnm,bmd->bnd"}> : () -> ()
    %cst_22 = arith.constant dense<0.000000e+00> : vector<8x8x8xf32>
    %43 = tpu.matmul %42, %29, %cst_22 {dimension_numbers = #tpu.dot_dimension_numbers<[2], [1], [1], [2], [0, 0, 0, 1, 1, 2], [0], [0]>} : vector<8x8x8xf32>, vector<8x8x8xf32>, vector<8x8x8xf32> -> vector<8x8x8xf32>
    "tpu.trace_stop"() : () -> ()
    %44 = vector.shape_cast %43 : vector<8x8x8xf32> to vector<64x8xf32>
    %c0_23 = arith.constant 0 : index
    %c0_24 = arith.constant 0 : index
    %c0_25 = arith.constant 0 : index
    %45 = vector.load %arg7[%c0_23, %c0_24, %c0_25] : memref<4x8x32xf32, #tpu.memory_space<vmem>>, vector<1x8x32xf32>
    %46 = vector.shape_cast %45 : vector<1x8x32xf32> to vector<8x32xf32>
    %cst_26 = arith.constant dense<0.000000e+00> : vector<64x32xf32>
    %47 = tpu.matmul %44, %46, %cst_26 {dimension_numbers = #tpu.dot_dimension_numbers<[1], [0], [0], [1], [0, 0, 1, 1], [], []>} : vector<64x8xf32>, vector<8x32xf32>, vector<64x32xf32> -> vector<64x32xf32>
    %48 = arith.addf %17, %47 : vector<64x32xf32>
    %c1 = arith.constant 1 : index
    %c0_27 = arith.constant 0 : index
    %c0_28 = arith.constant 0 : index
    %49 = vector.load %arg4[%c1, %c0_27, %c0_28] : memref<4x32x8xf32, #tpu.memory_space<vmem>>, vector<1x32x8xf32>
    %50 = vector.shape_cast %49 : vector<1x32x8xf32> to vector<32x8xf32>
    %cst_29 = arith.constant dense<0.000000e+00> : vector<64x8xf32>
    %51 = tpu.matmul %16, %50, %cst_29 {dimension_numbers = #tpu.dot_dimension_numbers<[1], [0], [0], [1], [0, 0, 1, 1], [], []>} : vector<64x32xf32>, vector<32x8xf32>, vector<64x8xf32> -> vector<64x8xf32>
    %c1_30 = arith.constant 1 : index
    %c0_31 = arith.constant 0 : index
    %c0_32 = arith.constant 0 : index
    %52 = vector.load %arg5[%c1_30, %c0_31, %c0_32] : memref<4x32x8xf32, #tpu.memory_space<vmem>>, vector<1x32x8xf32>
    %53 = vector.shape_cast %52 : vector<1x32x8xf32> to vector<32x8xf32>
    %cst_33 = arith.constant dense<0.000000e+00> : vector<64x8xf32>
    %54 = tpu.matmul %16, %53, %cst_33 {dimension_numbers = #tpu.dot_dimension_numbers<[1], [0], [0], [1], [0, 0, 1, 1], [], []>} : vector<64x32xf32>, vector<32x8xf32>, vector<64x8xf32> -> vector<64x8xf32>
    %c1_34 = arith.constant 1 : index
    %c0_35 = arith.constant 0 : index
    %c0_36 = arith.constant 0 : index
    %55 = vector.load %arg6[%c1_34, %c0_35, %c0_36] : memref<4x32x8xf32, #tpu.memory_space<vmem>>, vector<1x32x8xf32>
    %56 = vector.shape_cast %55 : vector<1x32x8xf32> to vector<32x8xf32>
    %cst_37 = arith.constant dense<0.000000e+00> : vector<64x8xf32>
    %57 = tpu.matmul %16, %56, %cst_37 {dimension_numbers = #tpu.dot_dimension_numbers<[1], [0], [0], [1], [0, 0, 1, 1], [], []>} : vector<64x32xf32>, vector<32x8xf32>, vector<64x8xf32> -> vector<64x8xf32>
    %58 = vector.shape_cast %51 : vector<64x8xf32> to vector<8x8x8xf32>
    %59 = vector.shape_cast %54 : vector<64x8xf32> to vector<8x8x8xf32>
    %60 = vector.shape_cast %57 : vector<64x8xf32> to vector<8x8x8xf32>
    "tpu.trace_start"() <{level = 10 : i32, message = "bnd,bmd->bnm"}> : () -> ()
    %cst_38 = arith.constant dense<0.000000e+00> : vector<8x8x8xf32>
    %61 = tpu.matmul %58, %59, %cst_38 {dimension_numbers = #tpu.dot_dimension_numbers<[2], [2], [1], [1], [0, 0, 0, 1, 1, 1], [0], [0]>} : vector<8x8x8xf32>, vector<8x8x8xf32>, vector<8x8x8xf32> -> vector<8x8x8xf32>
    "tpu.trace_stop"() : () -> ()
    %cst_39 = arith.constant 0.353553385 : f32
    %62 = vector.broadcast %cst_39 : f32 to vector<8x8x8xf32>
    %63 = arith.mulf %61, %62 : vector<8x8x8xf32>
    %cst_40 = arith.constant dense<0xFF800000> : vector<8x8xf32>
    %64 = vector.multi_reduction <maximumf>, %63, %cst_40 [2] : vector<8x8x8xf32> to vector<8x8xf32>
    %65 = vector.shape_cast %64 : vector<8x8xf32> to vector<8x8x1xf32>
    %66 = vector.broadcast %65 : vector<8x8x1xf32> to vector<8x8x8xf32>
    %67 = arith.subf %63, %66 : vector<8x8x8xf32>
    %68 = math.exp %67 : vector<8x8x8xf32>
    %cst_41 = arith.constant dense<0.000000e+00> : vector<8x8xf32>
    %69 = vector.multi_reduction <add>, %68, %cst_41 [2] : vector<8x8x8xf32> to vector<8x8xf32>
    %70 = vector.shape_cast %69 : vector<8x8xf32> to vector<8x8x1xf32>
    %71 = tpu.reciprocal %70 : vector<8x8x1xf32> -> vector<8x8x1xf32>
    %72 = vector.broadcast %71 : vector<8x8x1xf32> to vector<8x8x8xf32>
    %73 = arith.mulf %68, %72 : vector<8x8x8xf32>
    "tpu.trace_start"() <{level = 10 : i32, message = "bnm,bmd->bnd"}> : () -> ()
    %cst_42 = arith.constant dense<0.000000e+00> : vector<8x8x8xf32>
    %74 = tpu.matmul %73, %60, %cst_42 {dimension_numbers = #tpu.dot_dimension_numbers<[2], [1], [1], [2], [0, 0, 0, 1, 1, 2], [0], [0]>} : vector<8x8x8xf32>, vector<8x8x8xf32>, vector<8x8x8xf32> -> vector<8x8x8xf32>
    "tpu.trace_stop"() : () -> ()
    %75 = vector.shape_cast %74 : vector<8x8x8xf32> to vector<64x8xf32>
    %c1_43 = arith.constant 1 : index
    %c0_44 = arith.constant 0 : index
    %c0_45 = arith.constant 0 : index
    %76 = vector.load %arg7[%c1_43, %c0_44, %c0_45] : memref<4x8x32xf32, #tpu.memory_space<vmem>>, vector<1x8x32xf32>
    %77 = vector.shape_cast %76 : vector<1x8x32xf32> to vector<8x32xf32>
    %cst_46 = arith.constant dense<0.000000e+00> : vector<64x32xf32>
    %78 = tpu.matmul %75, %77, %cst_46 {dimension_numbers = #tpu.dot_dimension_numbers<[1], [0], [0], [1], [0, 0, 1, 1], [], []>} : vector<64x8xf32>, vector<8x32xf32>, vector<64x32xf32> -> vector<64x32xf32>
    %79 = arith.addf %48, %78 : vector<64x32xf32>
    %c2 = arith.constant 2 : index
    %c0_47 = arith.constant 0 : index
    %c0_48 = arith.constant 0 : index
    %80 = vector.load %arg4[%c2, %c0_47, %c0_48] : memref<4x32x8xf32, #tpu.memory_space<vmem>>, vector<1x32x8xf32>
    %81 = vector.shape_cast %80 : vector<1x32x8xf32> to vector<32x8xf32>
    %cst_49 = arith.constant dense<0.000000e+00> : vector<64x8xf32>
    %82 = tpu.matmul %16, %81, %cst_49 {dimension_numbers = #tpu.dot_dimension_numbers<[1], [0], [0], [1], [0, 0, 1, 1], [], []>} : vector<64x32xf32>, vector<32x8xf32>, vector<64x8xf32> -> vector<64x8xf32>
    %c2_50 = arith.constant 2 : index
    %c0_51 = arith.constant 0 : index
    %c0_52 = arith.constant 0 : index
    %83 = vector.load %arg5[%c2_50, %c0_51, %c0_52] : memref<4x32x8xf32, #tpu.memory_space<vmem>>, vector<1x32x8xf32>
    %84 = vector.shape_cast %83 : vector<1x32x8xf32> to vector<32x8xf32>
    %cst_53 = arith.constant dense<0.000000e+00> : vector<64x8xf32>
    %85 = tpu.matmul %16, %84, %cst_53 {dimension_numbers = #tpu.dot_dimension_numbers<[1], [0], [0], [1], [0, 0, 1, 1], [], []>} : vector<64x32xf32>, vector<32x8xf32>, vector<64x8xf32> -> vector<64x8xf32>
    %c2_54 = arith.constant 2 : index
    %c0_55 = arith.constant 0 : index
    %c0_56 = arith.constant 0 : index
    %86 = vector.load %arg6[%c2_54, %c0_55, %c0_56] : memref<4x32x8xf32, #tpu.memory_space<vmem>>, vector<1x32x8xf32>
    %87 = vector.shape_cast %86 : vector<1x32x8xf32> to vector<32x8xf32>
    %cst_57 = arith.constant dense<0.000000e+00> : vector<64x8xf32>
    %88 = tpu.matmul %16, %87, %cst_57 {dimension_numbers = #tpu.dot_dimension_numbers<[1], [0], [0], [1], [0, 0, 1, 1], [], []>} : vector<64x32xf32>, vector<32x8xf32>, vector<64x8xf32> -> vector<64x8xf32>
    %89 = vector.shape_cast %82 : vector<64x8xf32> to vector<8x8x8xf32>
    %90 = vector.shape_cast %85 : vector<64x8xf32> to vector<8x8x8xf32>
    %91 = vector.shape_cast %88 : vector<64x8xf32> to vector<8x8x8xf32>
    "tpu.trace_start"() <{level = 10 : i32, message = "bnd,bmd->bnm"}> : () -> ()
    %cst_58 = arith.constant dense<0.000000e+00> : vector<8x8x8xf32>
    %92 = tpu.matmul %89, %90, %cst_58 {dimension_numbers = #tpu.dot_dimension_numbers<[2], [2], [1], [1], [0, 0, 0, 1, 1, 1], [0], [0]>} : vector<8x8x8xf32>, vector<8x8x8xf32>, vector<8x8x8xf32> -> vector<8x8x8xf32>
    "tpu.trace_stop"() : () -> ()
    %cst_59 = arith.constant 0.353553385 : f32
    %93 = vector.broadcast %cst_59 : f32 to vector<8x8x8xf32>
    %94 = arith.mulf %92, %93 : vector<8x8x8xf32>
    %cst_60 = arith.constant dense<0xFF800000> : vector<8x8xf32>
    %95 = vector.multi_reduction <maximumf>, %94, %cst_60 [2] : vector<8x8x8xf32> to vector<8x8xf32>
    %96 = vector.shape_cast %95 : vector<8x8xf32> to vector<8x8x1xf32>
    %97 = vector.broadcast %96 : vector<8x8x1xf32> to vector<8x8x8xf32>
    %98 = arith.subf %94, %97 : vector<8x8x8xf32>
    %99 = math.exp %98 : vector<8x8x8xf32>
    %cst_61 = arith.constant dense<0.000000e+00> : vector<8x8xf32>
    %100 = vector.multi_reduction <add>, %99, %cst_61 [2] : vector<8x8x8xf32> to vector<8x8xf32>
    %101 = vector.shape_cast %100 : vector<8x8xf32> to vector<8x8x1xf32>
    %102 = tpu.reciprocal %101 : vector<8x8x1xf32> -> vector<8x8x1xf32>
    %103 = vector.broadcast %102 : vector<8x8x1xf32> to vector<8x8x8xf32>
    %104 = arith.mulf %99, %103 : vector<8x8x8xf32>
    "tpu.trace_start"() <{level = 10 : i32, message = "bnm,bmd->bnd"}> : () -> ()
    %cst_62 = arith.constant dense<0.000000e+00> : vector<8x8x8xf32>
    %105 = tpu.matmul %104, %91, %cst_62 {dimension_numbers = #tpu.dot_dimension_numbers<[2], [1], [1], [2], [0, 0, 0, 1, 1, 2], [0], [0]>} : vector<8x8x8xf32>, vector<8x8x8xf32>, vector<8x8x8xf32> -> vector<8x8x8xf32>
    "tpu.trace_stop"() : () -> ()
    %106 = vector.shape_cast %105 : vector<8x8x8xf32> to vector<64x8xf32>
    %c2_63 = arith.constant 2 : index
    %c0_64 = arith.constant 0 : index
    %c0_65 = arith.constant 0 : index
    %107 = vector.load %arg7[%c2_63, %c0_64, %c0_65] : memref<4x8x32xf32, #tpu.memory_space<vmem>>, vector<1x8x32xf32>
    %108 = vector.shape_cast %107 : vector<1x8x32xf32> to vector<8x32xf32>
    %cst_66 = arith.constant dense<0.000000e+00> : vector<64x32xf32>
    %109 = tpu.matmul %106, %108, %cst_66 {dimension_numbers = #tpu.dot_dimension_numbers<[1], [0], [0], [1], [0, 0, 1, 1], [], []>} : vector<64x8xf32>, vector<8x32xf32>, vector<64x32xf32> -> vector<64x32xf32>
    %110 = arith.addf %79, %109 : vector<64x32xf32>
    %c3 = arith.constant 3 : index
    %c0_67 = arith.constant 0 : index
    %c0_68 = arith.constant 0 : index
    %111 = vector.load %arg4[%c3, %c0_67, %c0_68] : memref<4x32x8xf32, #tpu.memory_space<vmem>>, vector<1x32x8xf32>
    %112 = vector.shape_cast %111 : vector<1x32x8xf32> to vector<32x8xf32>
    %cst_69 = arith.constant dense<0.000000e+00> : vector<64x8xf32>
    %113 = tpu.matmul %16, %112, %cst_69 {dimension_numbers = #tpu.dot_dimension_numbers<[1], [0], [0], [1], [0, 0, 1, 1], [], []>} : vector<64x32xf32>, vector<32x8xf32>, vector<64x8xf32> -> vector<64x8xf32>
    %c3_70 = arith.constant 3 : index
    %c0_71 = arith.constant 0 : index
    %c0_72 = arith.constant 0 : index
    %114 = vector.load %arg5[%c3_70, %c0_71, %c0_72] : memref<4x32x8xf32, #tpu.memory_space<vmem>>, vector<1x32x8xf32>
    %115 = vector.shape_cast %114 : vector<1x32x8xf32> to vector<32x8xf32>
    %cst_73 = arith.constant dense<0.000000e+00> : vector<64x8xf32>
    %116 = tpu.matmul %16, %115, %cst_73 {dimension_numbers = #tpu.dot_dimension_numbers<[1], [0], [0], [1], [0, 0, 1, 1], [], []>} : vector<64x32xf32>, vector<32x8xf32>, vector<64x8xf32> -> vector<64x8xf32>
    %c3_74 = arith.constant 3 : index
    %c0_75 = arith.constant 0 : index
    %c0_76 = arith.constant 0 : index
    %117 = vector.load %arg6[%c3_74, %c0_75, %c0_76] : memref<4x32x8xf32, #tpu.memory_space<vmem>>, vector<1x32x8xf32>
    %118 = vector.shape_cast %117 : vector<1x32x8xf32> to vector<32x8xf32>
    %cst_77 = arith.constant dense<0.000000e+00> : vector<64x8xf32>
    %119 = tpu.matmul %16, %118, %cst_77 {dimension_numbers = #tpu.dot_dimension_numbers<[1], [0], [0], [1], [0, 0, 1, 1], [], []>} : vector<64x32xf32>, vector<32x8xf32>, vector<64x8xf32> -> vector<64x8xf32>
    %120 = vector.shape_cast %113 : vector<64x8xf32> to vector<8x8x8xf32>
    %121 = vector.shape_cast %116 : vector<64x8xf32> to vector<8x8x8xf32>
    %122 = vector.shape_cast %119 : vector<64x8xf32> to vector<8x8x8xf32>
    "tpu.trace_start"() <{level = 10 : i32, message = "bnd,bmd->bnm"}> : () -> ()
    %cst_78 = arith.constant dense<0.000000e+00> : vector<8x8x8xf32>
    %123 = tpu.matmul %120, %121, %cst_78 {dimension_numbers = #tpu.dot_dimension_numbers<[2], [2], [1], [1], [0, 0, 0, 1, 1, 1], [0], [0]>} : vector<8x8x8xf32>, vector<8x8x8xf32>, vector<8x8x8xf32> -> vector<8x8x8xf32>
    "tpu.trace_stop"() : () -> ()
    %cst_79 = arith.constant 0.353553385 : f32
    %124 = vector.broadcast %cst_79 : f32 to vector<8x8x8xf32>
    %125 = arith.mulf %123, %124 : vector<8x8x8xf32>
    %cst_80 = arith.constant dense<0xFF800000> : vector<8x8xf32>
    %126 = vector.multi_reduction <maximumf>, %125, %cst_80 [2] : vector<8x8x8xf32> to vector<8x8xf32>
    %127 = vector.shape_cast %126 : vector<8x8xf32> to vector<8x8x1xf32>
    %128 = vector.broadcast %127 : vector<8x8x1xf32> to vector<8x8x8xf32>
    %129 = arith.subf %125, %128 : vector<8x8x8xf32>
    %130 = math.exp %129 : vector<8x8x8xf32>
    %cst_81 = arith.constant dense<0.000000e+00> : vector<8x8xf32>
    %131 = vector.multi_reduction <add>, %130, %cst_81 [2] : vector<8x8x8xf32> to vector<8x8xf32>
    %132 = vector.shape_cast %131 : vector<8x8xf32> to vector<8x8x1xf32>
    %133 = tpu.reciprocal %132 : vector<8x8x1xf32> -> vector<8x8x1xf32>
    %134 = vector.broadcast %133 : vector<8x8x1xf32> to vector<8x8x8xf32>
    %135 = arith.mulf %130, %134 : vector<8x8x8xf32>
    "tpu.trace_start"() <{level = 10 : i32, message = "bnm,bmd->bnd"}> : () -> ()
    %cst_82 = arith.constant dense<0.000000e+00> : vector<8x8x8xf32>
    %136 = tpu.matmul %135, %122, %cst_82 {dimension_numbers = #tpu.dot_dimension_numbers<[2], [1], [1], [2], [0, 0, 0, 1, 1, 2], [0], [0]>} : vector<8x8x8xf32>, vector<8x8x8xf32>, vector<8x8x8xf32> -> vector<8x8x8xf32>
    "tpu.trace_stop"() : () -> ()
    %137 = vector.shape_cast %136 : vector<8x8x8xf32> to vector<64x8xf32>
    %c3_83 = arith.constant 3 : index
    %c0_84 = arith.constant 0 : index
    %c0_85 = arith.constant 0 : index
    %138 = vector.load %arg7[%c3_83, %c0_84, %c0_85] : memref<4x8x32xf32, #tpu.memory_space<vmem>>, vector<1x8x32xf32>
    %139 = vector.shape_cast %138 : vector<1x8x32xf32> to vector<8x32xf32>
    %cst_86 = arith.constant dense<0.000000e+00> : vector<64x32xf32>
    %140 = tpu.matmul %137, %139, %cst_86 {dimension_numbers = #tpu.dot_dimension_numbers<[1], [0], [0], [1], [0, 0, 1, 1], [], []>} : vector<64x8xf32>, vector<8x32xf32>, vector<64x32xf32> -> vector<64x32xf32>
    %141 = arith.addf %110, %140 : vector<64x32xf32>
    %c0_87 = arith.constant 0 : index
    %c0_88 = arith.constant 0 : index
    %142 = vector.load %arg8[%c0_87, %c0_88] : memref<1x32xf32, #tpu.memory_space<vmem>>, vector<1x32xf32>
    %143 = vector.broadcast %142 : vector<1x32xf32> to vector<64x32xf32>
    %144 = arith.addf %141, %143 : vector<64x32xf32>
    %145 = arith.addf %16, %144 : vector<64x32xf32>
    %c0_89 = arith.constant 0 : index
    %c0_90 = arith.constant 0 : index
    %146 = vector.load %arg9[%c0_89, %c0_90] : memref<32x64xf32, #tpu.memory_space<vmem>>, vector<32x64xf32>
    %cst_91 = arith.constant dense<0.000000e+00> : vector<64x64xf32>
    %147 = tpu.matmul %145, %146, %cst_91 {dimension_numbers = #tpu.dot_dimension_numbers<[1], [0], [0], [1], [0, 0, 1, 1], [], []>} : vector<64x32xf32>, vector<32x64xf32>, vector<64x64xf32> -> vector<64x64xf32>
    %c0_92 = arith.constant 0 : index
    %c0_93 = arith.constant 0 : index
    %148 = vector.load %arg10[%c0_92, %c0_93] : memref<1x64xf32, #tpu.memory_space<vmem>>, vector<1x64xf32>
    %149 = vector.broadcast %148 : vector<1x64xf32> to vector<64x64xf32>
    %150 = arith.addf %147, %149 : vector<64x64xf32>
    %cst_94 = arith.constant 0.000000e+00 : f32
    %151 = vector.broadcast %cst_94 : f32 to vector<64x64xf32>
    %152 = arith.maximumf %150, %151 : vector<64x64xf32>
    %c0_95 = arith.constant 0 : index
    %c0_96 = arith.constant 0 : index
    %153 = vector.load %arg11[%c0_95, %c0_96] : memref<64x32xf32, #tpu.memory_space<vmem>>, vector<64x32xf32>
    %cst_97 = arith.constant dense<0.000000e+00> : vector<64x32xf32>
    %154 = tpu.matmul %152, %153, %cst_97 {dimension_numbers = #tpu.dot_dimension_numbers<[1], [0], [0], [1], [0, 0, 1, 1], [], []>} : vector<64x64xf32>, vector<64x32xf32>, vector<64x32xf32> -> vector<64x32xf32>
    %c0_98 = arith.constant 0 : index
    %c0_99 = arith.constant 0 : index
    %155 = vector.load %arg12[%c0_98, %c0_99] : memref<1x32xf32, #tpu.memory_space<vmem>>, vector<1x32xf32>
    %156 = vector.broadcast %155 : vector<1x32xf32> to vector<64x32xf32>
    %157 = arith.addf %154, %156 : vector<64x32xf32>
    %158 = arith.addf %145, %157 : vector<64x32xf32>
    %159 = vector.shape_cast %158 : vector<64x32xf32> to vector<8x8x32xf32>
    %c0_100 = arith.constant 0 : index
    %c0_101 = arith.constant 0 : index
    %c0_102 = arith.constant 0 : index
    %160 = vector.load %arg13[%c0_100, %c0_101, %c0_102] : memref<8x8x32xf32, #tpu.memory_space<vmem>>, vector<8x8x32xf32>
    tpu.vector_store %arg13[%c0_100, %c0_101, %c0_102], %159 {strides = array<i32>} : memref<8x8x32xf32, #tpu.memory_space<vmem>>, vector<8x8x32xf32>,
    return
  }
  func.func @transform_0(%arg0: i32) -> (i32, i32, i32) {
    %c0_i32 = arith.constant 0 : i32
    %c0_i32_0 = arith.constant 0 : i32
    %c0_i32_1 = arith.constant 0 : i32
    return %arg0, %c0_i32, %c0_i32_0 : i32, i32, i32
  }
  func.func @transform_1(%arg0: i32) -> (i32, i32) {
    %c0_i32 = arith.constant 0 : i32
    %c0_i32_0 = arith.constant 0 : i32
    %c0_i32_1 = arith.constant 0 : i32
    return %c0_i32, %c0_i32_0 : i32, i32
  }
  func.func @transform_2(%arg0: i32) -> (i32, i32) {
    %c0_i32 = arith.constant 0 : i32
    %c0_i32_0 = arith.constant 0 : i32
    %c0_i32_1 = arith.constant 0 : i32
    return %c0_i32, %c0_i32_0 : i32, i32
  }
  func.func @transform_3(%arg0: i32) -> (i32, i32, i32) {
    %c0_i32 = arith.constant 0 : i32
    %c0_i32_0 = arith.constant 0 : i32
    %c0_i32_1 = arith.constant 0 : i32
    %c0_i32_2 = arith.constant 0 : i32
    return %c0_i32, %c0_i32_0, %c0_i32_1 : i32, i32, i32
  }
  func.func @transform_4(%arg0: i32) -> (i32, i32, i32) {
    %c0_i32 = arith.constant 0 : i32
    %c0_i32_0 = arith.constant 0 : i32
    %c0_i32_1 = arith.constant 0 : i32
    %c0_i32_2 = arith.constant 0 : i32
    return %c0_i32, %c0_i32_0, %c0_i32_1 : i32, i32, i32
  }
  func.func @transform_5(%arg0: i32) -> (i32, i32, i32) {
    %c0_i32 = arith.constant 0 : i32
    %c0_i32_0 = arith.constant 0 : i32
    %c0_i32_1 = arith.constant 0 : i32
    %c0_i32_2 = arith.constant 0 : i32
    return %c0_i32, %c0_i32_0, %c0_i32_1 : i32, i32, i32
  }
  func.func @transform_6(%arg0: i32) -> (i32, i32, i32) {
    %c0_i32 = arith.constant 0 : i32
    %c0_i32_0 = arith.constant 0 : i32
    %c0_i32_1 = arith.constant 0 : i32
    %c0_i32_2 = arith.constant 0 : i32
    return %c0_i32, %c0_i32_0, %c0_i32_1 : i32, i32, i32
  }
  func.func @transform_7(%arg0: i32) -> (i32, i32) {
    %c0_i32 = arith.constant 0 : i32
    %c0_i32_0 = arith.constant 0 : i32
    %c0_i32_1 = arith.constant 0 : i32
    return %c0_i32, %c0_i32_0 : i32, i32
  }
  func.func @transform_8(%arg0: i32) -> (i32, i32) {
    %c0_i32 = arith.constant 0 : i32
    %c0_i32_0 = arith.constant 0 : i32
    %c0_i32_1 = arith.constant 0 : i32
    return %c0_i32, %c0_i32_0 : i32, i32
  }
  func.func @transform_9(%arg0: i32) -> (i32, i32) {
    %c0_i32 = arith.constant 0 : i32
    %c0_i32_0 = arith.constant 0 : i32
    %c0_i32_1 = arith.constant 0 : i32
    return %c0_i32, %c0_i32_0 : i32, i32
  }
  func.func @transform_10(%arg0: i32) -> (i32, i32) {
    %c0_i32 = arith.constant 0 : i32
    %c0_i32_0 = arith.constant 0 : i32
    %c0_i32_1 = arith.constant 0 : i32
    return %c0_i32, %c0_i32_0 : i32, i32
  }
  func.func @transform_11(%arg0: i32) -> (i32, i32) {
    %c0_i32 = arith.constant 0 : i32
    %c0_i32_0 = arith.constant 0 : i32
    %c0_i32_1 = arith.constant 0 : i32
    return %c0_i32, %c0_i32_0 : i32, i32
  }
  func.func @transform_12(%arg0: i32) -> (i32, i32, i32) {
    %c0_i32 = arith.constant 0 : i32
    %c0_i32_0 = arith.constant 0 : i32
    %c0_i32_1 = arith.constant 0 : i32
    return %arg0, %c0_i32, %c0_i32_0 : i32, i32, i32
  }
}

</mosaic_0001>

<llo_original>
// kernel: tpu_custom_call.1
$region0: #{tpu_custom_call.1}
  #allocation0 [shape = 'u32[]', space=smem, size = 0x4, offset = 0x4, fixed_abs, tag = 'smem constant byte address 0x4 - core index']
  #allocation1 [shape = 'u32[72,128]{1,0:T(1,128)}', space=vmem, size = 0x9000, scoped, tag = 'internal scratch']
  %s0 = inlined_call_operand.vmem [shape: f32[16,8,2], index: 0, kind: input, shape index: {}]
  %s1 = inlined_call_operand.vmem [shape: f32[2,32], index: 1, kind: input, shape index: {}]
  %s2 = inlined_call_operand.vmem [shape: f32[1,32], index: 2, kind: input, shape index: {}]
  %s3 = inlined_call_operand.vmem [shape: f32[4,32,8], index: 3, kind: input, shape index: {}]
  %s4 = inlined_call_operand.vmem [shape: f32[4,32,8], index: 4, kind: input, shape index: {}]
  %s5 = inlined_call_operand.vmem [shape: f32[4,32,8], index: 5, kind: input, shape index: {}]
  %s6 = inlined_call_operand.vmem [shape: f32[4,8,32], index: 6, kind: input, shape index: {}]
  %s7 = inlined_call_operand.vmem [shape: f32[1,32], index: 7, kind: input, shape index: {}]
  %s8 = inlined_call_operand.vmem [shape: f32[32,64], index: 8, kind: input, shape index: {}]
  %s9 = inlined_call_operand.vmem [shape: f32[1,64], index: 9, kind: input, shape index: {}]
  %s10 = inlined_call_operand.vmem [shape: f32[64,32], index: 10, kind: input, shape index: {}]
  %s11 = inlined_call_operand.vmem [shape: f32[1,32], index: 11, kind: input, shape index: {}]
  %s12 = inlined_call_operand.hbm [shape: f32[16,8,32], index: 12, kind: output, shape index: {}]
  %s13 = sld [smem:[#allocation0]]
  $region81: #{tpu_custom_call.1} parent=0
    _
  %s15 = ssub.s32 1, %s13
  %s16 = scalar_select 0, %s15, %s13
  $region1: #{tpu_custom_call.1} parent=0
    #allocation2 [shape = 'u8[65536]{0}', space=vmem, size = 0x10000, scoped, tag = 'output window, operand 0']
    #allocation3 [shape = 's32[2]{0}', space=sflag, size = 0x8, scoped, tag = 'scoped memory for tpu_custom_call.1']
    %17 = vsyncpa [#allocation3], 0
    %s18 = scalar_lea.sflag [#allocation3], 1
    %19 = vsyncpa %s18, 0
    loop: start=0, step=1, limit=4
    $region2: #{tpu_custom_call.1} parent=1 // loop_pre_header
      _
    $region3: #{tpu_custom_call.1} parent=1 // loop_header
      %s21 = sphi 0, %s25
      %p22 = scmp.ge.s32.totalorder %s21, 4
      %s31 = sphi 0, %s33
      %s34 = sphi 0, %s31
      %s35 = sphi 0, %s34
      %s51 = sphi 0, %s35
      %s55 = sphi 0, %s55
      %s57 = sphi 0, %s55
      %s58 = sphi 0, %s57
      %s72 = sphi 0, %s58
      %s76 = sphi 0, %s76
      %s78 = sphi 0, %s76
      %s79 = sphi 0, %s78
      %s93 = sphi 0, %s79
      %s97 = sphi 0, %s97
      %s99 = sphi 0, %s97
      %s100 = sphi 0, %s99
      %s114 = sphi 0, %s100
      %s118 = sphi 0, %s118
      %s120 = sphi 0, %s118
      %s121 = sphi 0, %s120
      %s135 = sphi 0, %s121
      %s139 = sphi 0, %s139
      %s141 = sphi 0, %s139
      %s142 = sphi 0, %s141
      %s156 = sphi 0, %s142
      %s160 = sphi 0, %s160
      %s162 = sphi 0, %s160
      %s163 = sphi 0, %s162
      %s177 = sphi 0, %s163
      %s181 = sphi 0, %s181
      %s183 = sphi 0, %s181
      %s184 = sphi 0, %s183
      %s198 = sphi 0, %s184
      %s202 = sphi 0, %s202
      %s204 = sphi 0, %s202
      %s205 = sphi 0, %s204
      %s219 = sphi 0, %s205
      %s223 = sphi 0, %s223
      %s225 = sphi 0, %s223
      %s226 = sphi 0, %s225
      %s240 = sphi 0, %s226
      %s244 = sphi 0, %s244
      %s246 = sphi 0, %s244
      %s247 = sphi 0, %s246
      %s261 = sphi 0, %s247
      %s265 = sphi 0, %s265
      %s267 = sphi 0, %s265
      %s268 = sphi 0, %s267
      %s282 = sphi 0, %s268
      %s288 = sphi 0, %s290
      %s291 = sphi 0, %s288
      %s292 = sphi 0, %s291
      %s308 = sphi 0, %s292
    $region4: #{tpu_custom_call.1} parent=1 // loop_header_branch
      %24 = sbr.rel (%p22) target = $region8
    $region5: #{tpu_custom_call.1} parent=1 // loop_body
      %s26 = ssub.s32 %s21, 1
      %s27 = ssub.s32 %s21, 2
      %s28 = sadd.s32 %s21, 1
      %s29 = ssub.s32 %s21, %s28
      %p30 = scmp.eq.s32.totalorder %s29, 0
      %s32 = sadd.s32 %s31, 1
      %s33 = scalar_select %p30, %s31, %s32
      %p36 = pneg %p30
      %p37 = scmp.eq.s32.totalorder %s21, 1
      %p38 = por %p36, %p37
      %p39 = scmp.ne.s32.totalorder %s31, %s34
      %p40 = scmp.eq.s32.totalorder %s21, 0
      %p41 = por %p39, %p40
      %p42 = scmp.ne.s32.totalorder %s31, %s34
      %p43 = scmp.eq.s32.totalorder %s26, 1
      %p44 = por %p42, %p43
      %p45 = scmp.ne.s32.totalorder %s34, %s35
      %p46 = scmp.eq.s32.totalorder %s26, 0
      %p47 = por %p45, %p46
      %p48 = scmp.ne.s32.totalorder %s34, %s35
      %p49 = scmp.eq.s32.totalorder %s27, 1
      %p50 = por %p48, %p49
      %p52 = scmp.ne.s32.totalorder %s35, %s51
      %p53 = scmp.eq.s32.totalorder %s27, 0
      %p54 = por %p52, %p53
      %s56 = sadd.s32 %s55, 1
      %p59 = scmp.eq.s32.totalorder %s21, 1
      %p60 = scmp.ne.s32.totalorder %s55, %s57
      %p61 = scmp.eq.s32.totalorder %s21, 0
      %p62 = por %p60, %p61
      %p63 = scmp.ne.s32.totalorder %s55, %s57
      %p64 = scmp.eq.s32.totalorder %s26, 1
      %p65 = por %p63, %p64
      %p66 = scmp.ne.s32.totalorder %s57, %s58
      %p67 = scmp.eq.s32.totalorder %s26, 0
      %p68 = por %p66, %p67
      %p69 = scmp.ne.s32.totalorder %s57, %s58
      %p70 = scmp.eq.s32.totalorder %s27, 1
      %p71 = por %p69, %p70
      %p73 = scmp.ne.s32.totalorder %s58, %s72
      %p74 = scmp.eq.s32.totalorder %s27, 0
      %p75 = por %p73, %p74
      %s77 = sadd.s32 %s76, 1
      %p80 = scmp.eq.s32.totalorder %s21, 1
      %p81 = scmp.ne.s32.totalorder %s76, %s78
      %p82 = scmp.eq.s32.totalorder %s21, 0
      %p83 = por %p81, %p82
      %p84 = scmp.ne.s32.totalorder %s76, %s78
      %p85 = scmp.eq.s32.totalorder %s26, 1
      %p86 = por %p84, %p85
      %p87 = scmp.ne.s32.totalorder %s78, %s79
      %p88 = scmp.eq.s32.totalorder %s26, 0
      %p89 = por %p87, %p88
      %p90 = scmp.ne.s32.totalorder %s78, %s79
      %p91 = scmp.eq.s32.totalorder %s27, 1
      %p92 = por %p90, %p91
      %p94 = scmp.ne.s32.totalorder %s79, %s93
      %p95 = scmp.eq.s32.totalorder %s27, 0
      %p96 = por %p94, %p95
      %s98 = sadd.s32 %s97, 1
      %p101 = scmp.eq.s32.totalorder %s21, 1
      %p102 = scmp.ne.s32.totalorder %s97, %s99
      %p103 = scmp.eq.s32.totalorder %s21, 0
      %p104 = por %p102, %p103
      %p105 = scmp.ne.s32.totalorder %s97, %s99
      %p106 = scmp.eq.s32.totalorder %s26, 1
      %p107 = por %p105, %p106
      %p108 = scmp.ne.s32.totalorder %s99, %s100
      %p109 = scmp.eq.s32.totalorder %s26, 0
      %p110 = por %p108, %p109
      %p111 = scmp.ne.s32.totalorder %s99, %s100
      %p112 = scmp.eq.s32.totalorder %s27, 1
      %p113 = por %p111, %p112
      %p115 = scmp.ne.s32.totalorder %s100, %s114
      %p116 = scmp.eq.s32.totalorder %s27, 0
      %p117 = por %p115, %p116
      %s119 = sadd.s32 %s118, 1
      %p122 = scmp.eq.s32.totalorder %s21, 1
      %p123 = scmp.ne.s32.totalorder %s118, %s120
      %p124 = scmp.eq.s32.totalorder %s21, 0
      %p125 = por %p123, %p124
      %p126 = scmp.ne.s32.totalorder %s118, %s120
      %p127 = scmp.eq.s32.totalorder %s26, 1
      %p128 = por %p126, %p127
      %p129 = scmp.ne.s32.totalorder %s120, %s121
      %p130 = scmp.eq.s32.totalorder %s26, 0
      %p131 = por %p129, %p130
      %p132 = scmp.ne.s32.totalorder %s120, %s121
      %p133 = scmp.eq.s32.totalorder %s27, 1
      %p134 = por %p132, %p133
      %p136 = scmp.ne.s32.totalorder %s121, %s135
      %p137 = scmp.eq.s32.totalorder %s27, 0
      %p138 = por %p136, %p137
      %s140 = sadd.s32 %s139, 1
      %p143 = scmp.eq.s32.totalorder %s21, 1
      %p144 = scmp.ne.s32.totalorder %s139, %s141
      %p145 = scmp.eq.s32.totalorder %s21, 0
      %p146 = por %p144, %p145
      %p147 = scmp.ne.s32.totalorder %s139, %s141
      %p148 = scmp.eq.s32.totalorder %s26, 1
      %p149 = por %p147, %p148
      %p150 = scmp.ne.s32.totalorder %s141, %s142
      %p151 = scmp.eq.s32.totalorder %s26, 0
      %p152 = por %p150, %p151
      %p153 = scmp.ne.s32.totalorder %s141, %s142
      %p154 = scmp.eq.s32.totalorder %s27, 1
      %p155 = por %p153, %p154
      %p157 = scmp.ne.s32.totalorder %s142, %s156
      %p158 = scmp.eq.s32.totalorder %s27, 0
      %p159 = por %p157, %p158
      %s161 = sadd.s32 %s160, 1
      %p164 = scmp.eq.s32.totalorder %s21, 1
      %p165 = scmp.ne.s32.totalorder %s160, %s162
      %p166 = scmp.eq.s32.totalorder %s21, 0
      %p167 = por %p165, %p166
      %p168 = scmp.ne.s32.totalorder %s160, %s162
      %p169 = scmp.eq.s32.totalorder %s26, 1
      %p170 = por %p168, %p169
      %p171 = scmp.ne.s32.totalorder %s162, %s163
      %p172 = scmp.eq.s32.totalorder %s26, 0
      %p173 = por %p171, %p172
      %p174 = scmp.ne.s32.totalorder %s162, %s163
      %p175 = scmp.eq.s32.totalorder %s27, 1
      %p176 = por %p174, %p175
      %p178 = scmp.ne.s32.totalorder %s163, %s177
      %p179 = scmp.eq.s32.totalorder %s27, 0
      %p180 = por %p178, %p179
      %s182 = sadd.s32 %s181, 1
      %p185 = scmp.eq.s32.totalorder %s21, 1
      %p186 = scmp.ne.s32.totalorder %s181, %s183
      %p187 = scmp.eq.s32.totalorder %s21, 0
      %p188 = por %p186, %p187
      %p189 = scmp.ne.s32.totalorder %s181, %s183
      %p190 = scmp.eq.s32.totalorder %s26, 1
      %p191 = por %p189, %p190
      %p192 = scmp.ne.s32.totalorder %s183, %s184
      %p193 = scmp.eq.s32.totalorder %s26, 0
      %p194 = por %p192, %p193
      %p195 = scmp.ne.s32.totalorder %s183, %s184
      %p196 = scmp.eq.s32.totalorder %s27, 1
      %p197 = por %p195, %p196
      %p199 = scmp.ne.s32.totalorder %s184, %s198
      %p200 = scmp.eq.s32.totalorder %s27, 0
      %p201 = por %p199, %p200
      %s203 = sadd.s32 %s202, 1
      %p206 = scmp.eq.s32.totalorder %s21, 1
      %p207 = scmp.ne.s32.totalorder %s202, %s204
      %p208 = scmp.eq.s32.totalorder %s21, 0
      %p209 = por %p207, %p208
      %p210 = scmp.ne.s32.totalorder %s202, %s204
      %p211 = scmp.eq.s32.totalorder %s26, 1
      %p212 = por %p210, %p211
      %p213 = scmp.ne.s32.totalorder %s204, %s205
      %p214 = scmp.eq.s32.totalorder %s26, 0
      %p215 = por %p213, %p214
      %p216 = scmp.ne.s32.totalorder %s204, %s205
      %p217 = scmp.eq.s32.totalorder %s27, 1
      %p218 = por %p216, %p217
      %p220 = scmp.ne.s32.totalorder %s205, %s219
      %p221 = scmp.eq.s32.totalorder %s27, 0
      %p222 = por %p220, %p221
      %s224 = sadd.s32 %s223, 1
      %p227 = scmp.eq.s32.totalorder %s21, 1
      %p228 = scmp.ne.s32.totalorder %s223, %s225
      %p229 = scmp.eq.s32.totalorder %s21, 0
      %p230 = por %p228, %p229
      %p231 = scmp.ne.s32.totalorder %s223, %s225
      %p232 = scmp.eq.s32.totalorder %s26, 1
      %p233 = por %p231, %p232
      %p234 = scmp.ne.s32.totalorder %s225, %s226
      %p235 = scmp.eq.s32.totalorder %s26, 0
      %p236 = por %p234, %p235
      %p237 = scmp.ne.s32.totalorder %s225, %s226
      %p238 = scmp.eq.s32.totalorder %s27, 1
      %p239 = por %p237, %p238
      %p241 = scmp.ne.s32.totalorder %s226, %s240
      %p242 = scmp.eq.s32.totalorder %s27, 0
      %p243 = por %p241, %p242
      %s245 = sadd.s32 %s244, 1
      %p248 = scmp.eq.s32.totalorder %s21, 1
      %p249 = scmp.ne.s32.totalorder %s244, %s246
      %p250 = scmp.eq.s32.totalorder %s21, 0
      %p251 = por %p249, %p250
      %p252 = scmp.ne.s32.totalorder %s244, %s246
      %p253 = scmp.eq.s32.totalorder %s26, 1
      %p254 = por %p252, %p253
      %p255 = scmp.ne.s32.totalorder %s246, %s247
      %p256 = scmp.eq.s32.totalorder %s26, 0
      %p257 = por %p255, %p256
      %p258 = scmp.ne.s32.totalorder %s246, %s247
      %p259 = scmp.eq.s32.totalorder %s27, 1
      %p260 = por %p258, %p259
      %p262 = scmp.ne.s32.totalorder %s247, %s261
      %p263 = scmp.eq.s32.totalorder %s27, 0
      %p264 = por %p262, %p263
      %s266 = sadd.s32 %s265, 1
      %p269 = scmp.eq.s32.totalorder %s21, 1
      %p270 = scmp.ne.s32.totalorder %s265, %s267
      %p271 = scmp.eq.s32.totalorder %s21, 0
      %p272 = por %p270, %p271
      %p273 = scmp.ne.s32.totalorder %s265, %s267
      %p274 = scmp.eq.s32.totalorder %s26, 1
      %p275 = por %p273, %p274
      %p276 = scmp.ne.s32.totalorder %s267, %s268
      %p277 = scmp.eq.s32.totalorder %s26, 0
      %p278 = por %p276, %p277
      %p279 = scmp.ne.s32.totalorder %s267, %s268
      %p280 = scmp.eq.s32.totalorder %s27, 1
      %p281 = por %p279, %p280
      %p283 = scmp.ne.s32.totalorder %s268, %s282
      %p284 = scmp.eq.s32.totalorder %s27, 0
      %p285 = por %p283, %p284
      %s286 = ssub.s32 %s21, %s28
      %p287 = scmp.eq.s32.totalorder %s286, 0
      %s289 = sadd.s32 %s288, 1
      %s290 = scalar_select %p287, %s288, %s289
      %p293 = pneg %p287
      %p294 = scmp.eq.s32.totalorder %s21, 1
      %p295 = por %p293, %p294
      %p296 = scmp.ne.s32.totalorder %s288, %s291
      %p297 = scmp.eq.s32.totalorder %s21, 0
      %p298 = por %p296, %p297
      %p299 = scmp.ne.s32.totalorder %s288, %s291
      %p300 = scmp.eq.s32.totalorder %s26, 1
      %p301 = por %p299, %p300
      %p302 = scmp.ne.s32.totalorder %s291, %s292
      %p303 = scmp.eq.s32.totalorder %s26, 0
      %p304 = por %p302, %p303
      %p305 = scmp.ne.s32.totalorder %s291, %s292
      %p306 = scmp.eq.s32.totalorder %s27, 1
      %p307 = por %p305, %p306
      %p309 = scmp.ne.s32.totalorder %s292, %s308
      %p310 = scmp.eq.s32.totalorder %s27, 0
      %p311 = por %p309, %p310
      %p312 = scmp.le.s32.totalorder 1, %s21
      %p313 = scmp.lt.s32.totalorder %s21, 3
      %p314 = pnand %p312, %p313
      %p315 = pneg %p314
      // Predicated region
      $region9: #{tpu_custom_call.1} parent=5 // pred_check
        _
      $region10: #{tpu_custom_call.1} parent=5 // pred_check_branch
        %317 = sbr.rel (%p314) target = $region12
      $region11: #{tpu_custom_call.1} parent=5 // pred_region
        %s318 = ssub.s32 %s21, 1
        // Predicated region
        $region13: #{tpu_custom_call.1} parent=11 // pred_check
          %p319 = pneg %p68
        $region14: #{tpu_custom_call.1} parent=11 // pred_check_branch
          %321 = sbr.rel (%p319) target = $region16
        $region15: #{tpu_custom_call.1} parent=11 // pred_region
          _
        $region16: #{tpu_custom_call.1} parent=11 // pred_fallthru
          _
        // Predicated region
        $region17: #{tpu_custom_call.1} parent=11 // pred_check
          %p322 = pneg %p89
        $region18: #{tpu_custom_call.1} parent=11 // pred_check_branch
          %324 = sbr.rel (%p322) target = $region20
        $region19: #{tpu_custom_call.1} parent=11 // pred_region
          _
        $region20: #{tpu_custom_call.1} parent=11 // pred_fallthru
          _
        // Predicated region
        $region21: #{tpu_custom_call.1} parent=11 // pred_check
          %p325 = pneg %p110
        $region22: #{tpu_custom_call.1} parent=11 // pred_check_branch
          %327 = sbr.rel (%p325) target = $region24
        $region23: #{tpu_custom_call.1} parent=11 // pred_region
          _
        $region24: #{tpu_custom_call.1} parent=11 // pred_fallthru
          _
        // Predicated region
        $region25: #{tpu_custom_call.1} parent=11 // pred_check
          %p328 = pneg %p131
        $region26: #{tpu_custom_call.1} parent=11 // pred_check_branch
          %330 = sbr.rel (%p328) target = $region28
        $region27: #{tpu_custom_call.1} parent=11 // pred_region
          _
        $region28: #{tpu_custom_call.1} parent=11 // pred_fallthru
          _
        // Predicated region
        $region29: #{tpu_custom_call.1} parent=11 // pred_check
          %p331 = pneg %p152
        $region30: #{tpu_custom_call.1} parent=11 // pred_check_branch
          %333 = sbr.rel (%p331) target = $region32
        $region31: #{tpu_custom_call.1} parent=11 // pred_region
          _
        $region32: #{tpu_custom_call.1} parent=11 // pred_fallthru
          _
        // Predicated region
        $region33: #{tpu_custom_call.1} parent=11 // pred_check
          %p334 = pneg %p173
        $region34: #{tpu_custom_call.1} parent=11 // pred_check_branch
          %336 = sbr.rel (%p334) target = $region36
        $region35: #{tpu_custom_call.1} parent=11 // pred_region
          _
        $region36: #{tpu_custom_call.1} parent=11 // pred_fallthru
          _
        // Predicated region
        $region37: #{tpu_custom_call.1} parent=11 // pred_check
          %p337 = pneg %p194
        $region38: #{tpu_custom_call.1} parent=11 // pred_check_branch
          %339 = sbr.rel (%p337) target = $region40
        $region39: #{tpu_custom_call.1} parent=11 // pred_region
          _
        $region40: #{tpu_custom_call.1} parent=11 // pred_fallthru
          _
        // Predicated region
        $region41: #{tpu_custom_call.1} parent=11 // pred_check
          %p340 = pneg %p215
        $region42: #{tpu_custom_call.1} parent=11 // pred_check_branch
          %342 = sbr.rel (%p340) target = $region44
        $region43: #{tpu_custom_call.1} parent=11 // pred_region
          _
        $region44: #{tpu_custom_call.1} parent=11 // pred_fallthru
          _
        // Predicated region
        $region45: #{tpu_custom_call.1} parent=11 // pred_check
          %p343 = pneg %p236
        $region46: #{tpu_custom_call.1} parent=11 // pred_check_branch
          %345 = sbr.rel (%p343) target = $region48
        $region47: #{tpu_custom_call.1} parent=11 // pred_region
          _
        $region48: #{tpu_custom_call.1} parent=11 // pred_fallthru
          _
        // Predicated region
        $region49: #{tpu_custom_call.1} parent=11 // pred_check
          %p346 = pneg %p257
        $region50: #{tpu_custom_call.1} parent=11 // pred_check_branch
          %348 = sbr.rel (%p346) target = $region52
        $region51: #{tpu_custom_call.1} parent=11 // pred_region
          _
        $region52: #{tpu_custom_call.1} parent=11 // pred_fallthru
          _
        // Predicated region
        $region53: #{tpu_custom_call.1} parent=11 // pred_check
          %p349 = pneg %p278
        $region54: #{tpu_custom_call.1} parent=11 // pred_check_branch
          %351 = sbr.rel (%p349) target = $region56
        $region55: #{tpu_custom_call.1} parent=11 // pred_region
          _
        $region56: #{tpu_custom_call.1} parent=11 // pred_fallthru
          _
      $region12: #{tpu_custom_call.1} parent=5 // pred_fallthru
        _
      %p352 = scmp.lt.s32.totalorder %s21, 2
      // Predicated region
      $region57: #{tpu_custom_call.1} parent=5 // pred_check
        %p353 = pneg %p352
      $region58: #{tpu_custom_call.1} parent=5 // pred_check_branch
        %355 = sbr.rel (%p353) target = $region60
      $region59: #{tpu_custom_call.1} parent=5 // pred_region
        // Predicated region
        $region61: #{tpu_custom_call.1} parent=59 // pred_check
          %p356 = pneg %p41
        $region62: #{tpu_custom_call.1} parent=59 // pred_check_branch
          %358 = sbr.rel (%p356) target = $region64
        $region63: #{tpu_custom_call.1} parent=59 // pred_region
          %s359 = smul.u32 8, %s21
          %p360 = scmp.lt.s32.totalorder %s359, 15
          %s361 = scalar_select %p360, %s359, 15
          %s362 = smul.addr %s361, 8
          %s363 = scalar_lea.vmem %s0, %s362
          %s364 = smul.u32 8, %s21
        $region64: #{tpu_custom_call.1} parent=59 // pred_fallthru
          _
      $region60: #{tpu_custom_call.1} parent=5 // pred_fallthru
        _
      %p365 = scmp.le.s32.totalorder 1, %s21
      %p366 = scmp.lt.s32.totalorder %s21, 3
      %p367 = pnand %p365, %p366
      %p368 = pneg %p367
      // Predicated region
      $region65: #{tpu_custom_call.1} parent=5 // pred_check
        _
      $region66: #{tpu_custom_call.1} parent=5 // pred_check_branch
        %370 = sbr.rel (%p367) target = $region68
      $region67: #{tpu_custom_call.1} parent=5 // pred_region
        %s371 = ssub.s32 %s21, 1
        %s372 = smul.u32 8, %s26
        %p373 = scmp.lt.s32.totalorder %s372, 15
        %s374 = scalar_select %p373, %s372, 15
        %s375 = smul.addr %s374, 8
        %s376 = scalar_lea.vmem %s0, %s375
        %p377 = pneg %p47
        %p378 = pneg %p44
        %p379 = pneg %p68
        %p380 = pneg %p65
        %p381 = pneg %p89
        %p382 = pneg %p86
        %p383 = pneg %p110
        %p384 = pneg %p107
        %p385 = pneg %p131
        %p386 = pneg %p128
        %p387 = pneg %p152
        %p388 = pneg %p149
        %p389 = pneg %p173
        %p390 = pneg %p170
        %p391 = pneg %p194
        %p392 = pneg %p191
        %p393 = pneg %p215
        %p394 = pneg %p212
        %p395 = pneg %p236
        %p396 = pneg %p233
        %p397 = pneg %p257
        %p398 = pneg %p254
        %p399 = pneg %p278
        %p400 = pneg %p275
        %p401 = pneg %p304
        %p402 = pneg %p301
        %s403 = sand.u32 %s291, 1
        %s404 = scalar_lea.sflag [#allocation3], %s403
        %s405 = sand.u32 %s291, 1
        %s406 = smul.addr %s405, 64
        %s407 = scalar_lea.vmem [#allocation2], %s406
        %s408 = smul.u32 8, %s26
        %p409 = scmp.lt.s32.totalorder %s408, 15
        %s410 = scalar_select %p409, %s408, 15
        %s411 = smul.addr %s410, 8
        %s412 = scalar_lea.vmem %s0, %s411
        %s413 = smul.u32 8, %s26
        %s414 = smul.u32 8, %s26
        %v415 = vld [vmem:[%s412] sm:$0xff]
        %v416 = vld [vmem:[%s412 + $0x8] sm:$0xff]
        %v417 = vld [vmem:[%s412 + $0x10] sm:$0xff]
        %v418 = vld [vmem:[%s412 + $0x18] sm:$0xff]
        %v419 = vld [vmem:[%s412 + $0x20] sm:$0xff]
        %v420 = vld [vmem:[%s412 + $0x28] sm:$0xff]
        %v421 = vld [vmem:[%s412 + $0x30] sm:$0xff]
        %v422 = vld [vmem:[%s412 + $0x38] sm:$0xff]
        %v423 = vld [vmem:[%s1] sm:$0x3]
        %425 = vset.pattern.permute.xlu0 0
        %426 = vperm.xlu0 %425, %v415
        %v427 = vpop.permute.xlu0 %426
        %430 = vset.pattern.permute.xlu0 0
        %431 = vperm.xlu0 %430, %v416
        %v432 = vpop.permute.xlu0 %431
        %435 = vset.pattern.permute.xlu0 0
        %436 = vperm.xlu0 %435, %v417
        %v437 = vpop.permute.xlu0 %436
        %440 = vset.pattern.permute.xlu0 0
        %441 = vperm.xlu0 %440, %v418
        %v442 = vpop.permute.xlu0 %441
        %445 = vset.pattern.permute.xlu0 0
        %446 = vperm.xlu0 %445, %v419
        %v447 = vpop.permute.xlu0 %446
        %450 = vset.pattern.permute.xlu0 0
        %451 = vperm.xlu0 %450, %v420
        %v452 = vpop.permute.xlu0 %451
        %455 = vset.pattern.permute.xlu0 0
        %456 = vperm.xlu0 %455, %v421
        %v457 = vpop.permute.xlu0 %456
        %460 = vset.pattern.permute.xlu0 0
        %461 = vperm.xlu0 %460, %v422
        %v462 = vpop.permute.xlu0 %461
        %v464 = vperm.slane %v423, 0
        %v465 = vmul.f32 %v427, %v464
        %v466 = vmul.f32 %v432, %v464
        %v467 = vmul.f32 %v437, %v464
        %v468 = vmul.f32 %v442, %v464
        %v469 = vmul.f32 %v447, %v464
        %v470 = vmul.f32 %v452, %v464
        %v471 = vmul.f32 %v457, %v464
        %v472 = vmul.f32 %v462, %v464
        %473 = vset.pattern.permute.xlu0 1
        %474 = vperm.xlu0 %473, %v415
        %v475 = vpop.permute.xlu0 %474
        %477 = vset.pattern.permute.xlu0 1
        %478 = vperm.xlu0 %477, %v416
        %v479 = vpop.permute.xlu0 %478
        %481 = vset.pattern.permute.xlu0 1
        %482 = vperm.xlu0 %481, %v417
        %v483 = vpop.permute.xlu0 %482
        %485 = vset.pattern.permute.xlu0 1
        %486 = vperm.xlu0 %485, %v418
        %v487 = vpop.permute.xlu0 %486
        %489 = vset.pattern.permute.xlu0 1
        %490 = vperm.xlu0 %489, %v419
        %v491 = vpop.permute.xlu0 %490
        %493 = vset.pattern.permute.xlu0 1
        %494 = vperm.xlu0 %493, %v420
        %v495 = vpop.permute.xlu0 %494
        %497 = vset.pattern.permute.xlu0 1
        %498 = vperm.xlu0 %497, %v421
        %v499 = vpop.permute.xlu0 %498
        %501 = vset.pattern.permute.xlu0 1
        %502 = vperm.xlu0 %501, %v422
        %v503 = vpop.permute.xlu0 %502
        %v505 = vperm.slane %v423, 1
        %v506 = vmul.f32 %v475, %v505
        %v507 = vmul.f32 %v479, %v505
        %v508 = vmul.f32 %v483, %v505
        %v509 = vmul.f32 %v487, %v505
        %v510 = vmul.f32 %v491, %v505
        %v511 = vmul.f32 %v495, %v505
        %v512 = vmul.f32 %v499, %v505
        %v513 = vmul.f32 %v503, %v505
        %v514 = vadd.f32 %v465, %v506
        %v515 = vadd.f32 %v466, %v507
        %v516 = vadd.f32 %v467, %v508
        %v517 = vadd.f32 %v468, %v509
        %v518 = vadd.f32 %v469, %v510
        %v519 = vadd.f32 %v470, %v511
        %v520 = vadd.f32 %v471, %v512
        %v521 = vadd.f32 %v472, %v513
        %v522 = vld [vmem:[%s2] sm:$0x1]
        %v524 = vperm.slane %v522, 0
        %v526 = vadd.f32 %v514, %v524
        %v527 = vadd.f32 %v515, %v524
        %v528 = vadd.f32 %v516, %v524
        %v529 = vadd.f32 %v517, %v524
        %v530 = vadd.f32 %v518, %v524
        %v531 = vadd.f32 %v519, %v524
        %v532 = vadd.f32 %v520, %v524
        %v533 = vadd.f32 %v521, %v524
        %v534 = vld [vmem:[%s3] sm:$0xff]
        %v535 = vld [vmem:[%s3 + $0x8] sm:$0xff]
        %v536 = vld [vmem:[%s3 + $0x10] sm:$0xff]
        %v537 = vld [vmem:[%s3 + $0x18] sm:$0xff]
        %vm538 = vcmask 261120
        %v540 = vsel %vm538, %v526, 0
        %v543 = vsel %vm538, %v527, 0
        %v546 = vsel %vm538, %v528, 0
        %v549 = vsel %vm538, %v529, 0
        %v552 = vsel %vm538, %v530, 0
        %v555 = vsel %vm538, %v531, 0
        %v558 = vsel %vm538, %v532, 0
        %v561 = vsel %vm538, %v533, 0
        %563 = vmatpush.msra.mxu0 0.0
        %564 = vmatpush.msra.mxu0 0.0
        %565 = vmatpush.msra.mxu0 0.0
        %566 = vmatpush.msra.mxu0 0.0
        %567 = vmatpush.msra.mxu0 0.0
        %568 = vmatpush.msra.mxu0 0.0
        %569 = vmatpush.msra.mxu0 0.0
        %570 = vmatpush.msra.mxu0 0.0
        %571 = vmatpush.msra.mxu0 0.0
        %572 = vmatpush.msra.mxu0 0.0
        %573 = vmatpush.msra.mxu0 0.0
        %574 = vmatpush.msra.mxu0 0.0
        %575 = vmatpush.msra.mxu0 %v537
        %576 = vmatpush.msra.mxu0 %v536
        %577 = vmatpush.msra.mxu0 %v535
        %578 = vmatpush.msra.mxu0 %v534
        %579 = vmatmul.f32.gmra.mxu0 %v540
        %v580 = vpop.f32.mrf.mxu0
        %v581 = vadd.f32 0.0, %v580
        %582 = vmatmul.f32.gmra.mxu0 %v543
        %v583 = vpop.f32.mrf.mxu0
        %v584 = vadd.f32 0.0, %v583
        %585 = vmatmul.f32.gmra.mxu0 %v546
        %v586 = vpop.f32.mrf.mxu0
        %v587 = vadd.f32 0.0, %v586
        %588 = vmatmul.f32.gmra.mxu0 %v549
        %v589 = vpop.f32.mrf.mxu0
        %v590 = vadd.f32 0.0, %v589
        %591 = vmatmul.f32.gmra.mxu0 %v552
        %v592 = vpop.f32.mrf.mxu0
        %v593 = vadd.f32 0.0, %v592
        %594 = vmatmul.f32.gmra.mxu0 %v555
        %v595 = vpop.f32.mrf.mxu0
        %v596 = vadd.f32 0.0, %v595
        %597 = vmatmul.f32.gmra.mxu0 %v558
        %v598 = vpop.f32.mrf.mxu0
        %v599 = vadd.f32 0.0, %v598
        %600 = vmatmul.f32.gmra.mxu0 %v561
        %v601 = vpop.f32.mrf.mxu0
        %v602 = vadd.f32 0.0, %v601
        %603 = vdwg.mxu0
        %v604 = vld [vmem:[%s4] sm:$0xff]
        %v605 = vld [vmem:[%s4 + $0x8] sm:$0xff]
        %v606 = vld [vmem:[%s4 + $0x10] sm:$0xff]
        %v607 = vld [vmem:[%s4 + $0x18] sm:$0xff]
        %608 = vmatpush.msra.mxu0 0.0
        %609 = vmatpush.msra.mxu0 0.0
        %610 = vmatpush.msra.mxu0 0.0
        %611 = vmatpush.msra.mxu0 0.0
        %612 = vmatpush.msra.mxu0 0.0
        %613 = vmatpush.msra.mxu0 0.0
        %614 = vmatpush.msra.mxu0 0.0
        %615 = vmatpush.msra.mxu0 0.0
        %616 = vmatpush.msra.mxu0 0.0
        %617 = vmatpush.msra.mxu0 0.0
        %618 = vmatpush.msra.mxu0 0.0
        %619 = vmatpush.msra.mxu0 0.0
        %620 = vmatpush.msra.mxu0 %v607
        %621 = vmatpush.msra.mxu0 %v606
        %622 = vmatpush.msra.mxu0 %v605
        %623 = vmatpush.msra.mxu0 %v604
        %624 = vmatmul.f32.gmra.mxu0 %v540
        %v625 = vpop.f32.mrf.mxu0
        %v626 = vadd.f32 0.0, %v625
        %627 = vmatmul.f32.gmra.mxu0 %v543
        %v628 = vpop.f32.mrf.mxu0
        %v629 = vadd.f32 0.0, %v628
        %630 = vmatmul.f32.gmra.mxu0 %v546
        %v631 = vpop.f32.mrf.mxu0
        %v632 = vadd.f32 0.0, %v631
        %633 = vmatmul.f32.gmra.mxu0 %v549
        %v634 = vpop.f32.mrf.mxu0
        %v635 = vadd.f32 0.0, %v634
        %636 = vmatmul.f32.gmra.mxu0 %v552
        %v637 = vpop.f32.mrf.mxu0
        %v638 = vadd.f32 0.0, %v637
        %639 = vmatmul.f32.gmra.mxu0 %v555
        %v640 = vpop.f32.mrf.mxu0
        %v641 = vadd.f32 0.0, %v640
        %642 = vmatmul.f32.gmra.mxu0 %v558
        %v643 = vpop.f32.mrf.mxu0
        %v644 = vadd.f32 0.0, %v643
        %645 = vmatmul.f32.gmra.mxu0 %v561
        %v646 = vpop.f32.mrf.mxu0
        %v647 = vadd.f32 0.0, %v646
        %648 = vdwg.mxu0
        %v649 = vld [vmem:[%s5] sm:$0xff]
        %v650 = vld [vmem:[%s5 + $0x8] sm:$0xff]
        %v651 = vld [vmem:[%s5 + $0x10] sm:$0xff]
        %v652 = vld [vmem:[%s5 + $0x18] sm:$0xff]
        %653 = vmatpush.msra.mxu0 0.0
        %654 = vmatpush.msra.mxu0 0.0
        %655 = vmatpush.msra.mxu0 0.0
        %656 = vmatpush.msra.mxu0 0.0
        %657 = vmatpush.msra.mxu0 0.0
        %658 = vmatpush.msra.mxu0 0.0
        %659 = vmatpush.msra.mxu0 0.0
        %660 = vmatpush.msra.mxu0 0.0
        %661 = vmatpush.msra.mxu0 0.0
        %662 = vmatpush.msra.mxu0 0.0
        %663 = vmatpush.msra.mxu0 0.0
        %664 = vmatpush.msra.mxu0 0.0
        %665 = vmatpush.msra.mxu0 %v652
        %666 = vmatpush.msra.mxu0 %v651
        %667 = vmatpush.msra.mxu0 %v650
        %668 = vmatpush.msra.mxu0 %v649
        %669 = vmatmul.f32.gmra.mxu0 %v540
        %v670 = vpop.f32.mrf.mxu0
        %v671 = vadd.f32 0.0, %v670
        %672 = vmatmul.f32.gmra.mxu0 %v543
        %v673 = vpop.f32.mrf.mxu0
        %v674 = vadd.f32 0.0, %v673
        %675 = vmatmul.f32.gmra.mxu0 %v546
        %v676 = vpop.f32.mrf.mxu0
        %v677 = vadd.f32 0.0, %v676
        %678 = vmatmul.f32.gmra.mxu0 %v549
        %v679 = vpop.f32.mrf.mxu0
        %v680 = vadd.f32 0.0, %v679
        %681 = vmatmul.f32.gmra.mxu0 %v552
        %v682 = vpop.f32.mrf.mxu0
        %v683 = vadd.f32 0.0, %v682
        %684 = vmatmul.f32.gmra.mxu0 %v555
        %v685 = vpop.f32.mrf.mxu0
        %v686 = vadd.f32 0.0, %v685
        %687 = vmatmul.f32.gmra.mxu0 %v558
        %v688 = vpop.f32.mrf.mxu0
        %v689 = vadd.f32 0.0, %v688
        %690 = vmatmul.f32.gmra.mxu0 %v561
        %v691 = vpop.f32.mrf.mxu0
        %v692 = vadd.f32 0.0, %v691
        %693 = vdwg.mxu0
        %vm694 = vcmask 64512
        %v696 = vsel %vm694, %v581, 0
        %v699 = vsel %vm694, %v626, 0
        %701 = vmatpush.xpose.msra.mxu0 0.0
        %702 = vmatpush.xpose.msra.mxu0 0.0
        %703 = vmatpush.xpose.msra.mxu0 0.0
        %704 = vmatpush.xpose.msra.mxu0 0.0
        %705 = vmatpush.xpose.msra.mxu0 0.0
        %706 = vmatpush.xpose.msra.mxu0 0.0
        %707 = vmatpush.xpose.msra.mxu0 0.0
        %708 = vmatpush.xpose.msra.mxu0 0.0
        %709 = vmatpush.xpose.msra.mxu0 0.0
        %710 = vmatpush.xpose.msra.mxu0 0.0
        %711 = vmatpush.xpose.msra.mxu0 0.0
        %712 = vmatpush.xpose.msra.mxu0 0.0
        %713 = vmatpush.xpose.msra.mxu0 0.0
        %714 = vmatpush.xpose.msra.mxu0 0.0
        %715 = vmatpush.xpose.msra.mxu0 0.0
        %716 = vmatpush.xpose.msra.mxu0 %v699
        %717 = vmatmul.f32.gmra.mxu0 %v696
        %v718 = vpop.f32.mrf.mxu0
        %v719 = vadd.f32 0.0, %v718
        %720 = vdwg.mxu0
        %v722 = vsel %vm694, %v584, 0
        %v725 = vsel %vm694, %v629, 0
        %727 = vmatpush.xpose.msra.mxu0 0.0
        %728 = vmatpush.xpose.msra.mxu0 0.0
        %729 = vmatpush.xpose.msra.mxu0 0.0
        %730 = vmatpush.xpose.msra.mxu0 0.0
        %731 = vmatpush.xpose.msra.mxu0 0.0
        %732 = vmatpush.xpose.msra.mxu0 0.0
        %733 = vmatpush.xpose.msra.mxu0 0.0
        %734 = vmatpush.xpose.msra.mxu0 0.0
        %735 = vmatpush.xpose.msra.mxu0 0.0
        %736 = vmatpush.xpose.msra.mxu0 0.0
        %737 = vmatpush.xpose.msra.mxu0 0.0
        %738 = vmatpush.xpose.msra.mxu0 0.0
        %739 = vmatpush.xpose.msra.mxu0 0.0
        %740 = vmatpush.xpose.msra.mxu0 0.0
        %741 = vmatpush.xpose.msra.mxu0 0.0
        %742 = vmatpush.xpose.msra.mxu0 %v725
        %743 = vmatmul.f32.gmra.mxu0 %v722
        %v744 = vpop.f32.mrf.mxu0
        %v745 = vadd.f32 0.0, %v744
        %746 = vdwg.mxu0
        %v748 = vsel %vm694, %v587, 0
        %v751 = vsel %vm694, %v632, 0
        %753 = vmatpush.xpose.msra.mxu0 0.0
        %754 = vmatpush.xpose.msra.mxu0 0.0
        %755 = vmatpush.xpose.msra.mxu0 0.0
        %756 = vmatpush.xpose.msra.mxu0 0.0
        %757 = vmatpush.xpose.msra.mxu0 0.0
        %758 = vmatpush.xpose.msra.mxu0 0.0
        %759 = vmatpush.xpose.msra.mxu0 0.0
        %760 = vmatpush.xpose.msra.mxu0 0.0
        %761 = vmatpush.xpose.msra.mxu0 0.0
        %762 = vmatpush.xpose.msra.mxu0 0.0
        %763 = vmatpush.xpose.msra.mxu0 0.0
        %764 = vmatpush.xpose.msra.mxu0 0.0
        %765 = vmatpush.xpose.msra.mxu0 0.0
        %766 = vmatpush.xpose.msra.mxu0 0.0
        %767 = vmatpush.xpose.msra.mxu0 0.0
        %768 = vmatpush.xpose.msra.mxu0 %v751
        %769 = vmatmul.f32.gmra.mxu0 %v748
        %v770 = vpop.f32.mrf.mxu0
        %v771 = vadd.f32 0.0, %v770
        %772 = vdwg.mxu0
        %v774 = vsel %vm694, %v590, 0
        %v777 = vsel %vm694, %v635, 0
        %779 = vmatpush.xpose.msra.mxu0 0.0
        %780 = vmatpush.xpose.msra.mxu0 0.0
        %781 = vmatpush.xpose.msra.mxu0 0.0
        %782 = vmatpush.xpose.msra.mxu0 0.0
        %783 = vmatpush.xpose.msra.mxu0 0.0
        %784 = vmatpush.xpose.msra.mxu0 0.0
        %785 = vmatpush.xpose.msra.mxu0 0.0
        %786 = vmatpush.xpose.msra.mxu0 0.0
        %787 = vmatpush.xpose.msra.mxu0 0.0
        %788 = vmatpush.xpose.msra.mxu0 0.0
        %789 = vmatpush.xpose.msra.mxu0 0.0
        %790 = vmatpush.xpose.msra.mxu0 0.0
        %791 = vmatpush.xpose.msra.mxu0 0.0
        %792 = vmatpush.xpose.msra.mxu0 0.0
        %793 = vmatpush.xpose.msra.mxu0 0.0
        %794 = vmatpush.xpose.msra.mxu0 %v777
        %795 = vmatmul.f32.gmra.mxu0 %v774
        %v796 = vpop.f32.mrf.mxu0
        %v797 = vadd.f32 0.0, %v796
        %798 = vdwg.mxu0
        %v800 = vsel %vm694, %v593, 0
        %v803 = vsel %vm694, %v638, 0
        %805 = vmatpush.xpose.msra.mxu0 0.0
        %806 = vmatpush.xpose.msra.mxu0 0.0
        %807 = vmatpush.xpose.msra.mxu0 0.0
        %808 = vmatpush.xpose.msra.mxu0 0.0
        %809 = vmatpush.xpose.msra.mxu0 0.0
        %810 = vmatpush.xpose.msra.mxu0 0.0
        %811 = vmatpush.xpose.msra.mxu0 0.0
        %812 = vmatpush.xpose.msra.mxu0 0.0
        %813 = vmatpush.xpose.msra.mxu0 0.0
        %814 = vmatpush.xpose.msra.mxu0 0.0
        %815 = vmatpush.xpose.msra.mxu0 0.0
        %816 = vmatpush.xpose.msra.mxu0 0.0
        %817 = vmatpush.xpose.msra.mxu0 0.0
        %818 = vmatpush.xpose.msra.mxu0 0.0
        %819 = vmatpush.xpose.msra.mxu0 0.0
        %820 = vmatpush.xpose.msra.mxu0 %v803
        %821 = vmatmul.f32.gmra.mxu0 %v800
        %v822 = vpop.f32.mrf.mxu0
        %v823 = vadd.f32 0.0, %v822
        %824 = vdwg.mxu0
        %v826 = vsel %vm694, %v596, 0
        %v829 = vsel %vm694, %v641, 0
        %831 = vmatpush.xpose.msra.mxu0 0.0
        %832 = vmatpush.xpose.msra.mxu0 0.0
        %833 = vmatpush.xpose.msra.mxu0 0.0
        %834 = vmatpush.xpose.msra.mxu0 0.0
        %835 = vmatpush.xpose.msra.mxu0 0.0
        %836 = vmatpush.xpose.msra.mxu0 0.0
        %837 = vmatpush.xpose.msra.mxu0 0.0
        %838 = vmatpush.xpose.msra.mxu0 0.0
        %839 = vmatpush.xpose.msra.mxu0 0.0
        %840 = vmatpush.xpose.msra.mxu0 0.0
        %841 = vmatpush.xpose.msra.mxu0 0.0
        %842 = vmatpush.xpose.msra.mxu0 0.0
        %843 = vmatpush.xpose.msra.mxu0 0.0
        %844 = vmatpush.xpose.msra.mxu0 0.0
        %845 = vmatpush.xpose.msra.mxu0 0.0
        %846 = vmatpush.xpose.msra.mxu0 %v829
        %847 = vmatmul.f32.gmra.mxu0 %v826
        %v848 = vpop.f32.mrf.mxu0
        %v849 = vadd.f32 0.0, %v848
        %850 = vdwg.mxu0
        %v852 = vsel %vm694, %v599, 0
        %v855 = vsel %vm694, %v644, 0
        %857 = vmatpush.xpose.msra.mxu0 0.0
        %858 = vmatpush.xpose.msra.mxu0 0.0
        %859 = vmatpush.xpose.msra.mxu0 0.0
        %860 = vmatpush.xpose.msra.mxu0 0.0
        %861 = vmatpush.xpose.msra.mxu0 0.0
        %862 = vmatpush.xpose.msra.mxu0 0.0
        %863 = vmatpush.xpose.msra.mxu0 0.0
        %864 = vmatpush.xpose.msra.mxu0 0.0
        %865 = vmatpush.xpose.msra.mxu0 0.0
        %866 = vmatpush.xpose.msra.mxu0 0.0
        %867 = vmatpush.xpose.msra.mxu0 0.0
        %868 = vmatpush.xpose.msra.mxu0 0.0
        %869 = vmatpush.xpose.msra.mxu0 0.0
        %870 = vmatpush.xpose.msra.mxu0 0.0
        %871 = vmatpush.xpose.msra.mxu0 0.0
        %872 = vmatpush.xpose.msra.mxu0 %v855
        %873 = vmatmul.f32.gmra.mxu0 %v852
        %v874 = vpop.f32.mrf.mxu0
        %v875 = vadd.f32 0.0, %v874
        %876 = vdwg.mxu0
        %v878 = vsel %vm694, %v602, 0
        %v881 = vsel %vm694, %v647, 0
        %883 = vmatpush.xpose.msra.mxu0 0.0
        %884 = vmatpush.xpose.msra.mxu0 0.0
        %885 = vmatpush.xpose.msra.mxu0 0.0
        %886 = vmatpush.xpose.msra.mxu0 0.0
        %887 = vmatpush.xpose.msra.mxu0 0.0
        %888 = vmatpush.xpose.msra.mxu0 0.0
        %889 = vmatpush.xpose.msra.mxu0 0.0
        %890 = vmatpush.xpose.msra.mxu0 0.0
        %891 = vmatpush.xpose.msra.mxu0 0.0
        %892 = vmatpush.xpose.msra.mxu0 0.0
        %893 = vmatpush.xpose.msra.mxu0 0.0
        %894 = vmatpush.xpose.msra.mxu0 0.0
        %895 = vmatpush.xpose.msra.mxu0 0.0
        %896 = vmatpush.xpose.msra.mxu0 0.0
        %897 = vmatpush.xpose.msra.mxu0 0.0
        %898 = vmatpush.xpose.msra.mxu0 %v881
        %899 = vmatmul.f32.gmra.mxu0 %v878
        %v900 = vpop.f32.mrf.mxu0
        %v901 = vadd.f32 0.0, %v900
        %902 = vdwg.mxu0
        %v903 = vmul.f32 %v719, 0.35355338
        %v904 = vmul.f32 %v745, 0.35355338
        %v905 = vmul.f32 %v771, 0.35355338
        %v906 = vmul.f32 %v797, 0.35355338
        %v907 = vmul.f32 %v823, 0.35355338
        %v908 = vmul.f32 %v849, 0.35355338
        %v909 = vmul.f32 %v875, 0.35355338
        %v910 = vmul.f32 %v901, 0.35355338
        %v911 = vsel %vm694, %v903, -inf
        %912 = vmax.xlane.f32.xlu0 %v911
        %v913 = vpop.xlane.xlu0 %912
        %v914 = vsel %vm694, %v904, -inf
        %915 = vmax.xlane.f32.xlu0 %v914
        %v916 = vpop.xlane.xlu0 %915
        %v917 = vsel %vm694, %v905, -inf
        %918 = vmax.xlane.f32.xlu0 %v917
        %v919 = vpop.xlane.xlu0 %918
        %v920 = vsel %vm694, %v906, -inf
        %921 = vmax.xlane.f32.xlu0 %v920
        %v922 = vpop.xlane.xlu0 %921
        %v923 = vsel %vm694, %v907, -inf
        %924 = vmax.xlane.f32.xlu0 %v923
        %v925 = vpop.xlane.xlu0 %924
        %v926 = vsel %vm694, %v908, -inf
        %927 = vmax.xlane.f32.xlu0 %v926
        %v928 = vpop.xlane.xlu0 %927
        %v929 = vsel %vm694, %v909, -inf
        %930 = vmax.xlane.f32.xlu0 %v929
        %v931 = vpop.xlane.xlu0 %930
        %v932 = vsel %vm694, %v910, -inf
        %933 = vmax.xlane.f32.xlu0 %v932
        %v934 = vpop.xlane.xlu0 %933
        %v935 = vsub.f32 %v903, %v913
        %v936 = vsub.f32 %v904, %v916
        %v937 = vsub.f32 %v905, %v919
        %v938 = vsub.f32 %v906, %v922
        %v939 = vsub.f32 %v907, %v925
        %v940 = vsub.f32 %v908, %v928
        %v941 = vsub.f32 %v909, %v931
        %v942 = vsub.f32 %v910, %v934
        %v943 = vmul.f32 %v935, 1.442695
        %v944 = vpow.pop %v943
        %v945 = vmul.f32 %v936, 1.442695
        %v946 = vpow.pop %v945
        %v947 = vmul.f32 %v937, 1.442695
        %v948 = vpow.pop %v947
        %v949 = vmul.f32 %v938, 1.442695
        %v950 = vpow.pop %v949
        %v951 = vmul.f32 %v939, 1.442695
        %v952 = vpow.pop %v951
        %v953 = vmul.f32 %v940, 1.442695
        %v954 = vpow.pop %v953
        %v955 = vmul.f32 %v941, 1.442695
        %v956 = vpow.pop %v955
        %v957 = vmul.f32 %v942, 1.442695
        %v958 = vpow.pop %v957
        %v959 = vsel %vm694, %v944, 0.0
        %960 = vadd.xlane.f32.xlu0 %v959
        %v961 = vpop.xlane.xlu0 %960
        %v962 = vsel %vm694, %v946, 0.0
        %963 = vadd.xlane.f32.xlu0 %v962
        %v964 = vpop.xlane.xlu0 %963
        %v965 = vsel %vm694, %v948, 0.0
        %966 = vadd.xlane.f32.xlu0 %v965
        %v967 = vpop.xlane.xlu0 %966
        %v968 = vsel %vm694, %v950, 0.0
        %969 = vadd.xlane.f32.xlu0 %v968
        %v970 = vpop.xlane.xlu0 %969
        %v971 = vsel %vm694, %v952, 0.0
        %972 = vadd.xlane.f32.xlu0 %v971
        %v973 = vpop.xlane.xlu0 %972
        %v974 = vsel %vm694, %v954, 0.0
        %975 = vadd.xlane.f32.xlu0 %v974
        %v976 = vpop.xlane.xlu0 %975
        %v977 = vsel %vm694, %v956, 0.0
        %978 = vadd.xlane.f32.xlu0 %v977
        %v979 = vpop.xlane.xlu0 %978
        %v980 = vsel %vm694, %v958, 0.0
        %981 = vadd.xlane.f32.xlu0 %v980
        %v982 = vpop.xlane.xlu0 %981
        %v983 = vrcp.pop %v961
        %v984 = vmul.f32 %v961, %v983
        %v985 = vsub.f32 1.0, %v984
        %v986 = vmul.f32 %v983, %v985
        %v987 = vadd.f32 %v983, %v986
        %vm988 = vweird.f32 %v961
        %vm989 = vweird.f32 %v983
        %vm990 = vmor %vm988, %vm989
        %v991 = vsel %vm990, %v983, %v987
        %v992 = vand.u32 2147483647, %v961
        %vm993 = vcmp.eq.f32.partialorder %v992, 8.507059e+37
        %v994 = vand.u32 %v961, 2147483648
        %v995 = vor.u32 1.1754944e-38, %v994
        %v996 = vsel %vm993, %v995, %v991
        %v997 = vrcp.pop %v964
        %v998 = vmul.f32 %v964, %v997
        %v999 = vsub.f32 1.0, %v998
        %v1000 = vmul.f32 %v997, %v999
        %v1001 = vadd.f32 %v997, %v1000
        %vm1002 = vweird.f32 %v964
        %vm1003 = vweird.f32 %v997
        %vm1004 = vmor %vm1002, %vm1003
        %v1005 = vsel %vm1004, %v997, %v1001
        %v1006 = vand.u32 2147483647, %v964
        %vm1007 = vcmp.eq.f32.partialorder %v1006, 8.507059e+37
        %v1008 = vand.u32 %v964, 2147483648
        %v1009 = vor.u32 1.1754944e-38, %v1008
        %v1010 = vsel %vm1007, %v1009, %v1005
        %v1011 = vrcp.pop %v967
        %v1012 = vmul.f32 %v967, %v1011
        %v1013 = vsub.f32 1.0, %v1012
        %v1014 = vmul.f32 %v1011, %v1013
        %v1015 = vadd.f32 %v1011, %v1014
        %vm1016 = vweird.f32 %v967
        %vm1017 = vweird.f32 %v1011
        %vm1018 = vmor %vm1016, %vm1017
        %v1019 = vsel %vm1018, %v1011, %v1015
        %v1020 = vand.u32 2147483647, %v967
        %vm1021 = vcmp.eq.f32.partialorder %v1020, 8.507059e+37
        %v1022 = vand.u32 %v967, 2147483648
        %v1023 = vor.u32 1.1754944e-38, %v1022
        %v1024 = vsel %vm1021, %v1023, %v1019
        %v1025 = vrcp.pop %v970
        %v1026 = vmul.f32 %v970, %v1025
        %v1027 = vsub.f32 1.0, %v1026
        %v1028 = vmul.f32 %v1025, %v1027
        %v1029 = vadd.f32 %v1025, %v1028
        %vm1030 = vweird.f32 %v970
        %vm1031 = vweird.f32 %v1025
        %vm1032 = vmor %vm1030, %vm1031
        %v1033 = vsel %vm1032, %v1025, %v1029
        %v1034 = vand.u32 2147483647, %v970
        %vm1035 = vcmp.eq.f32.partialorder %v1034, 8.507059e+37
        %v1036 = vand.u32 %v970, 2147483648
        %v1037 = vor.u32 1.1754944e-38, %v1036
        %v1038 = vsel %vm1035, %v1037, %v1033
        %v1039 = vrcp.pop %v973
        %v1040 = vmul.f32 %v973, %v1039
        %v1041 = vsub.f32 1.0, %v1040
        %v1042 = vmul.f32 %v1039, %v1041
        %v1043 = vadd.f32 %v1039, %v1042
        %vm1044 = vweird.f32 %v973
        %vm1045 = vweird.f32 %v1039
        %vm1046 = vmor %vm1044, %vm1045
        %v1047 = vsel %vm1046, %v1039, %v1043
        %v1048 = vand.u32 2147483647, %v973
        %vm1049 = vcmp.eq.f32.partialorder %v1048, 8.507059e+37
        %v1050 = vand.u32 %v973, 2147483648
        %v1051 = vor.u32 1.1754944e-38, %v1050
        %v1052 = vsel %vm1049, %v1051, %v1047
        %v1053 = vrcp.pop %v976
        %v1054 = vmul.f32 %v976, %v1053
        %v1055 = vsub.f32 1.0, %v1054
        %v1056 = vmul.f32 %v1053, %v1055
        %v1057 = vadd.f32 %v1053, %v1056
        %vm1058 = vweird.f32 %v976
        %vm1059 = vweird.f32 %v1053
        %vm1060 = vmor %vm1058, %vm1059
        %v1061 = vsel %vm1060, %v1053, %v1057
        %v1062 = vand.u32 2147483647, %v976
        %vm1063 = vcmp.eq.f32.partialorder %v1062, 8.507059e+37
        %v1064 = vand.u32 %v976, 2147483648
        %v1065 = vor.u32 1.1754944e-38, %v1064
        %v1066 = vsel %vm1063, %v1065, %v1061
        %v1067 = vrcp.pop %v979
        %v1068 = vmul.f32 %v979, %v1067
        %v1069 = vsub.f32 1.0, %v1068
        %v1070 = vmul.f32 %v1067, %v1069
        %v1071 = vadd.f32 %v1067, %v1070
        %vm1072 = vweird.f32 %v979
        %vm1073 = vweird.f32 %v1067
        %vm1074 = vmor %vm1072, %vm1073
        %v1075 = vsel %vm1074, %v1067, %v1071
        %v1076 = vand.u32 2147483647, %v979
        %vm1077 = vcmp.eq.f32.partialorder %v1076, 8.507059e+37
        %v1078 = vand.u32 %v979, 2147483648
        %v1079 = vor.u32 1.1754944e-38, %v1078
        %v1080 = vsel %vm1077, %v1079, %v1075
        %v1081 = vrcp.pop %v982
        %v1082 = vmul.f32 %v982, %v1081
        %v1083 = vsub.f32 1.0, %v1082
        %v1084 = vmul.f32 %v1081, %v1083
        %v1085 = vadd.f32 %v1081, %v1084
        %vm1086 = vweird.f32 %v982
        %vm1087 = vweird.f32 %v1081
        %vm1088 = vmor %vm1086, %vm1087
        %v1089 = vsel %vm1088, %v1081, %v1085
        %v1090 = vand.u32 2147483647, %v982
        %vm1091 = vcmp.eq.f32.partialorder %v1090, 8.507059e+37
        %v1092 = vand.u32 %v982, 2147483648
        %v1093 = vor.u32 1.1754944e-38, %v1092
        %v1094 = vsel %vm1091, %v1093, %v1089
        %v1095 = vmul.f32 %v944, %v996
        %v1096 = vmul.f32 %v946, %v1010
        %v1097 = vmul.f32 %v948, %v1024
        %v1098 = vmul.f32 %v950, %v1038
        %v1099 = vmul.f32 %v952, %v1052
        %v1100 = vmul.f32 %v954, %v1066
        %v1101 = vmul.f32 %v956, %v1080
        %v1102 = vmul.f32 %v958, %v1094
        %v1104 = vsel %vm694, %v1095, 0
        %1106 = vmatpush.msra.mxu0 0.0
        %1107 = vmatpush.msra.mxu0 0.0
        %1108 = vmatpush.msra.mxu0 0.0
        %1109 = vmatpush.msra.mxu0 0.0
        %1110 = vmatpush.msra.mxu0 0.0
        %1111 = vmatpush.msra.mxu0 0.0
        %1112 = vmatpush.msra.mxu0 0.0
        %1113 = vmatpush.msra.mxu0 0.0
        %1114 = vmatpush.msra.mxu0 0.0
        %1115 = vmatpush.msra.mxu0 0.0
        %1116 = vmatpush.msra.mxu0 0.0
        %1117 = vmatpush.msra.mxu0 0.0
        %1118 = vmatpush.msra.mxu0 0.0
        %1119 = vmatpush.msra.mxu0 0.0
        %1120 = vmatpush.msra.mxu0 0.0
        %1121 = vmatpush.msra.mxu0 %v671
        %1122 = vmatmul.f32.gmra.mxu0 %v1104
        %v1123 = vpop.f32.mrf.mxu0
        %v1124 = vadd.f32 0.0, %v1123
        %1125 = vdwg.mxu0
        %v1127 = vsel %vm694, %v1096, 0
        %1129 = vmatpush.msra.mxu0 0.0
        %1130 = vmatpush.msra.mxu0 0.0
        %1131 = vmatpush.msra.mxu0 0.0
        %1132 = vmatpush.msra.mxu0 0.0
        %1133 = vmatpush.msra.mxu0 0.0
        %1134 = vmatpush.msra.mxu0 0.0
        %1135 = vmatpush.msra.mxu0 0.0
        %1136 = vmatpush.msra.mxu0 0.0
        %1137 = vmatpush.msra.mxu0 0.0
        %1138 = vmatpush.msra.mxu0 0.0
        %1139 = vmatpush.msra.mxu0 0.0
        %1140 = vmatpush.msra.mxu0 0.0
        %1141 = vmatpush.msra.mxu0 0.0
        %1142 = vmatpush.msra.mxu0 0.0
        %1143 = vmatpush.msra.mxu0 0.0
        %1144 = vmatpush.msra.mxu0 %v674
        %1145 = vmatmul.f32.gmra.mxu0 %v1127
        %v1146 = vpop.f32.mrf.mxu0
        %v1147 = vadd.f32 0.0, %v1146
        %1148 = vdwg.mxu0
        %v1150 = vsel %vm694, %v1097, 0
        %1152 = vmatpush.msra.mxu0 0.0
        %1153 = vmatpush.msra.mxu0 0.0
        %1154 = vmatpush.msra.mxu0 0.0
        %1155 = vmatpush.msra.mxu0 0.0
        %1156 = vmatpush.msra.mxu0 0.0
        %1157 = vmatpush.msra.mxu0 0.0
        %1158 = vmatpush.msra.mxu0 0.0
        %1159 = vmatpush.msra.mxu0 0.0
        %1160 = vmatpush.msra.mxu0 0.0
        %1161 = vmatpush.msra.mxu0 0.0
        %1162 = vmatpush.msra.mxu0 0.0
        %1163 = vmatpush.msra.mxu0 0.0
        %1164 = vmatpush.msra.mxu0 0.0
        %1165 = vmatpush.msra.mxu0 0.0
        %1166 = vmatpush.msra.mxu0 0.0
        %1167 = vmatpush.msra.mxu0 %v677
        %1168 = vmatmul.f32.gmra.mxu0 %v1150
        %v1169 = vpop.f32.mrf.mxu0
        %v1170 = vadd.f32 0.0, %v1169
        %1171 = vdwg.mxu0
        %v1173 = vsel %vm694, %v1098, 0
        %1175 = vmatpush.msra.mxu0 0.0
        %1176 = vmatpush.msra.mxu0 0.0
        %1177 = vmatpush.msra.mxu0 0.0
        %1178 = vmatpush.msra.mxu0 0.0
        %1179 = vmatpush.msra.mxu0 0.0
        %1180 = vmatpush.msra.mxu0 0.0
        %1181 = vmatpush.msra.mxu0 0.0
        %1182 = vmatpush.msra.mxu0 0.0
        %1183 = vmatpush.msra.mxu0 0.0
        %1184 = vmatpush.msra.mxu0 0.0
        %1185 = vmatpush.msra.mxu0 0.0
        %1186 = vmatpush.msra.mxu0 0.0
        %1187 = vmatpush.msra.mxu0 0.0
        %1188 = vmatpush.msra.mxu0 0.0
        %1189 = vmatpush.msra.mxu0 0.0
        %1190 = vmatpush.msra.mxu0 %v680
        %1191 = vmatmul.f32.gmra.mxu0 %v1173
        %v1192 = vpop.f32.mrf.mxu0
        %v1193 = vadd.f32 0.0, %v1192
        %1194 = vdwg.mxu0
        %v1196 = vsel %vm694, %v1099, 0
        %1198 = vmatpush.msra.mxu0 0.0
        %1199 = vmatpush.msra.mxu0 0.0
        %1200 = vmatpush.msra.mxu0 0.0
        %1201 = vmatpush.msra.mxu0 0.0
        %1202 = vmatpush.msra.mxu0 0.0
        %1203 = vmatpush.msra.mxu0 0.0
        %1204 = vmatpush.msra.mxu0 0.0
        %1205 = vmatpush.msra.mxu0 0.0
        %1206 = vmatpush.msra.mxu0 0.0
        %1207 = vmatpush.msra.mxu0 0.0
        %1208 = vmatpush.msra.mxu0 0.0
        %1209 = vmatpush.msra.mxu0 0.0
        %1210 = vmatpush.msra.mxu0 0.0
        %1211 = vmatpush.msra.mxu0 0.0
        %1212 = vmatpush.msra.mxu0 0.0
        %1213 = vmatpush.msra.mxu0 %v683
        %1214 = vmatmul.f32.gmra.mxu0 %v1196
        %v1215 = vpop.f32.mrf.mxu0
        %v1216 = vadd.f32 0.0, %v1215
        %1217 = vdwg.mxu0
        %v1219 = vsel %vm694, %v1100, 0
        %1221 = vmatpush.msra.mxu0 0.0
        %1222 = vmatpush.msra.mxu0 0.0
        %1223 = vmatpush.msra.mxu0 0.0
        %1224 = vmatpush.msra.mxu0 0.0
        %1225 = vmatpush.msra.mxu0 0.0
        %1226 = vmatpush.msra.mxu0 0.0
        %1227 = vmatpush.msra.mxu0 0.0
        %1228 = vmatpush.msra.mxu0 0.0
        %1229 = vmatpush.msra.mxu0 0.0
        %1230 = vmatpush.msra.mxu0 0.0
        %1231 = vmatpush.msra.mxu0 0.0
        %1232 = vmatpush.msra.mxu0 0.0
        %1233 = vmatpush.msra.mxu0 0.0
        %1234 = vmatpush.msra.mxu0 0.0
        %1235 = vmatpush.msra.mxu0 0.0
        %1236 = vmatpush.msra.mxu0 %v686
        %1237 = vmatmul.f32.gmra.mxu0 %v1219
        %v1238 = vpop.f32.mrf.mxu0
        %v1239 = vadd.f32 0.0, %v1238
        %1240 = vdwg.mxu0
        %v1242 = vsel %vm694, %v1101, 0
        %1244 = vmatpush.msra.mxu0 0.0
        %1245 = vmatpush.msra.mxu0 0.0
        %1246 = vmatpush.msra.mxu0 0.0
        %1247 = vmatpush.msra.mxu0 0.0
        %1248 = vmatpush.msra.mxu0 0.0
        %1249 = vmatpush.msra.mxu0 0.0
        %1250 = vmatpush.msra.mxu0 0.0
        %1251 = vmatpush.msra.mxu0 0.0
        %1252 = vmatpush.msra.mxu0 0.0
        %1253 = vmatpush.msra.mxu0 0.0
        %1254 = vmatpush.msra.mxu0 0.0
        %1255 = vmatpush.msra.mxu0 0.0
        %1256 = vmatpush.msra.mxu0 0.0
        %1257 = vmatpush.msra.mxu0 0.0
        %1258 = vmatpush.msra.mxu0 0.0
        %1259 = vmatpush.msra.mxu0 %v689
        %1260 = vmatmul.f32.gmra.mxu0 %v1242
        %v1261 = vpop.f32.mrf.mxu0
        %v1262 = vadd.f32 0.0, %v1261
        %1263 = vdwg.mxu0
        %v1265 = vsel %vm694, %v1102, 0
        %1267 = vmatpush.msra.mxu0 0.0
        %1268 = vmatpush.msra.mxu0 0.0
        %1269 = vmatpush.msra.mxu0 0.0
        %1270 = vmatpush.msra.mxu0 0.0
        %1271 = vmatpush.msra.mxu0 0.0
        %1272 = vmatpush.msra.mxu0 0.0
        %1273 = vmatpush.msra.mxu0 0.0
        %1274 = vmatpush.msra.mxu0 0.0
        %1275 = vmatpush.msra.mxu0 0.0
        %1276 = vmatpush.msra.mxu0 0.0
        %1277 = vmatpush.msra.mxu0 0.0
        %1278 = vmatpush.msra.mxu0 0.0
        %1279 = vmatpush.msra.mxu0 0.0
        %1280 = vmatpush.msra.mxu0 0.0
        %1281 = vmatpush.msra.mxu0 0.0
        %1282 = vmatpush.msra.mxu0 %v692
        %1283 = vmatmul.f32.gmra.mxu0 %v1265
        %v1284 = vpop.f32.mrf.mxu0
        %v1285 = vadd.f32 0.0, %v1284
        %1286 = vdwg.mxu0
        %v1287 = vld [vmem:[%s6] sm:$0xff]
        %s1288 = scalar_lea.vmem %s3, 32
        %v1289 = vld [vmem:[%s1288] sm:$0xff]
        %v1290 = vld [vmem:[%s1288 + $0x8] sm:$0xff]
        %v1291 = vld [vmem:[%s1288 + $0x10] sm:$0xff]
        %v1292 = vld [vmem:[%s1288 + $0x18] sm:$0xff]
        %1293 = vmatpush.msra.mxu0 0.0
        %1294 = vmatpush.msra.mxu0 0.0
        %1295 = vmatpush.msra.mxu0 0.0
        %1296 = vmatpush.msra.mxu0 0.0
        %1297 = vmatpush.msra.mxu0 0.0
        %1298 = vmatpush.msra.mxu0 0.0
        %1299 = vmatpush.msra.mxu0 0.0
        %1300 = vmatpush.msra.mxu0 0.0
        %1301 = vmatpush.msra.mxu0 0.0
        %1302 = vmatpush.msra.mxu0 0.0
        %1303 = vmatpush.msra.mxu0 0.0
        %1304 = vmatpush.msra.mxu0 0.0
        %1305 = vmatpush.msra.mxu0 %v1292
        %1306 = vmatpush.msra.mxu0 %v1291
        %1307 = vmatpush.msra.mxu0 %v1290
        %1308 = vmatpush.msra.mxu0 %v1289
        %1309 = vmatmul.f32.gmra.mxu0 %v540
        %v1310 = vpop.f32.mrf.mxu0
        %v1311 = vadd.f32 0.0, %v1310
        %1312 = vmatmul.f32.gmra.mxu0 %v543
        %v1313 = vpop.f32.mrf.mxu0
        %v1314 = vadd.f32 0.0, %v1313
        %1315 = vmatmul.f32.gmra.mxu0 %v546
        %v1316 = vpop.f32.mrf.mxu0
        %v1317 = vadd.f32 0.0, %v1316
        %1318 = vmatmul.f32.gmra.mxu0 %v549
        %v1319 = vpop.f32.mrf.mxu0
        %v1320 = vadd.f32 0.0, %v1319
        %1321 = vmatmul.f32.gmra.mxu0 %v552
        %v1322 = vpop.f32.mrf.mxu0
        %v1323 = vadd.f32 0.0, %v1322
        %1324 = vmatmul.f32.gmra.mxu0 %v555
        %v1325 = vpop.f32.mrf.mxu0
        %v1326 = vadd.f32 0.0, %v1325
        %1327 = vmatmul.f32.gmra.mxu0 %v558
        %v1328 = vpop.f32.mrf.mxu0
        %v1329 = vadd.f32 0.0, %v1328
        %1330 = vmatmul.f32.gmra.mxu0 %v561
        %v1331 = vpop.f32.mrf.mxu0
        %v1332 = vadd.f32 0.0, %v1331
        %1333 = vdwg.mxu0
        %s1334 = scalar_lea.vmem %s4, 32
        %v1335 = vld [vmem:[%s1334] sm:$0xff]
        %v1336 = vld [vmem:[%s1334 + $0x8] sm:$0xff]
        %v1337 = vld [vmem:[%s1334 + $0x10] sm:$0xff]
        %v1338 = vld [vmem:[%s1334 + $0x18] sm:$0xff]
        %1339 = vmatpush.msra.mxu0 0.0
        %1340 = vmatpush.msra.mxu0 0.0
        %1341 = vmatpush.msra.mxu0 0.0
        %1342 = vmatpush.msra.mxu0 0.0
        %1343 = vmatpush.msra.mxu0 0.0
        %1344 = vmatpush.msra.mxu0 0.0
        %1345 = vmatpush.msra.mxu0 0.0
        %1346 = vmatpush.msra.mxu0 0.0
        %1347 = vmatpush.msra.mxu0 0.0
        %1348 = vmatpush.msra.mxu0 0.0
        %1349 = vmatpush.msra.mxu0 0.0
        %1350 = vmatpush.msra.mxu0 0.0
        %1351 = vmatpush.msra.mxu0 %v1338
        %1352 = vmatpush.msra.mxu0 %v1337
        %1353 = vmatpush.msra.mxu0 %v1336
        %1354 = vmatpush.msra.mxu0 %v1335
        %1355 = vmatmul.f32.gmra.mxu0 %v540
        %v1356 = vpop.f32.mrf.mxu0
        %v1357 = vadd.f32 0.0, %v1356
        %1358 = vmatmul.f32.gmra.mxu0 %v543
        %v1359 = vpop.f32.mrf.mxu0
        %v1360 = vadd.f32 0.0, %v1359
        %1361 = vmatmul.f32.gmra.mxu0 %v546
        %v1362 = vpop.f32.mrf.mxu0
        %v1363 = vadd.f32 0.0, %v1362
        %1364 = vmatmul.f32.gmra.mxu0 %v549
        %v1365 = vpop.f32.mrf.mxu0
        %v1366 = vadd.f32 0.0, %v1365
        %1367 = vmatmul.f32.gmra.mxu0 %v552
        %v1368 = vpop.f32.mrf.mxu0
        %v1369 = vadd.f32 0.0, %v1368
        %1370 = vmatmul.f32.gmra.mxu0 %v555
        %v1371 = vpop.f32.mrf.mxu0
        %v1372 = vadd.f32 0.0, %v1371
        %1373 = vmatmul.f32.gmra.mxu0 %v558
        %v1374 = vpop.f32.mrf.mxu0
        %v1375 = vadd.f32 0.0, %v1374
        %1376 = vmatmul.f32.gmra.mxu0 %v561
        %v1377 = vpop.f32.mrf.mxu0
        %v1378 = vadd.f32 0.0, %v1377
        %1379 = vdwg.mxu0
        %s1380 = scalar_lea.vmem %s5, 32
        %v1381 = vld [vmem:[%s1380] sm:$0xff]
        %v1382 = vld [vmem:[%s1380 + $0x8] sm:$0xff]
        %v1383 = vld [vmem:[%s1380 + $0x10] sm:$0xff]
        %v1384 = vld [vmem:[%s1380 + $0x18] sm:$0xff]
        %1385 = vmatpush.msra.mxu0 0.0
        %1386 = vmatpush.msra.mxu0 0.0
        %1387 = vmatpush.msra.mxu0 0.0
        %1388 = vmatpush.msra.mxu0 0.0
        %1389 = vmatpush.msra.mxu0 0.0
        %1390 = vmatpush.msra.mxu0 0.0
        %1391 = vmatpush.msra.mxu0 0.0
        %1392 = vmatpush.msra.mxu0 0.0
        %1393 = vmatpush.msra.mxu0 0.0
        %1394 = vmatpush.msra.mxu0 0.0
        %1395 = vmatpush.msra.mxu0 0.0
        %1396 = vmatpush.msra.mxu0 0.0
        %1397 = vmatpush.msra.mxu0 %v1384
        %1398 = vmatpush.msra.mxu0 %v1383
        %1399 = vmatpush.msra.mxu0 %v1382
        %1400 = vmatpush.msra.mxu0 %v1381
        %1401 = vmatmul.f32.gmra.mxu0 %v540
        %v1402 = vpop.f32.mrf.mxu0
        %v1403 = vadd.f32 0.0, %v1402
        %1404 = vmatmul.f32.gmra.mxu0 %v543
        %v1405 = vpop.f32.mrf.mxu0
        %v1406 = vadd.f32 0.0, %v1405
        %1407 = vmatmul.f32.gmra.mxu0 %v546
        %v1408 = vpop.f32.mrf.mxu0
        %v1409 = vadd.f32 0.0, %v1408
        %1410 = vmatmul.f32.gmra.mxu0 %v549
        %v1411 = vpop.f32.mrf.mxu0
        %v1412 = vadd.f32 0.0, %v1411
        %1413 = vmatmul.f32.gmra.mxu0 %v552
        %v1414 = vpop.f32.mrf.mxu0
        %v1415 = vadd.f32 0.0, %v1414
        %1416 = vmatmul.f32.gmra.mxu0 %v555
        %v1417 = vpop.f32.mrf.mxu0
        %v1418 = vadd.f32 0.0, %v1417
        %1419 = vmatmul.f32.gmra.mxu0 %v558
        %v1420 = vpop.f32.mrf.mxu0
        %v1421 = vadd.f32 0.0, %v1420
        %1422 = vmatmul.f32.gmra.mxu0 %v561
        %v1423 = vpop.f32.mrf.mxu0
        %v1424 = vadd.f32 0.0, %v1423
        %1425 = vdwg.mxu0
        %v1427 = vsel %vm694, %v1311, 0
        %v1430 = vsel %vm694, %v1357, 0
        %1432 = vmatpush.xpose.msra.mxu0 0.0
        %1433 = vmatpush.xpose.msra.mxu0 0.0
        %1434 = vmatpush.xpose.msra.mxu0 0.0
        %1435 = vmatpush.xpose.msra.mxu0 0.0
        %1436 = vmatpush.xpose.msra.mxu0 0.0
        %1437 = vmatpush.xpose.msra.mxu0 0.0
        %1438 = vmatpush.xpose.msra.mxu0 0.0
        %1439 = vmatpush.xpose.msra.mxu0 0.0
        %1440 = vmatpush.xpose.msra.mxu0 0.0
        %1441 = vmatpush.xpose.msra.mxu0 0.0
        %1442 = vmatpush.xpose.msra.mxu0 0.0
        %1443 = vmatpush.xpose.msra.mxu0 0.0
        %1444 = vmatpush.xpose.msra.mxu0 0.0
        %1445 = vmatpush.xpose.msra.mxu0 0.0
        %1446 = vmatpush.xpose.msra.mxu0 0.0
        %1447 = vmatpush.xpose.msra.mxu0 %v1430
        %1448 = vmatmul.f32.gmra.mxu0 %v1427
        %v1449 = vpop.f32.mrf.mxu0
        %v1450 = vadd.f32 0.0, %v1449
        %1451 = vdwg.mxu0
        %v1453 = vsel %vm694, %v1314, 0
        %v1456 = vsel %vm694, %v1360, 0
        %1458 = vmatpush.xpose.msra.mxu0 0.0
        %1459 = vmatpush.xpose.msra.mxu0 0.0
        %1460 = vmatpush.xpose.msra.mxu0 0.0
        %1461 = vmatpush.xpose.msra.mxu0 0.0
        %1462 = vmatpush.xpose.msra.mxu0 0.0
        %1463 = vmatpush.xpose.msra.mxu0 0.0
        %1464 = vmatpush.xpose.msra.mxu0 0.0
        %1465 = vmatpush.xpose.msra.mxu0 0.0
        %1466 = vmatpush.xpose.msra.mxu0 0.0
        %1467 = vmatpush.xpose.msra.mxu0 0.0
        %1468 = vmatpush.xpose.msra.mxu0 0.0
        %1469 = vmatpush.xpose.msra.mxu0 0.0
        %1470 = vmatpush.xpose.msra.mxu0 0.0
        %1471 = vmatpush.xpose.msra.mxu0 0.0
        %1472 = vmatpush.xpose.msra.mxu0 0.0
        %1473 = vmatpush.xpose.msra.mxu0 %v1456
        %1474 = vmatmul.f32.gmra.mxu0 %v1453
        %v1475 = vpop.f32.mrf.mxu0
        %v1476 = vadd.f32 0.0, %v1475
        %1477 = vdwg.mxu0
        %v1479 = vsel %vm694, %v1317, 0
        %v1482 = vsel %vm694, %v1363, 0
        %1484 = vmatpush.xpose.msra.mxu0 0.0
        %1485 = vmatpush.xpose.msra.mxu0 0.0
        %1486 = vmatpush.xpose.msra.mxu0 0.0
        %1487 = vmatpush.xpose.msra.mxu0 0.0
        %1488 = vmatpush.xpose.msra.mxu0 0.0
        %1489 = vmatpush.xpose.msra.mxu0 0.0
        %1490 = vmatpush.xpose.msra.mxu0 0.0
        %1491 = vmatpush.xpose.msra.mxu0 0.0
        %1492 = vmatpush.xpose.msra.mxu0 0.0
        %1493 = vmatpush.xpose.msra.mxu0 0.0
        %1494 = vmatpush.xpose.msra.mxu0 0.0
        %1495 = vmatpush.xpose.msra.mxu0 0.0
        %1496 = vmatpush.xpose.msra.mxu0 0.0
        %1497 = vmatpush.xpose.msra.mxu0 0.0
        %1498 = vmatpush.xpose.msra.mxu0 0.0
        %1499 = vmatpush.xpose.msra.mxu0 %v1482
        %1500 = vmatmul.f32.gmra.mxu0 %v1479
        %v1501 = vpop.f32.mrf.mxu0
        %v1502 = vadd.f32 0.0, %v1501
        %1503 = vdwg.mxu0
        %v1505 = vsel %vm694, %v1320, 0
        %v1508 = vsel %vm694, %v1366, 0
        %1510 = vmatpush.xpose.msra.mxu0 0.0
        %1511 = vmatpush.xpose.msra.mxu0 0.0
        %1512 = vmatpush.xpose.msra.mxu0 0.0
        %1513 = vmatpush.xpose.msra.mxu0 0.0
        %1514 = vmatpush.xpose.msra.mxu0 0.0
        %1515 = vmatpush.xpose.msra.mxu0 0.0
        %1516 = vmatpush.xpose.msra.mxu0 0.0
        %1517 = vmatpush.xpose.msra.mxu0 0.0
        %1518 = vmatpush.xpose.msra.mxu0 0.0
        %1519 = vmatpush.xpose.msra.mxu0 0.0
        %1520 = vmatpush.xpose.msra.mxu0 0.0
        %1521 = vmatpush.xpose.msra.mxu0 0.0
        %1522 = vmatpush.xpose.msra.mxu0 0.0
        %1523 = vmatpush.xpose.msra.mxu0 0.0
        %1524 = vmatpush.xpose.msra.mxu0 0.0
        %1525 = vmatpush.xpose.msra.mxu0 %v1508
        %1526 = vmatmul.f32.gmra.mxu0 %v1505
        %v1527 = vpop.f32.mrf.mxu0
        %v1528 = vadd.f32 0.0, %v1527
        %1529 = vdwg.mxu0
        %v1531 = vsel %vm694, %v1323, 0
        %v1534 = vsel %vm694, %v1369, 0
        %1536 = vmatpush.xpose.msra.mxu0 0.0
        %1537 = vmatpush.xpose.msra.mxu0 0.0
        %1538 = vmatpush.xpose.msra.mxu0 0.0
        %1539 = vmatpush.xpose.msra.mxu0 0.0
        %1540 = vmatpush.xpose.msra.mxu0 0.0
        %1541 = vmatpush.xpose.msra.mxu0 0.0
        %1542 = vmatpush.xpose.msra.mxu0 0.0
        %1543 = vmatpush.xpose.msra.mxu0 0.0
        %1544 = vmatpush.xpose.msra.mxu0 0.0
        %1545 = vmatpush.xpose.msra.mxu0 0.0
        %1546 = vmatpush.xpose.msra.mxu0 0.0
        %1547 = vmatpush.xpose.msra.mxu0 0.0
        %1548 = vmatpush.xpose.msra.mxu0 0.0
        %1549 = vmatpush.xpose.msra.mxu0 0.0
        %1550 = vmatpush.xpose.msra.mxu0 0.0
        %1551 = vmatpush.xpose.msra.mxu0 %v1534
        %1552 = vmatmul.f32.gmra.mxu0 %v1531
        %v1553 = vpop.f32.mrf.mxu0
        %v1554 = vadd.f32 0.0, %v1553
        %1555 = vdwg.mxu0
        %v1557 = vsel %vm694, %v1326, 0
        %v1560 = vsel %vm694, %v1372, 0
        %1562 = vmatpush.xpose.msra.mxu0 0.0
        %1563 = vmatpush.xpose.msra.mxu0 0.0
        %1564 = vmatpush.xpose.msra.mxu0 0.0
        %1565 = vmatpush.xpose.msra.mxu0 0.0
        %1566 = vmatpush.xpose.msra.mxu0 0.0
        %1567 = vmatpush.xpose.msra.mxu0 0.0
        %1568 = vmatpush.xpose.msra.mxu0 0.0
        %1569 = vmatpush.xpose.msra.mxu0 0.0
        %1570 = vmatpush.xpose.msra.mxu0 0.0
        %1571 = vmatpush.xpose.msra.mxu0 0.0
        %1572 = vmatpush.xpose.msra.mxu0 0.0
        %1573 = vmatpush.xpose.msra.mxu0 0.0
        %1574 = vmatpush.xpose.msra.mxu0 0.0
        %1575 = vmatpush.xpose.msra.mxu0 0.0
        %1576 = vmatpush.xpose.msra.mxu0 0.0
        %1577 = vmatpush.xpose.msra.mxu0 %v1560
        %1578 = vmatmul.f32.gmra.mxu0 %v1557
        %v1579 = vpop.f32.mrf.mxu0
        %v1580 = vadd.f32 0.0, %v1579
        %1581 = vdwg.mxu0
        %v1583 = vsel %vm694, %v1329, 0
        %v1586 = vsel %vm694, %v1375, 0
        %1588 = vmatpush.xpose.msra.mxu0 0.0
        %1589 = vmatpush.xpose.msra.mxu0 0.0
        %1590 = vmatpush.xpose.msra.mxu0 0.0
        %1591 = vmatpush.xpose.msra.mxu0 0.0
        %1592 = vmatpush.xpose.msra.mxu0 0.0
        %1593 = vmatpush.xpose.msra.mxu0 0.0
        %1594 = vmatpush.xpose.msra.mxu0 0.0
        %1595 = vmatpush.xpose.msra.mxu0 0.0
        %1596 = vmatpush.xpose.msra.mxu0 0.0
        %1597 = vmatpush.xpose.msra.mxu0 0.0
        %1598 = vmatpush.xpose.msra.mxu0 0.0
        %1599 = vmatpush.xpose.msra.mxu0 0.0
        %1600 = vmatpush.xpose.msra.mxu0 0.0
        %1601 = vmatpush.xpose.msra.mxu0 0.0
        %1602 = vmatpush.xpose.msra.mxu0 0.0
        %1603 = vmatpush.xpose.msra.mxu0 %v1586
        %1604 = vmatmul.f32.gmra.mxu0 %v1583
        %v1605 = vpop.f32.mrf.mxu0
        %v1606 = vadd.f32 0.0, %v1605
        %1607 = vdwg.mxu0
        %v1609 = vsel %vm694, %v1332, 0
        %v1612 = vsel %vm694, %v1378, 0
        %1614 = vmatpush.xpose.msra.mxu0 0.0
        %1615 = vmatpush.xpose.msra.mxu0 0.0
        %1616 = vmatpush.xpose.msra.mxu0 0.0
        %1617 = vmatpush.xpose.msra.mxu0 0.0
        %1618 = vmatpush.xpose.msra.mxu0 0.0
        %1619 = vmatpush.xpose.msra.mxu0 0.0
        %1620 = vmatpush.xpose.msra.mxu0 0.0
        %1621 = vmatpush.xpose.msra.mxu0 0.0
        %1622 = vmatpush.xpose.msra.mxu0 0.0
        %1623 = vmatpush.xpose.msra.mxu0 0.0
        %1624 = vmatpush.xpose.msra.mxu0 0.0
        %1625 = vmatpush.xpose.msra.mxu0 0.0
        %1626 = vmatpush.xpose.msra.mxu0 0.0
        %1627 = vmatpush.xpose.msra.mxu0 0.0
        %1628 = vmatpush.xpose.msra.mxu0 0.0
        %1629 = vmatpush.xpose.msra.mxu0 %v1612
        %1630 = vmatmul.f32.gmra.mxu0 %v1609
        %v1631 = vpop.f32.mrf.mxu0
        %v1632 = vadd.f32 0.0, %v1631
        %1633 = vdwg.mxu0
        %v1634 = vmul.f32 %v1450, 0.35355338
        %v1635 = vmul.f32 %v1476, 0.35355338
        %v1636 = vmul.f32 %v1502, 0.35355338
        %v1637 = vmul.f32 %v1528, 0.35355338
        %v1638 = vmul.f32 %v1554, 0.35355338
        %v1639 = vmul.f32 %v1580, 0.35355338
        %v1640 = vmul.f32 %v1606, 0.35355338
        %v1641 = vmul.f32 %v1632, 0.35355338
        %v1642 = vsel %vm694, %v1634, -inf
        %1643 = vmax.xlane.f32.xlu0 %v1642
        %v1644 = vpop.xlane.xlu0 %1643
        %v1645 = vsel %vm694, %v1635, -inf
        %1646 = vmax.xlane.f32.xlu0 %v1645
        %v1647 = vpop.xlane.xlu0 %1646
        %v1648 = vsel %vm694, %v1636, -inf
        %1649 = vmax.xlane.f32.xlu0 %v1648
        %v1650 = vpop.xlane.xlu0 %1649
        %v1651 = vsel %vm694, %v1637, -inf
        %1652 = vmax.xlane.f32.xlu0 %v1651
        %v1653 = vpop.xlane.xlu0 %1652
        %v1654 = vsel %vm694, %v1638, -inf
        %1655 = vmax.xlane.f32.xlu0 %v1654
        %v1656 = vpop.xlane.xlu0 %1655
        %v1657 = vsel %vm694, %v1639, -inf
        %1658 = vmax.xlane.f32.xlu0 %v1657
        %v1659 = vpop.xlane.xlu0 %1658
        %v1660 = vsel %vm694, %v1640, -inf
        %1661 = vmax.xlane.f32.xlu0 %v1660
        %v1662 = vpop.xlane.xlu0 %1661
        %v1663 = vsel %vm694, %v1641, -inf
        %1664 = vmax.xlane.f32.xlu0 %v1663
        %v1665 = vpop.xlane.xlu0 %1664
        %v1666 = vsub.f32 %v1634, %v1644
        %v1667 = vsub.f32 %v1635, %v1647
        %v1668 = vsub.f32 %v1636, %v1650
        %v1669 = vsub.f32 %v1637, %v1653
        %v1670 = vsub.f32 %v1638, %v1656
        %v1671 = vsub.f32 %v1639, %v1659
        %v1672 = vsub.f32 %v1640, %v1662
        %v1673 = vsub.f32 %v1641, %v1665
        %v1674 = vmul.f32 %v1666, 1.442695
        %v1675 = vpow.pop %v1674
        %v1676 = vmul.f32 %v1667, 1.442695
        %v1677 = vpow.pop %v1676
        %v1678 = vmul.f32 %v1668, 1.442695
        %v1679 = vpow.pop %v1678
        %v1680 = vmul.f32 %v1669, 1.442695
        %v1681 = vpow.pop %v1680
        %v1682 = vmul.f32 %v1670, 1.442695
        %v1683 = vpow.pop %v1682
        %v1684 = vmul.f32 %v1671, 1.442695
        %v1685 = vpow.pop %v1684
        %v1686 = vmul.f32 %v1672, 1.442695
        %v1687 = vpow.pop %v1686
        %v1688 = vmul.f32 %v1673, 1.442695
        %v1689 = vpow.pop %v1688
        %v1690 = vsel %vm694, %v1675, 0.0
        %1691 = vadd.xlane.f32.xlu0 %v1690
        %v1692 = vpop.xlane.xlu0 %1691
        %v1693 = vsel %vm694, %v1677, 0.0
        %1694 = vadd.xlane.f32.xlu0 %v1693
        %v1695 = vpop.xlane.xlu0 %1694
        %v1696 = vsel %vm694, %v1679, 0.0
        %1697 = vadd.xlane.f32.xlu0 %v1696
        %v1698 = vpop.xlane.xlu0 %1697
        %v1699 = vsel %vm694, %v1681, 0.0
        %1700 = vadd.xlane.f32.xlu0 %v1699
        %v1701 = vpop.xlane.xlu0 %1700
        %v1702 = vsel %vm694, %v1683, 0.0
        %1703 = vadd.xlane.f32.xlu0 %v1702
        %v1704 = vpop.xlane.xlu0 %1703
        %v1705 = vsel %vm694, %v1685, 0.0
        %1706 = vadd.xlane.f32.xlu0 %v1705
        %v1707 = vpop.xlane.xlu0 %1706
        %v1708 = vsel %vm694, %v1687, 0.0
        %1709 = vadd.xlane.f32.xlu0 %v1708
        %v1710 = vpop.xlane.xlu0 %1709
        %v1711 = vsel %vm694, %v1689, 0.0
        %1712 = vadd.xlane.f32.xlu0 %v1711
        %v1713 = vpop.xlane.xlu0 %1712
        %v1714 = vrcp.pop %v1692
        %v1715 = vmul.f32 %v1692, %v1714
        %v1716 = vsub.f32 1.0, %v1715
        %v1717 = vmul.f32 %v1714, %v1716
        %v1718 = vadd.f32 %v1714, %v1717
        %vm1719 = vweird.f32 %v1692
        %vm1720 = vweird.f32 %v1714
        %vm1721 = vmor %vm1719, %vm1720
        %v1722 = vsel %vm1721, %v1714, %v1718
        %v1723 = vand.u32 2147483647, %v1692
        %vm1724 = vcmp.eq.f32.partialorder %v1723, 8.507059e+37
        %v1725 = vand.u32 %v1692, 2147483648
        %v1726 = vor.u32 1.1754944e-38, %v1725
        %v1727 = vsel %vm1724, %v1726, %v1722
        %v1728 = vrcp.pop %v1695
        %v1729 = vmul.f32 %v1695, %v1728
        %v1730 = vsub.f32 1.0, %v1729
        %v1731 = vmul.f32 %v1728, %v1730
        %v1732 = vadd.f32 %v1728, %v1731
        %vm1733 = vweird.f32 %v1695
        %vm1734 = vweird.f32 %v1728
        %vm1735 = vmor %vm1733, %vm1734
        %v1736 = vsel %vm1735, %v1728, %v1732
        %v1737 = vand.u32 2147483647, %v1695
        %vm1738 = vcmp.eq.f32.partialorder %v1737, 8.507059e+37
        %v1739 = vand.u32 %v1695, 2147483648
        %v1740 = vor.u32 1.1754944e-38, %v1739
        %v1741 = vsel %vm1738, %v1740, %v1736
        %v1742 = vrcp.pop %v1698
        %v1743 = vmul.f32 %v1698, %v1742
        %v1744 = vsub.f32 1.0, %v1743
        %v1745 = vmul.f32 %v1742, %v1744
        %v1746 = vadd.f32 %v1742, %v1745
        %vm1747 = vweird.f32 %v1698
        %vm1748 = vweird.f32 %v1742
        %vm1749 = vmor %vm1747, %vm1748
        %v1750 = vsel %vm1749, %v1742, %v1746
        %v1751 = vand.u32 2147483647, %v1698
        %vm1752 = vcmp.eq.f32.partialorder %v1751, 8.507059e+37
        %v1753 = vand.u32 %v1698, 2147483648
        %v1754 = vor.u32 1.1754944e-38, %v1753
        %v1755 = vsel %vm1752, %v1754, %v1750
        %v1756 = vrcp.pop %v1701
        %v1757 = vmul.f32 %v1701, %v1756
        %v1758 = vsub.f32 1.0, %v1757
        %v1759 = vmul.f32 %v1756, %v1758
        %v1760 = vadd.f32 %v1756, %v1759
        %vm1761 = vweird.f32 %v1701
        %vm1762 = vweird.f32 %v1756
        %vm1763 = vmor %vm1761, %vm1762
        %v1764 = vsel %vm1763, %v1756, %v1760
        %v1765 = vand.u32 2147483647, %v1701
        %vm1766 = vcmp.eq.f32.partialorder %v1765, 8.507059e+37
        %v1767 = vand.u32 %v1701, 2147483648
        %v1768 = vor.u32 1.1754944e-38, %v1767
        %v1769 = vsel %vm1766, %v1768, %v1764
        %v1770 = vrcp.pop %v1704
        %v1771 = vmul.f32 %v1704, %v1770
        %v1772 = vsub.f32 1.0, %v1771
        %v1773 = vmul.f32 %v1770, %v1772
        %v1774 = vadd.f32 %v1770, %v1773
        %vm1775 = vweird.f32 %v1704
        %vm1776 = vweird.f32 %v1770
        %vm1777 = vmor %vm1775, %vm1776
        %v1778 = vsel %vm1777, %v1770, %v1774
        %v1779 = vand.u32 2147483647, %v1704
        %vm1780 = vcmp.eq.f32.partialorder %v1779, 8.507059e+37
        %v1781 = vand.u32 %v1704, 2147483648
        %v1782 = vor.u32 1.1754944e-38, %v1781
        %v1783 = vsel %vm1780, %v1782, %v1778
        %v1784 = vrcp.pop %v1707
        %v1785 = vmul.f32 %v1707, %v1784
        %v1786 = vsub.f32 1.0, %v1785
        %v1787 = vmul.f32 %v1784, %v1786
        %v1788 = vadd.f32 %v1784, %v1787
        %vm1789 = vweird.f32 %v1707
        %vm1790 = vweird.f32 %v1784
        %vm1791 = vmor %vm1789, %vm1790
        %v1792 = vsel %vm1791, %v1784, %v1788
        %v1793 = vand.u32 2147483647, %v1707
        %vm1794 = vcmp.eq.f32.partialorder %v1793, 8.507059e+37
        %v1795 = vand.u32 %v1707, 2147483648
        %v1796 = vor.u32 1.1754944e-38, %v1795
        %v1797 = vsel %vm1794, %v1796, %v1792
        %v1798 = vrcp.pop %v1710
        %v1799 = vmul.f32 %v1710, %v1798
        %v1800 = vsub.f32 1.0, %v1799
        %v1801 = vmul.f32 %v1798, %v1800
        %v1802 = vadd.f32 %v1798, %v1801
        %vm1803 = vweird.f32 %v1710
        %vm1804 = vweird.f32 %v1798
        %vm1805 = vmor %vm1803, %vm1804
        %v1806 = vsel %vm1805, %v1798, %v1802
        %v1807 = vand.u32 2147483647, %v1710
        %vm1808 = vcmp.eq.f32.partialorder %v1807, 8.507059e+37
        %v1809 = vand.u32 %v1710, 2147483648
        %v1810 = vor.u32 1.1754944e-38, %v1809
        %v1811 = vsel %vm1808, %v1810, %v1806
        %v1812 = vrcp.pop %v1713
        %v1813 = vmul.f32 %v1713, %v1812
        %v1814 = vsub.f32 1.0, %v1813
        %v1815 = vmul.f32 %v1812, %v1814
        %v1816 = vadd.f32 %v1812, %v1815
        %vm1817 = vweird.f32 %v1713
        %vm1818 = vweird.f32 %v1812
        %vm1819 = vmor %vm1817, %vm1818
        %v1820 = vsel %vm1819, %v1812, %v1816
        %v1821 = vand.u32 2147483647, %v1713
        %vm1822 = vcmp.eq.f32.partialorder %v1821, 8.507059e+37
        %v1823 = vand.u32 %v1713, 2147483648
        %v1824 = vor.u32 1.1754944e-38, %v1823
        %v1825 = vsel %vm1822, %v1824, %v1820
        %v1826 = vmul.f32 %v1675, %v1727
        %v1827 = vmul.f32 %v1677, %v1741
        %v1828 = vmul.f32 %v1679, %v1755
        %v1829 = vmul.f32 %v1681, %v1769
        %v1830 = vmul.f32 %v1683, %v1783
        %v1831 = vmul.f32 %v1685, %v1797
        %v1832 = vmul.f32 %v1687, %v1811
        %v1833 = vmul.f32 %v1689, %v1825
        %v1835 = vsel %vm694, %v1826, 0
        %1837 = vmatpush.msra.mxu0 0.0
        %1838 = vmatpush.msra.mxu0 0.0
        %1839 = vmatpush.msra.mxu0 0.0
        %1840 = vmatpush.msra.mxu0 0.0
        %1841 = vmatpush.msra.mxu0 0.0
        %1842 = vmatpush.msra.mxu0 0.0
        %1843 = vmatpush.msra.mxu0 0.0
        %1844 = vmatpush.msra.mxu0 0.0
        %1845 = vmatpush.msra.mxu0 0.0
        %1846 = vmatpush.msra.mxu0 0.0
        %1847 = vmatpush.msra.mxu0 0.0
        %1848 = vmatpush.msra.mxu0 0.0
        %1849 = vmatpush.msra.mxu0 0.0
        %1850 = vmatpush.msra.mxu0 0.0
        %1851 = vmatpush.msra.mxu0 0.0
        %1852 = vmatpush.msra.mxu0 %v1403
        %1853 = vmatmul.f32.gmra.mxu0 %v1835
        %v1854 = vpop.f32.mrf.mxu0
        %v1855 = vadd.f32 0.0, %v1854
        %1856 = vdwg.mxu0
        %v1858 = vsel %vm694, %v1827, 0
        %1860 = vmatpush.msra.mxu0 0.0
        %1861 = vmatpush.msra.mxu0 0.0
        %1862 = vmatpush.msra.mxu0 0.0
        %1863 = vmatpush.msra.mxu0 0.0
        %1864 = vmatpush.msra.mxu0 0.0
        %1865 = vmatpush.msra.mxu0 0.0
        %1866 = vmatpush.msra.mxu0 0.0
        %1867 = vmatpush.msra.mxu0 0.0
        %1868 = vmatpush.msra.mxu0 0.0
        %1869 = vmatpush.msra.mxu0 0.0
        %1870 = vmatpush.msra.mxu0 0.0
        %1871 = vmatpush.msra.mxu0 0.0
        %1872 = vmatpush.msra.mxu0 0.0
        %1873 = vmatpush.msra.mxu0 0.0
        %1874 = vmatpush.msra.mxu0 0.0
        %1875 = vmatpush.msra.mxu0 %v1406
        %1876 = vmatmul.f32.gmra.mxu0 %v1858
        %v1877 = vpop.f32.mrf.mxu0
        %v1878 = vadd.f32 0.0, %v1877
        %1879 = vdwg.mxu0
        %v1881 = vsel %vm694, %v1828, 0
        %1883 = vmatpush.msra.mxu0 0.0
        %1884 = vmatpush.msra.mxu0 0.0
        %1885 = vmatpush.msra.mxu0 0.0
        %1886 = vmatpush.msra.mxu0 0.0
        %1887 = vmatpush.msra.mxu0 0.0
        %1888 = vmatpush.msra.mxu0 0.0
        %1889 = vmatpush.msra.mxu0 0.0
        %1890 = vmatpush.msra.mxu0 0.0
        %1891 = vmatpush.msra.mxu0 0.0
        %1892 = vmatpush.msra.mxu0 0.0
        %1893 = vmatpush.msra.mxu0 0.0
        %1894 = vmatpush.msra.mxu0 0.0
        %1895 = vmatpush.msra.mxu0 0.0
        %1896 = vmatpush.msra.mxu0 0.0
        %1897 = vmatpush.msra.mxu0 0.0
        %1898 = vmatpush.msra.mxu0 %v1409
        %1899 = vmatmul.f32.gmra.mxu0 %v1881
        %v1900 = vpop.f32.mrf.mxu0
        %v1901 = vadd.f32 0.0, %v1900
        %1902 = vdwg.mxu0
        %v1904 = vsel %vm694, %v1829, 0
        %1906 = vmatpush.msra.mxu0 0.0
        %1907 = vmatpush.msra.mxu0 0.0
        %1908 = vmatpush.msra.mxu0 0.0
        %1909 = vmatpush.msra.mxu0 0.0
        %1910 = vmatpush.msra.mxu0 0.0
        %1911 = vmatpush.msra.mxu0 0.0
        %1912 = vmatpush.msra.mxu0 0.0
        %1913 = vmatpush.msra.mxu0 0.0
        %1914 = vmatpush.msra.mxu0 0.0
        %1915 = vmatpush.msra.mxu0 0.0
        %1916 = vmatpush.msra.mxu0 0.0
        %1917 = vmatpush.msra.mxu0 0.0
        %1918 = vmatpush.msra.mxu0 0.0
        %1919 = vmatpush.msra.mxu0 0.0
        %1920 = vmatpush.msra.mxu0 0.0
        %1921 = vmatpush.msra.mxu0 %v1412
        %1922 = vmatmul.f32.gmra.mxu0 %v1904
        %v1923 = vpop.f32.mrf.mxu0
        %v1924 = vadd.f32 0.0, %v1923
        %1925 = vdwg.mxu0
        %v1927 = vsel %vm694, %v1830, 0
        %1929 = vmatpush.msra.mxu0 0.0
        %1930 = vmatpush.msra.mxu0 0.0
        %1931 = vmatpush.msra.mxu0 0.0
        %1932 = vmatpush.msra.mxu0 0.0
        %1933 = vmatpush.msra.mxu0 0.0
        %1934 = vmatpush.msra.mxu0 0.0
        %1935 = vmatpush.msra.mxu0 0.0
        %1936 = vmatpush.msra.mxu0 0.0
        %1937 = vmatpush.msra.mxu0 0.0
        %1938 = vmatpush.msra.mxu0 0.0
        %1939 = vmatpush.msra.mxu0 0.0
        %1940 = vmatpush.msra.mxu0 0.0
        %1941 = vmatpush.msra.mxu0 0.0
        %1942 = vmatpush.msra.mxu0 0.0
        %1943 = vmatpush.msra.mxu0 0.0
        %1944 = vmatpush.msra.mxu0 %v1415
        %1945 = vmatmul.f32.gmra.mxu0 %v1927
        %v1946 = vpop.f32.mrf.mxu0
        %v1947 = vadd.f32 0.0, %v1946
        %1948 = vdwg.mxu0
        %v1950 = vsel %vm694, %v1831, 0
        %1952 = vmatpush.msra.mxu0 0.0
        %1953 = vmatpush.msra.mxu0 0.0
        %1954 = vmatpush.msra.mxu0 0.0
        %1955 = vmatpush.msra.mxu0 0.0
        %1956 = vmatpush.msra.mxu0 0.0
        %1957 = vmatpush.msra.mxu0 0.0
        %1958 = vmatpush.msra.mxu0 0.0
        %1959 = vmatpush.msra.mxu0 0.0
        %1960 = vmatpush.msra.mxu0 0.0
        %1961 = vmatpush.msra.mxu0 0.0
        %1962 = vmatpush.msra.mxu0 0.0
        %1963 = vmatpush.msra.mxu0 0.0
        %1964 = vmatpush.msra.mxu0 0.0
        %1965 = vmatpush.msra.mxu0 0.0
        %1966 = vmatpush.msra.mxu0 0.0
        %1967 = vmatpush.msra.mxu0 %v1418
        %1968 = vmatmul.f32.gmra.mxu0 %v1950
        %v1969 = vpop.f32.mrf.mxu0
        %v1970 = vadd.f32 0.0, %v1969
        %1971 = vdwg.mxu0
        %v1973 = vsel %vm694, %v1832, 0
        %1975 = vmatpush.msra.mxu0 0.0
        %1976 = vmatpush.msra.mxu0 0.0
        %1977 = vmatpush.msra.mxu0 0.0
        %1978 = vmatpush.msra.mxu0 0.0
        %1979 = vmatpush.msra.mxu0 0.0
        %1980 = vmatpush.msra.mxu0 0.0
        %1981 = vmatpush.msra.mxu0 0.0
        %1982 = vmatpush.msra.mxu0 0.0
        %1983 = vmatpush.msra.mxu0 0.0
        %1984 = vmatpush.msra.mxu0 0.0
        %1985 = vmatpush.msra.mxu0 0.0
        %1986 = vmatpush.msra.mxu0 0.0
        %1987 = vmatpush.msra.mxu0 0.0
        %1988 = vmatpush.msra.mxu0 0.0
        %1989 = vmatpush.msra.mxu0 0.0
        %1990 = vmatpush.msra.mxu0 %v1421
        %1991 = vmatmul.f32.gmra.mxu0 %v1973
        %v1992 = vpop.f32.mrf.mxu0
        %v1993 = vadd.f32 0.0, %v1992
        %1994 = vdwg.mxu0
        %v1996 = vsel %vm694, %v1833, 0
        %1998 = vmatpush.msra.mxu0 0.0
        %1999 = vmatpush.msra.mxu0 0.0
        %2000 = vmatpush.msra.mxu0 0.0
        %2001 = vmatpush.msra.mxu0 0.0
        %2002 = vmatpush.msra.mxu0 0.0
        %2003 = vmatpush.msra.mxu0 0.0
        %2004 = vmatpush.msra.mxu0 0.0
        %2005 = vmatpush.msra.mxu0 0.0
        %2006 = vmatpush.msra.mxu0 0.0
        %2007 = vmatpush.msra.mxu0 0.0
        %2008 = vmatpush.msra.mxu0 0.0
        %2009 = vmatpush.msra.mxu0 0.0
        %2010 = vmatpush.msra.mxu0 0.0
        %2011 = vmatpush.msra.mxu0 0.0
        %2012 = vmatpush.msra.mxu0 0.0
        %2013 = vmatpush.msra.mxu0 %v1424
        %2014 = vmatmul.f32.gmra.mxu0 %v1996
        %v2015 = vpop.f32.mrf.mxu0
        %v2016 = vadd.f32 0.0, %v2015
        %2017 = vdwg.mxu0
        %s2018 = scalar_lea.vmem %s6, 8
        %v2019 = vld [vmem:[%s2018] sm:$0xff]
        %v2021 = vsel %vm694, %v1855, 0
        %v2024 = vsel %vm694, %v1878, 0
        %v2027 = vsel %vm694, %v1901, 0
        %v2030 = vsel %vm694, %v1924, 0
        %v2033 = vsel %vm694, %v1947, 0
        %v2036 = vsel %vm694, %v1970, 0
        %v2039 = vsel %vm694, %v1993, 0
        %v2042 = vsel %vm694, %v2016, 0
        %2044 = vmatpush.msra.mxu0 0.0
        %2045 = vmatpush.msra.mxu0 0.0
        %2046 = vmatpush.msra.mxu0 0.0
        %2047 = vmatpush.msra.mxu0 0.0
        %2048 = vmatpush.msra.mxu0 0.0
        %2049 = vmatpush.msra.mxu0 0.0
        %2050 = vmatpush.msra.mxu0 0.0
        %2051 = vmatpush.msra.mxu0 0.0
        %2052 = vmatpush.msra.mxu0 0.0
        %2053 = vmatpush.msra.mxu0 0.0
        %2054 = vmatpush.msra.mxu0 0.0
        %2055 = vmatpush.msra.mxu0 0.0
        %2056 = vmatpush.msra.mxu0 0.0
        %2057 = vmatpush.msra.mxu0 0.0
        %2058 = vmatpush.msra.mxu0 0.0
        %2059 = vmatpush.msra.mxu0 %v2019
        %2060 = vmatmul.f32.gmra.mxu0 %v2021
        %v2061 = vpop.f32.mrf.mxu0
        %v2062 = vadd.f32 0.0, %v2061
        %2063 = vmatmul.f32.gmra.mxu0 %v2024
        %v2064 = vpop.f32.mrf.mxu0
        %v2065 = vadd.f32 0.0, %v2064
        %2066 = vmatmul.f32.gmra.mxu0 %v2027
        %v2067 = vpop.f32.mrf.mxu0
        %v2068 = vadd.f32 0.0, %v2067
        %2069 = vmatmul.f32.gmra.mxu0 %v2030
        %v2070 = vpop.f32.mrf.mxu0
        %v2071 = vadd.f32 0.0, %v2070
        %2072 = vmatmul.f32.gmra.mxu0 %v2033
        %v2073 = vpop.f32.mrf.mxu0
        %v2074 = vadd.f32 0.0, %v2073
        %2075 = vmatmul.f32.gmra.mxu0 %v2036
        %v2076 = vpop.f32.mrf.mxu0
        %v2077 = vadd.f32 0.0, %v2076
        %2078 = vmatmul.f32.gmra.mxu0 %v2039
        %v2079 = vpop.f32.mrf.mxu0
        %v2080 = vadd.f32 0.0, %v2079
        %2081 = vmatmul.f32.gmra.mxu0 %v2042
        %v2082 = vpop.f32.mrf.mxu0
        %v2083 = vadd.f32 0.0, %v2082
        %2084 = vdwg.mxu0
        %v2086 = vsel %vm694, %v1124, 0
        %v2089 = vsel %vm694, %v1147, 0
        %v2092 = vsel %vm694, %v1170, 0
        %v2095 = vsel %vm694, %v1193, 0
        %v2098 = vsel %vm694, %v1216, 0
        %v2101 = vsel %vm694, %v1239, 0
        %v2104 = vsel %vm694, %v1262, 0
        %v2107 = vsel %vm694, %v1285, 0
        %2109 = vmatpush.msra.mxu0 0.0
        %2110 = vmatpush.msra.mxu0 0.0
        %2111 = vmatpush.msra.mxu0 0.0
        %2112 = vmatpush.msra.mxu0 0.0
        %2113 = vmatpush.msra.mxu0 0.0
        %2114 = vmatpush.msra.mxu0 0.0
        %2115 = vmatpush.msra.mxu0 0.0
        %2116 = vmatpush.msra.mxu0 0.0
        %2117 = vmatpush.msra.mxu0 0.0
        %2118 = vmatpush.msra.mxu0 0.0
        %2119 = vmatpush.msra.mxu0 0.0
        %2120 = vmatpush.msra.mxu0 0.0
        %2121 = vmatpush.msra.mxu0 0.0
        %2122 = vmatpush.msra.mxu0 0.0
        %2123 = vmatpush.msra.mxu0 0.0
        %2124 = vmatpush.msra.mxu0 %v1287
        %2125 = vmatmul.f32.gmra.mxu0 %v2086
        %v2126 = vpop.f32.mrf.mxu0
        %v2127 = vadd.f32 %v2062, %v2126
        %2128 = vmatmul.f32.gmra.mxu0 %v2089
        %v2129 = vpop.f32.mrf.mxu0
        %v2130 = vadd.f32 %v2065, %v2129
        %2131 = vmatmul.f32.gmra.mxu0 %v2092
        %v2132 = vpop.f32.mrf.mxu0
        %v2133 = vadd.f32 %v2068, %v2132
        %2134 = vmatmul.f32.gmra.mxu0 %v2095
        %v2135 = vpop.f32.mrf.mxu0
        %v2136 = vadd.f32 %v2071, %v2135
        %2137 = vmatmul.f32.gmra.mxu0 %v2098
        %v2138 = vpop.f32.mrf.mxu0
        %v2139 = vadd.f32 %v2074, %v2138
        %2140 = vmatmul.f32.gmra.mxu0 %v2101
        %v2141 = vpop.f32.mrf.mxu0
        %v2142 = vadd.f32 %v2077, %v2141
        %2143 = vmatmul.f32.gmra.mxu0 %v2104
        %v2144 = vpop.f32.mrf.mxu0
        %v2145 = vadd.f32 %v2080, %v2144
        %2146 = vmatmul.f32.gmra.mxu0 %v2107
        %v2147 = vpop.f32.mrf.mxu0
        %v2148 = vadd.f32 %v2083, %v2147
        %2149 = vdwg.mxu0
        %s2150 = scalar_lea.vmem %s3, 64
        %v2151 = vld [vmem:[%s2150] sm:$0xff]
        %v2152 = vld [vmem:[%s2150 + $0x8] sm:$0xff]
        %v2153 = vld [vmem:[%s2150 + $0x10] sm:$0xff]
        %v2154 = vld [vmem:[%s2150 + $0x18] sm:$0xff]
        %2155 = vmatpush.msra.mxu0 0.0
        %2156 = vmatpush.msra.mxu0 0.0
        %2157 = vmatpush.msra.mxu0 0.0
        %2158 = vmatpush.msra.mxu0 0.0
        %2159 = vmatpush.msra.mxu0 0.0
        %2160 = vmatpush.msra.mxu0 0.0
        %2161 = vmatpush.msra.mxu0 0.0
        %2162 = vmatpush.msra.mxu0 0.0
        %2163 = vmatpush.msra.mxu0 0.0
        %2164 = vmatpush.msra.mxu0 0.0
        %2165 = vmatpush.msra.mxu0 0.0
        %2166 = vmatpush.msra.mxu0 0.0
        %2167 = vmatpush.msra.mxu0 %v2154
        %2168 = vmatpush.msra.mxu0 %v2153
        %2169 = vmatpush.msra.mxu0 %v2152
        %2170 = vmatpush.msra.mxu0 %v2151
        %2171 = vmatmul.f32.gmra.mxu0 %v540
        %v2172 = vpop.f32.mrf.mxu0
        %v2173 = vadd.f32 0.0, %v2172
        %2174 = vmatmul.f32.gmra.mxu0 %v543
        %v2175 = vpop.f32.mrf.mxu0
        %v2176 = vadd.f32 0.0, %v2175
        %2177 = vmatmul.f32.gmra.mxu0 %v546
        %v2178 = vpop.f32.mrf.mxu0
        %v2179 = vadd.f32 0.0, %v2178
        %2180 = vmatmul.f32.gmra.mxu0 %v549
        %v2181 = vpop.f32.mrf.mxu0
        %v2182 = vadd.f32 0.0, %v2181
        %2183 = vmatmul.f32.gmra.mxu0 %v552
        %v2184 = vpop.f32.mrf.mxu0
        %v2185 = vadd.f32 0.0, %v2184
        %2186 = vmatmul.f32.gmra.mxu0 %v555
        %v2187 = vpop.f32.mrf.mxu0
        %v2188 = vadd.f32 0.0, %v2187
        %2189 = vmatmul.f32.gmra.mxu0 %v558
        %v2190 = vpop.f32.mrf.mxu0
        %v2191 = vadd.f32 0.0, %v2190
        %2192 = vmatmul.f32.gmra.mxu0 %v561
        %v2193 = vpop.f32.mrf.mxu0
        %v2194 = vadd.f32 0.0, %v2193
        %2195 = vdwg.mxu0
        %s2196 = scalar_lea.vmem %s4, 64
        %v2197 = vld [vmem:[%s2196] sm:$0xff]
        %v2198 = vld [vmem:[%s2196 + $0x8] sm:$0xff]
        %v2199 = vld [vmem:[%s2196 + $0x10] sm:$0xff]
        %v2200 = vld [vmem:[%s2196 + $0x18] sm:$0xff]
        %2201 = vmatpush.msra.mxu0 0.0
        %2202 = vmatpush.msra.mxu0 0.0
        %2203 = vmatpush.msra.mxu0 0.0
        %2204 = vmatpush.msra.mxu0 0.0
        %2205 = vmatpush.msra.mxu0 0.0
        %2206 = vmatpush.msra.mxu0 0.0
        %2207 = vmatpush.msra.mxu0 0.0
        %2208 = vmatpush.msra.mxu0 0.0
        %2209 = vmatpush.msra.mxu0 0.0
        %2210 = vmatpush.msra.mxu0 0.0
        %2211 = vmatpush.msra.mxu0 0.0
        %2212 = vmatpush.msra.mxu0 0.0
        %2213 = vmatpush.msra.mxu0 %v2200
        %2214 = vmatpush.msra.mxu0 %v2199
        %2215 = vmatpush.msra.mxu0 %v2198
        %2216 = vmatpush.msra.mxu0 %v2197
        %2217 = vmatmul.f32.gmra.mxu0 %v540
        %v2218 = vpop.f32.mrf.mxu0
        %v2219 = vadd.f32 0.0, %v2218
        %2220 = vmatmul.f32.gmra.mxu0 %v543
        %v2221 = vpop.f32.mrf.mxu0
        %v2222 = vadd.f32 0.0, %v2221
        %2223 = vmatmul.f32.gmra.mxu0 %v546
        %v2224 = vpop.f32.mrf.mxu0
        %v2225 = vadd.f32 0.0, %v2224
        %2226 = vmatmul.f32.gmra.mxu0 %v549
        %v2227 = vpop.f32.mrf.mxu0
        %v2228 = vadd.f32 0.0, %v2227
        %2229 = vmatmul.f32.gmra.mxu0 %v552
        %v2230 = vpop.f32.mrf.mxu0
        %v2231 = vadd.f32 0.0, %v2230
        %2232 = vmatmul.f32.gmra.mxu0 %v555
        %v2233 = vpop.f32.mrf.mxu0
        %v2234 = vadd.f32 0.0, %v2233
        %2235 = vmatmul.f32.gmra.mxu0 %v558
        %v2236 = vpop.f32.mrf.mxu0
        %v2237 = vadd.f32 0.0, %v2236
        %2238 = vmatmul.f32.gmra.mxu0 %v561
        %v2239 = vpop.f32.mrf.mxu0
        %v2240 = vadd.f32 0.0, %v2239
        %2241 = vdwg.mxu0
        %s2242 = scalar_lea.vmem %s5, 64
        %v2243 = vld [vmem:[%s2242] sm:$0xff]
        %v2244 = vld [vmem:[%s2242 + $0x8] sm:$0xff]
        %v2245 = vld [vmem:[%s2242 + $0x10] sm:$0xff]
        %v2246 = vld [vmem:[%s2242 + $0x18] sm:$0xff]
        %2247 = vmatpush.msra.mxu0 0.0
        %2248 = vmatpush.msra.mxu0 0.0
        %2249 = vmatpush.msra.mxu0 0.0
        %2250 = vmatpush.msra.mxu0 0.0
        %2251 = vmatpush.msra.mxu0 0.0
        %2252 = vmatpush.msra.mxu0 0.0
        %2253 = vmatpush.msra.mxu0 0.0
        %2254 = vmatpush.msra.mxu0 0.0
        %2255 = vmatpush.msra.mxu0 0.0
        %2256 = vmatpush.msra.mxu0 0.0
        %2257 = vmatpush.msra.mxu0 0.0
        %2258 = vmatpush.msra.mxu0 0.0
        %2259 = vmatpush.msra.mxu0 %v2246
        %2260 = vmatpush.msra.mxu0 %v2245
        %2261 = vmatpush.msra.mxu0 %v2244
        %2262 = vmatpush.msra.mxu0 %v2243
        %2263 = vmatmul.f32.gmra.mxu0 %v540
        %v2264 = vpop.f32.mrf.mxu0
        %v2265 = vadd.f32 0.0, %v2264
        %2266 = vmatmul.f32.gmra.mxu0 %v543
        %v2267 = vpop.f32.mrf.mxu0
        %v2268 = vadd.f32 0.0, %v2267
        %2269 = vmatmul.f32.gmra.mxu0 %v546
        %v2270 = vpop.f32.mrf.mxu0
        %v2271 = vadd.f32 0.0, %v2270
        %2272 = vmatmul.f32.gmra.mxu0 %v549
        %v2273 = vpop.f32.mrf.mxu0
        %v2274 = vadd.f32 0.0, %v2273
        %2275 = vmatmul.f32.gmra.mxu0 %v552
        %v2276 = vpop.f32.mrf.mxu0
        %v2277 = vadd.f32 0.0, %v2276
        %2278 = vmatmul.f32.gmra.mxu0 %v555
        %v2279 = vpop.f32.mrf.mxu0
        %v2280 = vadd.f32 0.0, %v2279
        %2281 = vmatmul.f32.gmra.mxu0 %v558
        %v2282 = vpop.f32.mrf.mxu0
        %v2283 = vadd.f32 0.0, %v2282
        %2284 = vmatmul.f32.gmra.mxu0 %v561
        %v2285 = vpop.f32.mrf.mxu0
        %v2286 = vadd.f32 0.0, %v2285
        %2287 = vdwg.mxu0
        %v2289 = vsel %vm694, %v2173, 0
        %v2292 = vsel %vm694, %v2219, 0
        %2294 = vmatpush.xpose.msra.mxu0 0.0
        %2295 = vmatpush.xpose.msra.mxu0 0.0
        %2296 = vmatpush.xpose.msra.mxu0 0.0
        %2297 = vmatpush.xpose.msra.mxu0 0.0
        %2298 = vmatpush.xpose.msra.mxu0 0.0
        %2299 = vmatpush.xpose.msra.mxu0 0.0
        %2300 = vmatpush.xpose.msra.mxu0 0.0
        %2301 = vmatpush.xpose.msra.mxu0 0.0
        %2302 = vmatpush.xpose.msra.mxu0 0.0
        %2303 = vmatpush.xpose.msra.mxu0 0.0
        %2304 = vmatpush.xpose.msra.mxu0 0.0
        %2305 = vmatpush.xpose.msra.mxu0 0.0
        %2306 = vmatpush.xpose.msra.mxu0 0.0
        %2307 = vmatpush.xpose.msra.mxu0 0.0
        %2308 = vmatpush.xpose.msra.mxu0 0.0
        %2309 = vmatpush.xpose.msra.mxu0 %v2292
        %2310 = vmatmul.f32.gmra.mxu0 %v2289
        %v2311 = vpop.f32.mrf.mxu0
        %v2312 = vadd.f32 0.0, %v2311
        %2313 = vdwg.mxu0
        %v2315 = vsel %vm694, %v2176, 0
        %v2318 = vsel %vm694, %v2222, 0
        %2320 = vmatpush.xpose.msra.mxu0 0.0
        %2321 = vmatpush.xpose.msra.mxu0 0.0
        %2322 = vmatpush.xpose.msra.mxu0 0.0
        %2323 = vmatpush.xpose.msra.mxu0 0.0
        %2324 = vmatpush.xpose.msra.mxu0 0.0
        %2325 = vmatpush.xpose.msra.mxu0 0.0
        %2326 = vmatpush.xpose.msra.mxu0 0.0
        %2327 = vmatpush.xpose.msra.mxu0 0.0
        %2328 = vmatpush.xpose.msra.mxu0 0.0
        %2329 = vmatpush.xpose.msra.mxu0 0.0
        %2330 = vmatpush.xpose.msra.mxu0 0.0
        %2331 = vmatpush.xpose.msra.mxu0 0.0
        %2332 = vmatpush.xpose.msra.mxu0 0.0
        %2333 = vmatpush.xpose.msra.mxu0 0.0
        %2334 = vmatpush.xpose.msra.mxu0 0.0
        %2335 = vmatpush.xpose.msra.mxu0 %v2318
        %2336 = vmatmul.f32.gmra.mxu0 %v2315
        %v2337 = vpop.f32.mrf.mxu0
        %v2338 = vadd.f32 0.0, %v2337
        %2339 = vdwg.mxu0
        %v2341 = vsel %vm694, %v2179, 0
        %v2344 = vsel %vm694, %v2225, 0
        %2346 = vmatpush.xpose.msra.mxu0 0.0
        %2347 = vmatpush.xpose.msra.mxu0 0.0
        %2348 = vmatpush.xpose.msra.mxu0 0.0
        %2349 = vmatpush.xpose.msra.mxu0 0.0
        %2350 = vmatpush.xpose.msra.mxu0 0.0
        %2351 = vmatpush.xpose.msra.mxu0 0.0
        %2352 = vmatpush.xpose.msra.mxu0 0.0
        %2353 = vmatpush.xpose.msra.mxu0 0.0
        %2354 = vmatpush.xpose.msra.mxu0 0.0
        %2355 = vmatpush.xpose.msra.mxu0 0.0
        %2356 = vmatpush.xpose.msra.mxu0 0.0
        %2357 = vmatpush.xpose.msra.mxu0 0.0
        %2358 = vmatpush.xpose.msra.mxu0 0.0
        %2359 = vmatpush.xpose.msra.mxu0 0.0
        %2360 = vmatpush.xpose.msra.mxu0 0.0
        %2361 = vmatpush.xpose.msra.mxu0 %v2344
        %2362 = vmatmul.f32.gmra.mxu0 %v2341
        %v2363 = vpop.f32.mrf.mxu0
        %v2364 = vadd.f32 0.0, %v2363
        %2365 = vdwg.mxu0
        %v2367 = vsel %vm694, %v2182, 0
        %v2370 = vsel %vm694, %v2228, 0
        %2372 = vmatpush.xpose.msra.mxu0 0.0
        %2373 = vmatpush.xpose.msra.mxu0 0.0
        %2374 = vmatpush.xpose.msra.mxu0 0.0
        %2375 = vmatpush.xpose.msra.mxu0 0.0
        %2376 = vmatpush.xpose.msra.mxu0 0.0
        %2377 = vmatpush.xpose.msra.mxu0 0.0
        %2378 = vmatpush.xpose.msra.mxu0 0.0
        %2379 = vmatpush.xpose.msra.mxu0 0.0
        %2380 = vmatpush.xpose.msra.mxu0 0.0
        %2381 = vmatpush.xpose.msra.mxu0 0.0
        %2382 = vmatpush.xpose.msra.mxu0 0.0
        %2383 = vmatpush.xpose.msra.mxu0 0.0
        %2384 = vmatpush.xpose.msra.mxu0 0.0
        %2385 = vmatpush.xpose.msra.mxu0 0.0
        %2386 = vmatpush.xpose.msra.mxu0 0.0
        %2387 = vmatpush.xpose.msra.mxu0 %v2370
        %2388 = vmatmul.f32.gmra.mxu0 %v2367
        %v2389 = vpop.f32.mrf.mxu0
        %v2390 = vadd.f32 0.0, %v2389
        %2391 = vdwg.mxu0
        %v2393 = vsel %vm694, %v2185, 0
        %v2396 = vsel %vm694, %v2231, 0
        %2398 = vmatpush.xpose.msra.mxu0 0.0
        %2399 = vmatpush.xpose.msra.mxu0 0.0
        %2400 = vmatpush.xpose.msra.mxu0 0.0
        %2401 = vmatpush.xpose.msra.mxu0 0.0
        %2402 = vmatpush.xpose.msra.mxu0 0.0
        %2403 = vmatpush.xpose.msra.mxu0 0.0
        %2404 = vmatpush.xpose.msra.mxu0 0.0
        %2405 = vmatpush.xpose.msra.mxu0 0.0
        %2406 = vmatpush.xpose.msra.mxu0 0.0
        %2407 = vmatpush.xpose.msra.mxu0 0.0
        %2408 = vmatpush.xpose.msra.mxu0 0.0
        %2409 = vmatpush.xpose.msra.mxu0 0.0
        %2410 = vmatpush.xpose.msra.mxu0 0.0
        %2411 = vmatpush.xpose.msra.mxu0 0.0
        %2412 = vmatpush.xpose.msra.mxu0 0.0
        %2413 = vmatpush.xpose.msra.mxu0 %v2396
        %2414 = vmatmul.f32.gmra.mxu0 %v2393
        %v2415 = vpop.f32.mrf.mxu0
        %v2416 = vadd.f32 0.0, %v2415
        %2417 = vdwg.mxu0
        %v2419 = vsel %vm694, %v2188, 0
        %v2422 = vsel %vm694, %v2234, 0
        %2424 = vmatpush.xpose.msra.mxu0 0.0
        %2425 = vmatpush.xpose.msra.mxu0 0.0
        %2426 = vmatpush.xpose.msra.mxu0 0.0
        %2427 = vmatpush.xpose.msra.mxu0 0.0
        %2428 = vmatpush.xpose.msra.mxu0 0.0
        %2429 = vmatpush.xpose.msra.mxu0 0.0
        %2430 = vmatpush.xpose.msra.mxu0 0.0
        %2431 = vmatpush.xpose.msra.mxu0 0.0
        %2432 = vmatpush.xpose.msra.mxu0 0.0
        %2433 = vmatpush.xpose.msra.mxu0 0.0
        %2434 = vmatpush.xpose.msra.mxu0 0.0
        %2435 = vmatpush.xpose.msra.mxu0 0.0
        %2436 = vmatpush.xpose.msra.mxu0 0.0
        %2437 = vmatpush.xpose.msra.mxu0 0.0
        %2438 = vmatpush.xpose.msra.mxu0 0.0
        %2439 = vmatpush.xpose.msra.mxu0 %v2422
        %2440 = vmatmul.f32.gmra.mxu0 %v2419
        %v2441 = vpop.f32.mrf.mxu0
        %v2442 = vadd.f32 0.0, %v2441
        %2443 = vdwg.mxu0
        %v2445 = vsel %vm694, %v2191, 0
        %v2448 = vsel %vm694, %v2237, 0
        %2450 = vmatpush.xpose.msra.mxu0 0.0
        %2451 = vmatpush.xpose.msra.mxu0 0.0
        %2452 = vmatpush.xpose.msra.mxu0 0.0
        %2453 = vmatpush.xpose.msra.mxu0 0.0
        %2454 = vmatpush.xpose.msra.mxu0 0.0
        %2455 = vmatpush.xpose.msra.mxu0 0.0
        %2456 = vmatpush.xpose.msra.mxu0 0.0
        %2457 = vmatpush.xpose.msra.mxu0 0.0
        %2458 = vmatpush.xpose.msra.mxu0 0.0
        %2459 = vmatpush.xpose.msra.mxu0 0.0
        %2460 = vmatpush.xpose.msra.mxu0 0.0
        %2461 = vmatpush.xpose.msra.mxu0 0.0
        %2462 = vmatpush.xpose.msra.mxu0 0.0
        %2463 = vmatpush.xpose.msra.mxu0 0.0
        %2464 = vmatpush.xpose.msra.mxu0 0.0
        %2465 = vmatpush.xpose.msra.mxu0 %v2448
        %2466 = vmatmul.f32.gmra.mxu0 %v2445
        %v2467 = vpop.f32.mrf.mxu0
        %v2468 = vadd.f32 0.0, %v2467
        %2469 = vdwg.mxu0
        %v2471 = vsel %vm694, %v2194, 0
        %v2474 = vsel %vm694, %v2240, 0
        %2476 = vmatpush.xpose.msra.mxu0 0.0
        %2477 = vmatpush.xpose.msra.mxu0 0.0
        %2478 = vmatpush.xpose.msra.mxu0 0.0
        %2479 = vmatpush.xpose.msra.mxu0 0.0
        %2480 = vmatpush.xpose.msra.mxu0 0.0
        %2481 = vmatpush.xpose.msra.mxu0 0.0
        %2482 = vmatpush.xpose.msra.mxu0 0.0
        %2483 = vmatpush.xpose.msra.mxu0 0.0
        %2484 = vmatpush.xpose.msra.mxu0 0.0
        %2485 = vmatpush.xpose.msra.mxu0 0.0
        %2486 = vmatpush.xpose.msra.mxu0 0.0
        %2487 = vmatpush.xpose.msra.mxu0 0.0
        %2488 = vmatpush.xpose.msra.mxu0 0.0
        %2489 = vmatpush.xpose.msra.mxu0 0.0
        %2490 = vmatpush.xpose.msra.mxu0 0.0
        %2491 = vmatpush.xpose.msra.mxu0 %v2474
        %2492 = vmatmul.f32.gmra.mxu0 %v2471
        %v2493 = vpop.f32.mrf.mxu0
        %v2494 = vadd.f32 0.0, %v2493
        %2495 = vdwg.mxu0
        %v2496 = vmul.f32 %v2312, 0.35355338
        %v2497 = vmul.f32 %v2338, 0.35355338
        %v2498 = vmul.f32 %v2364, 0.35355338
        %v2499 = vmul.f32 %v2390, 0.35355338
        %v2500 = vmul.f32 %v2416, 0.35355338
        %v2501 = vmul.f32 %v2442, 0.35355338
        %v2502 = vmul.f32 %v2468, 0.35355338
        %v2503 = vmul.f32 %v2494, 0.35355338
        %v2504 = vsel %vm694, %v2496, -inf
        %2505 = vmax.xlane.f32.xlu0 %v2504
        %v2506 = vpop.xlane.xlu0 %2505
        %v2507 = vsel %vm694, %v2497, -inf
        %2508 = vmax.xlane.f32.xlu0 %v2507
        %v2509 = vpop.xlane.xlu0 %2508
        %v2510 = vsel %vm694, %v2498, -inf
        %2511 = vmax.xlane.f32.xlu0 %v2510
        %v2512 = vpop.xlane.xlu0 %2511
        %v2513 = vsel %vm694, %v2499, -inf
        %2514 = vmax.xlane.f32.xlu0 %v2513
        %v2515 = vpop.xlane.xlu0 %2514
        %v2516 = vsel %vm694, %v2500, -inf
        %2517 = vmax.xlane.f32.xlu0 %v2516
        %v2518 = vpop.xlane.xlu0 %2517
        %v2519 = vsel %vm694, %v2501, -inf
        %2520 = vmax.xlane.f32.xlu0 %v2519
        %v2521 = vpop.xlane.xlu0 %2520
        %v2522 = vsel %vm694, %v2502, -inf
        %2523 = vmax.xlane.f32.xlu0 %v2522
        %v2524 = vpop.xlane.xlu0 %2523
        %v2525 = vsel %vm694, %v2503, -inf
        %2526 = vmax.xlane.f32.xlu0 %v2525
        %v2527 = vpop.xlane.xlu0 %2526
        %v2528 = vsub.f32 %v2496, %v2506
        %v2529 = vsub.f32 %v2497, %v2509
        %v2530 = vsub.f32 %v2498, %v2512
        %v2531 = vsub.f32 %v2499, %v2515
        %v2532 = vsub.f32 %v2500, %v2518
        %v2533 = vsub.f32 %v2501, %v2521
        %v2534 = vsub.f32 %v2502, %v2524
        %v2535 = vsub.f32 %v2503, %v2527
        %v2536 = vmul.f32 %v2528, 1.442695
        %v2537 = vpow.pop %v2536
        %v2538 = vmul.f32 %v2529, 1.442695
        %v2539 = vpow.pop %v2538
        %v2540 = vmul.f32 %v2530, 1.442695
        %v2541 = vpow.pop %v2540
        %v2542 = vmul.f32 %v2531, 1.442695
        %v2543 = vpow.pop %v2542
        %v2544 = vmul.f32 %v2532, 1.442695
        %v2545 = vpow.pop %v2544
        %v2546 = vmul.f32 %v2533, 1.442695
        %v2547 = vpow.pop %v2546
        %v2548 = vmul.f32 %v2534, 1.442695
        %v2549 = vpow.pop %v2548
        %v2550 = vmul.f32 %v2535, 1.442695
        %v2551 = vpow.pop %v2550
        %v2552 = vsel %vm694, %v2537, 0.0
        %2553 = vadd.xlane.f32.xlu0 %v2552
        %v2554 = vpop.xlane.xlu0 %2553
        %v2555 = vsel %vm694, %v2539, 0.0
        %2556 = vadd.xlane.f32.xlu0 %v2555
        %v2557 = vpop.xlane.xlu0 %2556
        %v2558 = vsel %vm694, %v2541, 0.0
        %2559 = vadd.xlane.f32.xlu0 %v2558
        %v2560 = vpop.xlane.xlu0 %2559
        %v2561 = vsel %vm694, %v2543, 0.0
        %2562 = vadd.xlane.f32.xlu0 %v2561
        %v2563 = vpop.xlane.xlu0 %2562
        %v2564 = vsel %vm694, %v2545, 0.0
        %2565 = vadd.xlane.f32.xlu0 %v2564
        %v2566 = vpop.xlane.xlu0 %2565
        %v2567 = vsel %vm694, %v2547, 0.0
        %2568 = vadd.xlane.f32.xlu0 %v2567
        %v2569 = vpop.xlane.xlu0 %2568
        %v2570 = vsel %vm694, %v2549, 0.0
        %2571 = vadd.xlane.f32.xlu0 %v2570
        %v2572 = vpop.xlane.xlu0 %2571
        %v2573 = vsel %vm694, %v2551, 0.0
        %2574 = vadd.xlane.f32.xlu0 %v2573
        %v2575 = vpop.xlane.xlu0 %2574
        %v2576 = vrcp.pop %v2554
        %v2577 = vmul.f32 %v2554, %v2576
        %v2578 = vsub.f32 1.0, %v2577
        %v2579 = vmul.f32 %v2576, %v2578
        %v2580 = vadd.f32 %v2576, %v2579
        %vm2581 = vweird.f32 %v2554
        %vm2582 = vweird.f32 %v2576
        %vm2583 = vmor %vm2581, %vm2582
        %v2584 = vsel %vm2583, %v2576, %v2580
        %v2585 = vand.u32 2147483647, %v2554
        %vm2586 = vcmp.eq.f32.partialorder %v2585, 8.507059e+37
        %v2587 = vand.u32 %v2554, 2147483648
        %v2588 = vor.u32 1.1754944e-38, %v2587
        %v2589 = vsel %vm2586, %v2588, %v2584
        %v2590 = vrcp.pop %v2557
        %v2591 = vmul.f32 %v2557, %v2590
        %v2592 = vsub.f32 1.0, %v2591
        %v2593 = vmul.f32 %v2590, %v2592
        %v2594 = vadd.f32 %v2590, %v2593
        %vm2595 = vweird.f32 %v2557
        %vm2596 = vweird.f32 %v2590
        %vm2597 = vmor %vm2595, %vm2596
        %v2598 = vsel %vm2597, %v2590, %v2594
        %v2599 = vand.u32 2147483647, %v2557
        %vm2600 = vcmp.eq.f32.partialorder %v2599, 8.507059e+37
        %v2601 = vand.u32 %v2557, 2147483648
        %v2602 = vor.u32 1.1754944e-38, %v2601
        %v2603 = vsel %vm2600, %v2602, %v2598
        %v2604 = vrcp.pop %v2560
        %v2605 = vmul.f32 %v2560, %v2604
        %v2606 = vsub.f32 1.0, %v2605
        %v2607 = vmul.f32 %v2604, %v2606
        %v2608 = vadd.f32 %v2604, %v2607
        %vm2609 = vweird.f32 %v2560
        %vm2610 = vweird.f32 %v2604
        %vm2611 = vmor %vm2609, %vm2610
        %v2612 = vsel %vm2611, %v2604, %v2608
        %v2613 = vand.u32 2147483647, %v2560
        %vm2614 = vcmp.eq.f32.partialorder %v2613, 8.507059e+37
        %v2615 = vand.u32 %v2560, 2147483648
        %v2616 = vor.u32 1.1754944e-38, %v2615
        %v2617 = vsel %vm2614, %v2616, %v2612
        %v2618 = vrcp.pop %v2563
        %v2619 = vmul.f32 %v2563, %v2618
        %v2620 = vsub.f32 1.0, %v2619
        %v2621 = vmul.f32 %v2618, %v2620
        %v2622 = vadd.f32 %v2618, %v2621
        %vm2623 = vweird.f32 %v2563
        %vm2624 = vweird.f32 %v2618
        %vm2625 = vmor %vm2623, %vm2624
        %v2626 = vsel %vm2625, %v2618, %v2622
        %v2627 = vand.u32 2147483647, %v2563
        %vm2628 = vcmp.eq.f32.partialorder %v2627, 8.507059e+37
        %v2629 = vand.u32 %v2563, 2147483648
        %v2630 = vor.u32 1.1754944e-38, %v2629
        %v2631 = vsel %vm2628, %v2630, %v2626
        %v2632 = vrcp.pop %v2566
        %v2633 = vmul.f32 %v2566, %v2632
        %v2634 = vsub.f32 1.0, %v2633
        %v2635 = vmul.f32 %v2632, %v2634
        %v2636 = vadd.f32 %v2632, %v2635
        %vm2637 = vweird.f32 %v2566
        %vm2638 = vweird.f32 %v2632
        %vm2639 = vmor %vm2637, %vm2638
        %v2640 = vsel %vm2639, %v2632, %v2636
        %v2641 = vand.u32 2147483647, %v2566
        %vm2642 = vcmp.eq.f32.partialorder %v2641, 8.507059e+37
        %v2643 = vand.u32 %v2566, 2147483648
        %v2644 = vor.u32 1.1754944e-38, %v2643
        %v2645 = vsel %vm2642, %v2644, %v2640
        %v2646 = vrcp.pop %v2569
        %v2647 = vmul.f32 %v2569, %v2646
        %v2648 = vsub.f32 1.0, %v2647
        %v2649 = vmul.f32 %v2646, %v2648
        %v2650 = vadd.f32 %v2646, %v2649
        %vm2651 = vweird.f32 %v2569
        %vm2652 = vweird.f32 %v2646
        %vm2653 = vmor %vm2651, %vm2652
        %v2654 = vsel %vm2653, %v2646, %v2650
        %v2655 = vand.u32 2147483647, %v2569
        %vm2656 = vcmp.eq.f32.partialorder %v2655, 8.507059e+37
        %v2657 = vand.u32 %v2569, 2147483648
        %v2658 = vor.u32 1.1754944e-38, %v2657
        %v2659 = vsel %vm2656, %v2658, %v2654
        %v2660 = vrcp.pop %v2572
        %v2661 = vmul.f32 %v2572, %v2660
        %v2662 = vsub.f32 1.0, %v2661
        %v2663 = vmul.f32 %v2660, %v2662
        %v2664 = vadd.f32 %v2660, %v2663
        %vm2665 = vweird.f32 %v2572
        %vm2666 = vweird.f32 %v2660
        %vm2667 = vmor %vm2665, %vm2666
        %v2668 = vsel %vm2667, %v2660, %v2664
        %v2669 = vand.u32 2147483647, %v2572
        %vm2670 = vcmp.eq.f32.partialorder %v2669, 8.507059e+37
        %v2671 = vand.u32 %v2572, 2147483648
        %v2672 = vor.u32 1.1754944e-38, %v2671
        %v2673 = vsel %vm2670, %v2672, %v2668
        %v2674 = vrcp.pop %v2575
        %v2675 = vmul.f32 %v2575, %v2674
        %v2676 = vsub.f32 1.0, %v2675
        %v2677 = vmul.f32 %v2674, %v2676
        %v2678 = vadd.f32 %v2674, %v2677
        %vm2679 = vweird.f32 %v2575
        %vm2680 = vweird.f32 %v2674
        %vm2681 = vmor %vm2679, %vm2680
        %v2682 = vsel %vm2681, %v2674, %v2678
        %v2683 = vand.u32 2147483647, %v2575
        %vm2684 = vcmp.eq.f32.partialorder %v2683, 8.507059e+37
        %v2685 = vand.u32 %v2575, 2147483648
        %v2686 = vor.u32 1.1754944e-38, %v2685
        %v2687 = vsel %vm2684, %v2686, %v2682
        %v2688 = vmul.f32 %v2537, %v2589
        %v2689 = vmul.f32 %v2539, %v2603
        %v2690 = vmul.f32 %v2541, %v2617
        %v2691 = vmul.f32 %v2543, %v2631
        %v2692 = vmul.f32 %v2545, %v2645
        %v2693 = vmul.f32 %v2547, %v2659
        %v2694 = vmul.f32 %v2549, %v2673
        %v2695 = vmul.f32 %v2551, %v2687
        %v2697 = vsel %vm694, %v2688, 0
        %2699 = vmatpush.msra.mxu0 0.0
        %2700 = vmatpush.msra.mxu0 0.0
        %2701 = vmatpush.msra.mxu0 0.0
        %2702 = vmatpush.msra.mxu0 0.0
        %2703 = vmatpush.msra.mxu0 0.0
        %2704 = vmatpush.msra.mxu0 0.0
        %2705 = vmatpush.msra.mxu0 0.0
        %2706 = vmatpush.msra.mxu0 0.0
        %2707 = vmatpush.msra.mxu0 0.0
        %2708 = vmatpush.msra.mxu0 0.0
        %2709 = vmatpush.msra.mxu0 0.0
        %2710 = vmatpush.msra.mxu0 0.0
        %2711 = vmatpush.msra.mxu0 0.0
        %2712 = vmatpush.msra.mxu0 0.0
        %2713 = vmatpush.msra.mxu0 0.0
        %2714 = vmatpush.msra.mxu0 %v2265
        %2715 = vmatmul.f32.gmra.mxu0 %v2697
        %v2716 = vpop.f32.mrf.mxu0
        %v2717 = vadd.f32 0.0, %v2716
        %2718 = vdwg.mxu0
        %v2720 = vsel %vm694, %v2689, 0
        %2722 = vmatpush.msra.mxu0 0.0
        %2723 = vmatpush.msra.mxu0 0.0
        %2724 = vmatpush.msra.mxu0 0.0
        %2725 = vmatpush.msra.mxu0 0.0
        %2726 = vmatpush.msra.mxu0 0.0
        %2727 = vmatpush.msra.mxu0 0.0
        %2728 = vmatpush.msra.mxu0 0.0
        %2729 = vmatpush.msra.mxu0 0.0
        %2730 = vmatpush.msra.mxu0 0.0
        %2731 = vmatpush.msra.mxu0 0.0
        %2732 = vmatpush.msra.mxu0 0.0
        %2733 = vmatpush.msra.mxu0 0.0
        %2734 = vmatpush.msra.mxu0 0.0
        %2735 = vmatpush.msra.mxu0 0.0
        %2736 = vmatpush.msra.mxu0 0.0
        %2737 = vmatpush.msra.mxu0 %v2268
        %2738 = vmatmul.f32.gmra.mxu0 %v2720
        %v2739 = vpop.f32.mrf.mxu0
        %v2740 = vadd.f32 0.0, %v2739
        %2741 = vdwg.mxu0
        %v2743 = vsel %vm694, %v2690, 0
        %2745 = vmatpush.msra.mxu0 0.0
        %2746 = vmatpush.msra.mxu0 0.0
        %2747 = vmatpush.msra.mxu0 0.0
        %2748 = vmatpush.msra.mxu0 0.0
        %2749 = vmatpush.msra.mxu0 0.0
        %2750 = vmatpush.msra.mxu0 0.0
        %2751 = vmatpush.msra.mxu0 0.0
        %2752 = vmatpush.msra.mxu0 0.0
        %2753 = vmatpush.msra.mxu0 0.0
        %2754 = vmatpush.msra.mxu0 0.0
        %2755 = vmatpush.msra.mxu0 0.0
        %2756 = vmatpush.msra.mxu0 0.0
        %2757 = vmatpush.msra.mxu0 0.0
        %2758 = vmatpush.msra.mxu0 0.0
        %2759 = vmatpush.msra.mxu0 0.0
        %2760 = vmatpush.msra.mxu0 %v2271
        %2761 = vmatmul.f32.gmra.mxu0 %v2743
        %v2762 = vpop.f32.mrf.mxu0
        %v2763 = vadd.f32 0.0, %v2762
        %2764 = vdwg.mxu0
        %v2766 = vsel %vm694, %v2691, 0
        %2768 = vmatpush.msra.mxu0 0.0
        %2769 = vmatpush.msra.mxu0 0.0
        %2770 = vmatpush.msra.mxu0 0.0
        %2771 = vmatpush.msra.mxu0 0.0
        %2772 = vmatpush.msra.mxu0 0.0
        %2773 = vmatpush.msra.mxu0 0.0
        %2774 = vmatpush.msra.mxu0 0.0
        %2775 = vmatpush.msra.mxu0 0.0
        %2776 = vmatpush.msra.mxu0 0.0
        %2777 = vmatpush.msra.mxu0 0.0
        %2778 = vmatpush.msra.mxu0 0.0
        %2779 = vmatpush.msra.mxu0 0.0
        %2780 = vmatpush.msra.mxu0 0.0
        %2781 = vmatpush.msra.mxu0 0.0
        %2782 = vmatpush.msra.mxu0 0.0
        %2783 = vmatpush.msra.mxu0 %v2274
        %2784 = vmatmul.f32.gmra.mxu0 %v2766
        %v2785 = vpop.f32.mrf.mxu0
        %v2786 = vadd.f32 0.0, %v2785
        %2787 = vdwg.mxu0
        %v2789 = vsel %vm694, %v2692, 0
        %2791 = vmatpush.msra.mxu0 0.0
        %2792 = vmatpush.msra.mxu0 0.0
        %2793 = vmatpush.msra.mxu0 0.0
        %2794 = vmatpush.msra.mxu0 0.0
        %2795 = vmatpush.msra.mxu0 0.0
        %2796 = vmatpush.msra.mxu0 0.0
        %2797 = vmatpush.msra.mxu0 0.0
        %2798 = vmatpush.msra.mxu0 0.0
        %2799 = vmatpush.msra.mxu0 0.0
        %2800 = vmatpush.msra.mxu0 0.0
        %2801 = vmatpush.msra.mxu0 0.0
        %2802 = vmatpush.msra.mxu0 0.0
        %2803 = vmatpush.msra.mxu0 0.0
        %2804 = vmatpush.msra.mxu0 0.0
        %2805 = vmatpush.msra.mxu0 0.0
        %2806 = vmatpush.msra.mxu0 %v2277
        %2807 = vmatmul.f32.gmra.mxu0 %v2789
        %v2808 = vpop.f32.mrf.mxu0
        %v2809 = vadd.f32 0.0, %v2808
        %2810 = vdwg.mxu0
        %v2812 = vsel %vm694, %v2693, 0
        %2814 = vmatpush.msra.mxu0 0.0
        %2815 = vmatpush.msra.mxu0 0.0
        %2816 = vmatpush.msra.mxu0 0.0
        %2817 = vmatpush.msra.mxu0 0.0
        %2818 = vmatpush.msra.mxu0 0.0
        %2819 = vmatpush.msra.mxu0 0.0
        %2820 = vmatpush.msra.mxu0 0.0
        %2821 = vmatpush.msra.mxu0 0.0
        %2822 = vmatpush.msra.mxu0 0.0
        %2823 = vmatpush.msra.mxu0 0.0
        %2824 = vmatpush.msra.mxu0 0.0
        %2825 = vmatpush.msra.mxu0 0.0
        %2826 = vmatpush.msra.mxu0 0.0
        %2827 = vmatpush.msra.mxu0 0.0
        %2828 = vmatpush.msra.mxu0 0.0
        %2829 = vmatpush.msra.mxu0 %v2280
        %2830 = vmatmul.f32.gmra.mxu0 %v2812
        %v2831 = vpop.f32.mrf.mxu0
        %v2832 = vadd.f32 0.0, %v2831
        %2833 = vdwg.mxu0
        %v2835 = vsel %vm694, %v2694, 0
        %2837 = vmatpush.msra.mxu0 0.0
        %2838 = vmatpush.msra.mxu0 0.0
        %2839 = vmatpush.msra.mxu0 0.0
        %2840 = vmatpush.msra.mxu0 0.0
        %2841 = vmatpush.msra.mxu0 0.0
        %2842 = vmatpush.msra.mxu0 0.0
        %2843 = vmatpush.msra.mxu0 0.0
        %2844 = vmatpush.msra.mxu0 0.0
        %2845 = vmatpush.msra.mxu0 0.0
        %2846 = vmatpush.msra.mxu0 0.0
        %2847 = vmatpush.msra.mxu0 0.0
        %2848 = vmatpush.msra.mxu0 0.0
        %2849 = vmatpush.msra.mxu0 0.0
        %2850 = vmatpush.msra.mxu0 0.0
        %2851 = vmatpush.msra.mxu0 0.0
        %2852 = vmatpush.msra.mxu0 %v2283
        %2853 = vmatmul.f32.gmra.mxu0 %v2835
        %v2854 = vpop.f32.mrf.mxu0
        %v2855 = vadd.f32 0.0, %v2854
        %2856 = vdwg.mxu0
        %v2858 = vsel %vm694, %v2695, 0
        %2860 = vmatpush.msra.mxu0 0.0
        %2861 = vmatpush.msra.mxu0 0.0
        %2862 = vmatpush.msra.mxu0 0.0
        %2863 = vmatpush.msra.mxu0 0.0
        %2864 = vmatpush.msra.mxu0 0.0
        %2865 = vmatpush.msra.mxu0 0.0
        %2866 = vmatpush.msra.mxu0 0.0
        %2867 = vmatpush.msra.mxu0 0.0
        %2868 = vmatpush.msra.mxu0 0.0
        %2869 = vmatpush.msra.mxu0 0.0
        %2870 = vmatpush.msra.mxu0 0.0
        %2871 = vmatpush.msra.mxu0 0.0
        %2872 = vmatpush.msra.mxu0 0.0
        %2873 = vmatpush.msra.mxu0 0.0
        %2874 = vmatpush.msra.mxu0 0.0
        %2875 = vmatpush.msra.mxu0 %v2286
        %2876 = vmatmul.f32.gmra.mxu0 %v2858
        %v2877 = vpop.f32.mrf.mxu0
        %v2878 = vadd.f32 0.0, %v2877
        %2879 = vdwg.mxu0
        %s2880 = scalar_lea.vmem %s6, 16
        %v2881 = vld [vmem:[%s2880] sm:$0xff]
        %v2883 = vsel %vm694, %v2717, 0
        %v2886 = vsel %vm694, %v2740, 0
        %v2889 = vsel %vm694, %v2763, 0
        %v2892 = vsel %vm694, %v2786, 0
        %v2895 = vsel %vm694, %v2809, 0
        %v2898 = vsel %vm694, %v2832, 0
        %v2901 = vsel %vm694, %v2855, 0
        %v2904 = vsel %vm694, %v2878, 0
        %2906 = vmatpush.msra.mxu0 0.0
        %2907 = vmatpush.msra.mxu0 0.0
        %2908 = vmatpush.msra.mxu0 0.0
        %2909 = vmatpush.msra.mxu0 0.0
        %2910 = vmatpush.msra.mxu0 0.0
        %2911 = vmatpush.msra.mxu0 0.0
        %2912 = vmatpush.msra.mxu0 0.0
        %2913 = vmatpush.msra.mxu0 0.0
        %2914 = vmatpush.msra.mxu0 0.0
        %2915 = vmatpush.msra.mxu0 0.0
        %2916 = vmatpush.msra.mxu0 0.0
        %2917 = vmatpush.msra.mxu0 0.0
        %2918 = vmatpush.msra.mxu0 0.0
        %2919 = vmatpush.msra.mxu0 0.0
        %2920 = vmatpush.msra.mxu0 0.0
        %2921 = vmatpush.msra.mxu0 %v2881
        %2922 = vmatmul.f32.gmra.mxu0 %v2883
        %v2923 = vpop.f32.mrf.mxu0
        %v2924 = vadd.f32 0.0, %v2923
        %2925 = vmatmul.f32.gmra.mxu0 %v2886
        %v2926 = vpop.f32.mrf.mxu0
        %v2927 = vadd.f32 0.0, %v2926
        %2928 = vmatmul.f32.gmra.mxu0 %v2889
        %v2929 = vpop.f32.mrf.mxu0
        %v2930 = vadd.f32 0.0, %v2929
        %2931 = vmatmul.f32.gmra.mxu0 %v2892
        %v2932 = vpop.f32.mrf.mxu0
        %v2933 = vadd.f32 0.0, %v2932
        %2934 = vmatmul.f32.gmra.mxu0 %v2895
        %v2935 = vpop.f32.mrf.mxu0
        %v2936 = vadd.f32 0.0, %v2935
        %2937 = vmatmul.f32.gmra.mxu0 %v2898
        %v2938 = vpop.f32.mrf.mxu0
        %v2939 = vadd.f32 0.0, %v2938
        %2940 = vmatmul.f32.gmra.mxu0 %v2901
        %v2941 = vpop.f32.mrf.mxu0
        %v2942 = vadd.f32 0.0, %v2941
        %2943 = vmatmul.f32.gmra.mxu0 %v2904
        %v2944 = vpop.f32.mrf.mxu0
        %v2945 = vadd.f32 0.0, %v2944
        %2946 = vdwg.mxu0
        %v2947 = vadd.f32 %v2127, %v2924
        %v2948 = vadd.f32 %v2130, %v2927
        %v2949 = vadd.f32 %v2133, %v2930
        %v2950 = vadd.f32 %v2136, %v2933
        %v2951 = vadd.f32 %v2139, %v2936
        %v2952 = vadd.f32 %v2142, %v2939
        %v2953 = vadd.f32 %v2145, %v2942
        %v2954 = vadd.f32 %v2148, %v2945
        %s2955 = scalar_lea.vmem %s3, 96
        %v2956 = vld [vmem:[%s2955] sm:$0xff]
        %v2957 = vld [vmem:[%s2955 + $0x8] sm:$0xff]
        %v2958 = vld [vmem:[%s2955 + $0x10] sm:$0xff]
        %v2959 = vld [vmem:[%s2955 + $0x18] sm:$0xff]
        %2960 = vmatpush.msra.mxu0 0.0
        %2961 = vmatpush.msra.mxu0 0.0
        %2962 = vmatpush.msra.mxu0 0.0
        %2963 = vmatpush.msra.mxu0 0.0
        %2964 = vmatpush.msra.mxu0 0.0
        %2965 = vmatpush.msra.mxu0 0.0
        %2966 = vmatpush.msra.mxu0 0.0
        %2967 = vmatpush.msra.mxu0 0.0
        %2968 = vmatpush.msra.mxu0 0.0
        %2969 = vmatpush.msra.mxu0 0.0
        %2970 = vmatpush.msra.mxu0 0.0
        %2971 = vmatpush.msra.mxu0 0.0
        %2972 = vmatpush.msra.mxu0 %v2959
        %2973 = vmatpush.msra.mxu0 %v2958
        %2974 = vmatpush.msra.mxu0 %v2957
        %2975 = vmatpush.msra.mxu0 %v2956
        %2976 = vmatmul.f32.gmra.mxu0 %v540
        %v2977 = vpop.f32.mrf.mxu0
        %v2978 = vadd.f32 0.0, %v2977
        %2979 = vmatmul.f32.gmra.mxu0 %v543
        %v2980 = vpop.f32.mrf.mxu0
        %v2981 = vadd.f32 0.0, %v2980
        %2982 = vmatmul.f32.gmra.mxu0 %v546
        %v2983 = vpop.f32.mrf.mxu0
        %v2984 = vadd.f32 0.0, %v2983
        %2985 = vmatmul.f32.gmra.mxu0 %v549
        %v2986 = vpop.f32.mrf.mxu0
        %v2987 = vadd.f32 0.0, %v2986
        %2988 = vmatmul.f32.gmra.mxu0 %v552
        %v2989 = vpop.f32.mrf.mxu0
        %v2990 = vadd.f32 0.0, %v2989
        %2991 = vmatmul.f32.gmra.mxu0 %v555
        %v2992 = vpop.f32.mrf.mxu0
        %v2993 = vadd.f32 0.0, %v2992
        %2994 = vmatmul.f32.gmra.mxu0 %v558
        %v2995 = vpop.f32.mrf.mxu0
        %v2996 = vadd.f32 0.0, %v2995
        %2997 = vmatmul.f32.gmra.mxu0 %v561
        %v2998 = vpop.f32.mrf.mxu0
        %v2999 = vadd.f32 0.0, %v2998
        %3000 = vdwg.mxu0
        %s3001 = scalar_lea.vmem %s4, 96
        %v3002 = vld [vmem:[%s3001] sm:$0xff]
        %v3003 = vld [vmem:[%s3001 + $0x8] sm:$0xff]
        %v3004 = vld [vmem:[%s3001 + $0x10] sm:$0xff]
        %v3005 = vld [vmem:[%s3001 + $0x18] sm:$0xff]
        %3006 = vmatpush.msra.mxu0 0.0
        %3007 = vmatpush.msra.mxu0 0.0
        %3008 = vmatpush.msra.mxu0 0.0
        %3009 = vmatpush.msra.mxu0 0.0
        %3010 = vmatpush.msra.mxu0 0.0
        %3011 = vmatpush.msra.mxu0 0.0
        %3012 = vmatpush.msra.mxu0 0.0
        %3013 = vmatpush.msra.mxu0 0.0
        %3014 = vmatpush.msra.mxu0 0.0
        %3015 = vmatpush.msra.mxu0 0.0
        %3016 = vmatpush.msra.mxu0 0.0
        %3017 = vmatpush.msra.mxu0 0.0
        %3018 = vmatpush.msra.mxu0 %v3005
        %3019 = vmatpush.msra.mxu0 %v3004
        %3020 = vmatpush.msra.mxu0 %v3003
        %3021 = vmatpush.msra.mxu0 %v3002
        %3022 = vmatmul.f32.gmra.mxu0 %v540
        %v3023 = vpop.f32.mrf.mxu0
        %v3024 = vadd.f32 0.0, %v3023
        %3025 = vmatmul.f32.gmra.mxu0 %v543
        %v3026 = vpop.f32.mrf.mxu0
        %v3027 = vadd.f32 0.0, %v3026
        %3028 = vmatmul.f32.gmra.mxu0 %v546
        %v3029 = vpop.f32.mrf.mxu0
        %v3030 = vadd.f32 0.0, %v3029
        %3031 = vmatmul.f32.gmra.mxu0 %v549
        %v3032 = vpop.f32.mrf.mxu0
        %v3033 = vadd.f32 0.0, %v3032
        %3034 = vmatmul.f32.gmra.mxu0 %v552
        %v3035 = vpop.f32.mrf.mxu0
        %v3036 = vadd.f32 0.0, %v3035
        %3037 = vmatmul.f32.gmra.mxu0 %v555
        %v3038 = vpop.f32.mrf.mxu0
        %v3039 = vadd.f32 0.0, %v3038
        %3040 = vmatmul.f32.gmra.mxu0 %v558
        %v3041 = vpop.f32.mrf.mxu0
        %v3042 = vadd.f32 0.0, %v3041
        %3043 = vmatmul.f32.gmra.mxu0 %v561
        %v3044 = vpop.f32.mrf.mxu0
        %v3045 = vadd.f32 0.0, %v3044
        %3046 = vdwg.mxu0
        %s3047 = scalar_lea.vmem %s5, 96
        %v3048 = vld [vmem:[%s3047] sm:$0xff]
        %v3049 = vld [vmem:[%s3047 + $0x8] sm:$0xff]
        %v3050 = vld [vmem:[%s3047 + $0x10] sm:$0xff]
        %v3051 = vld [vmem:[%s3047 + $0x18] sm:$0xff]
        %3052 = vmatpush.msra.mxu0 0.0
        %3053 = vmatpush.msra.mxu0 0.0
        %3054 = vmatpush.msra.mxu0 0.0
        %3055 = vmatpush.msra.mxu0 0.0
        %3056 = vmatpush.msra.mxu0 0.0
        %3057 = vmatpush.msra.mxu0 0.0
        %3058 = vmatpush.msra.mxu0 0.0
        %3059 = vmatpush.msra.mxu0 0.0
        %3060 = vmatpush.msra.mxu0 0.0
        %3061 = vmatpush.msra.mxu0 0.0
        %3062 = vmatpush.msra.mxu0 0.0
        %3063 = vmatpush.msra.mxu0 0.0
        %3064 = vmatpush.msra.mxu0 %v3051
        %3065 = vmatpush.msra.mxu0 %v3050
        %3066 = vmatpush.msra.mxu0 %v3049
        %3067 = vmatpush.msra.mxu0 %v3048
        %3068 = vmatmul.f32.gmra.mxu0 %v540
        %v3069 = vpop.f32.mrf.mxu0
        %v3070 = vadd.f32 0.0, %v3069
        %3071 = vmatmul.f32.gmra.mxu0 %v543
        %v3072 = vpop.f32.mrf.mxu0
        %v3073 = vadd.f32 0.0, %v3072
        %3074 = vmatmul.f32.gmra.mxu0 %v546
        %v3075 = vpop.f32.mrf.mxu0
        %v3076 = vadd.f32 0.0, %v3075
        %3077 = vmatmul.f32.gmra.mxu0 %v549
        %v3078 = vpop.f32.mrf.mxu0
        %v3079 = vadd.f32 0.0, %v3078
        %3080 = vmatmul.f32.gmra.mxu0 %v552
        %v3081 = vpop.f32.mrf.mxu0
        %v3082 = vadd.f32 0.0, %v3081
        %3083 = vmatmul.f32.gmra.mxu0 %v555
        %v3084 = vpop.f32.mrf.mxu0
        %v3085 = vadd.f32 0.0, %v3084
        %3086 = vmatmul.f32.gmra.mxu0 %v558
        %v3087 = vpop.f32.mrf.mxu0
        %v3088 = vadd.f32 0.0, %v3087
        %3089 = vmatmul.f32.gmra.mxu0 %v561
        %v3090 = vpop.f32.mrf.mxu0
        %v3091 = vadd.f32 0.0, %v3090
        %3092 = vdwg.mxu0
        %v3094 = vsel %vm694, %v2978, 0
        %v3097 = vsel %vm694, %v3024, 0
        %3099 = vmatpush.xpose.msra.mxu0 0.0
        %3100 = vmatpush.xpose.msra.mxu0 0.0
        %3101 = vmatpush.xpose.msra.mxu0 0.0
        %3102 = vmatpush.xpose.msra.mxu0 0.0
        %3103 = vmatpush.xpose.msra.mxu0 0.0
        %3104 = vmatpush.xpose.msra.mxu0 0.0
        %3105 = vmatpush.xpose.msra.mxu0 0.0
        %3106 = vmatpush.xpose.msra.mxu0 0.0
        %3107 = vmatpush.xpose.msra.mxu0 0.0
        %3108 = vmatpush.xpose.msra.mxu0 0.0
        %3109 = vmatpush.xpose.msra.mxu0 0.0
        %3110 = vmatpush.xpose.msra.mxu0 0.0
        %3111 = vmatpush.xpose.msra.mxu0 0.0
        %3112 = vmatpush.xpose.msra.mxu0 0.0
        %3113 = vmatpush.xpose.msra.mxu0 0.0
        %3114 = vmatpush.xpose.msra.mxu0 %v3097
        %3115 = vmatmul.f32.gmra.mxu0 %v3094
        %v3116 = vpop.f32.mrf.mxu0
        %v3117 = vadd.f32 0.0, %v3116
        %3118 = vdwg.mxu0
        %v3120 = vsel %vm694, %v2981, 0
        %v3123 = vsel %vm694, %v3027, 0
        %3125 = vmatpush.xpose.msra.mxu0 0.0
        %3126 = vmatpush.xpose.msra.mxu0 0.0
        %3127 = vmatpush.xpose.msra.mxu0 0.0
        %3128 = vmatpush.xpose.msra.mxu0 0.0
        %3129 = vmatpush.xpose.msra.mxu0 0.0
        %3130 = vmatpush.xpose.msra.mxu0 0.0
        %3131 = vmatpush.xpose.msra.mxu0 0.0
        %3132 = vmatpush.xpose.msra.mxu0 0.0
        %3133 = vmatpush.xpose.msra.mxu0 0.0
        %3134 = vmatpush.xpose.msra.mxu0 0.0
        %3135 = vmatpush.xpose.msra.mxu0 0.0
        %3136 = vmatpush.xpose.msra.mxu0 0.0
        %3137 = vmatpush.xpose.msra.mxu0 0.0
        %3138 = vmatpush.xpose.msra.mxu0 0.0
        %3139 = vmatpush.xpose.msra.mxu0 0.0
        %3140 = vmatpush.xpose.msra.mxu0 %v3123
        %3141 = vmatmul.f32.gmra.mxu0 %v3120
        %v3142 = vpop.f32.mrf.mxu0
        %v3143 = vadd.f32 0.0, %v3142
        %3144 = vdwg.mxu0
        %v3146 = vsel %vm694, %v2984, 0
        %v3149 = vsel %vm694, %v3030, 0
        %3151 = vmatpush.xpose.msra.mxu0 0.0
        %3152 = vmatpush.xpose.msra.mxu0 0.0
        %3153 = vmatpush.xpose.msra.mxu0 0.0
        %3154 = vmatpush.xpose.msra.mxu0 0.0
        %3155 = vmatpush.xpose.msra.mxu0 0.0
        %3156 = vmatpush.xpose.msra.mxu0 0.0
        %3157 = vmatpush.xpose.msra.mxu0 0.0
        %3158 = vmatpush.xpose.msra.mxu0 0.0
        %3159 = vmatpush.xpose.msra.mxu0 0.0
        %3160 = vmatpush.xpose.msra.mxu0 0.0
        %3161 = vmatpush.xpose.msra.mxu0 0.0
        %3162 = vmatpush.xpose.msra.mxu0 0.0
        %3163 = vmatpush.xpose.msra.mxu0 0.0
        %3164 = vmatpush.xpose.msra.mxu0 0.0
        %3165 = vmatpush.xpose.msra.mxu0 0.0
        %3166 = vmatpush.xpose.msra.mxu0 %v3149
        %3167 = vmatmul.f32.gmra.mxu0 %v3146
        %v3168 = vpop.f32.mrf.mxu0
        %v3169 = vadd.f32 0.0, %v3168
        %3170 = vdwg.mxu0
        %v3172 = vsel %vm694, %v2987, 0
        %v3175 = vsel %vm694, %v3033, 0
        %3177 = vmatpush.xpose.msra.mxu0 0.0
        %3178 = vmatpush.xpose.msra.mxu0 0.0
        %3179 = vmatpush.xpose.msra.mxu0 0.0
        %3180 = vmatpush.xpose.msra.mxu0 0.0
        %3181 = vmatpush.xpose.msra.mxu0 0.0
        %3182 = vmatpush.xpose.msra.mxu0 0.0
        %3183 = vmatpush.xpose.msra.mxu0 0.0
        %3184 = vmatpush.xpose.msra.mxu0 0.0
        %3185 = vmatpush.xpose.msra.mxu0 0.0
        %3186 = vmatpush.xpose.msra.mxu0 0.0
        %3187 = vmatpush.xpose.msra.mxu0 0.0
        %3188 = vmatpush.xpose.msra.mxu0 0.0
        %3189 = vmatpush.xpose.msra.mxu0 0.0
        %3190 = vmatpush.xpose.msra.mxu0 0.0
        %3191 = vmatpush.xpose.msra.mxu0 0.0
        %3192 = vmatpush.xpose.msra.mxu0 %v3175
        %3193 = vmatmul.f32.gmra.mxu0 %v3172
        %v3194 = vpop.f32.mrf.mxu0
        %v3195 = vadd.f32 0.0, %v3194
        %3196 = vdwg.mxu0
        %v3198 = vsel %vm694, %v2990, 0
        %v3201 = vsel %vm694, %v3036, 0
        %3203 = vmatpush.xpose.msra.mxu0 0.0
        %3204 = vmatpush.xpose.msra.mxu0 0.0
        %3205 = vmatpush.xpose.msra.mxu0 0.0
        %3206 = vmatpush.xpose.msra.mxu0 0.0
        %3207 = vmatpush.xpose.msra.mxu0 0.0
        %3208 = vmatpush.xpose.msra.mxu0 0.0
        %3209 = vmatpush.xpose.msra.mxu0 0.0
        %3210 = vmatpush.xpose.msra.mxu0 0.0
        %3211 = vmatpush.xpose.msra.mxu0 0.0
        %3212 = vmatpush.xpose.msra.mxu0 0.0
        %3213 = vmatpush.xpose.msra.mxu0 0.0
        %3214 = vmatpush.xpose.msra.mxu0 0.0
        %3215 = vmatpush.xpose.msra.mxu0 0.0
        %3216 = vmatpush.xpose.msra.mxu0 0.0
        %3217 = vmatpush.xpose.msra.mxu0 0.0
        %3218 = vmatpush.xpose.msra.mxu0 %v3201
        %3219 = vmatmul.f32.gmra.mxu0 %v3198
        %v3220 = vpop.f32.mrf.mxu0
        %v3221 = vadd.f32 0.0, %v3220
        %3222 = vdwg.mxu0
        %v3224 = vsel %vm694, %v2993, 0
        %v3227 = vsel %vm694, %v3039, 0
        %3229 = vmatpush.xpose.msra.mxu0 0.0
        %3230 = vmatpush.xpose.msra.mxu0 0.0
        %3231 = vmatpush.xpose.msra.mxu0 0.0
        %3232 = vmatpush.xpose.msra.mxu0 0.0
        %3233 = vmatpush.xpose.msra.mxu0 0.0
        %3234 = vmatpush.xpose.msra.mxu0 0.0
        %3235 = vmatpush.xpose.msra.mxu0 0.0
        %3236 = vmatpush.xpose.msra.mxu0 0.0
        %3237 = vmatpush.xpose.msra.mxu0 0.0
        %3238 = vmatpush.xpose.msra.mxu0 0.0
        %3239 = vmatpush.xpose.msra.mxu0 0.0
        %3240 = vmatpush.xpose.msra.mxu0 0.0
        %3241 = vmatpush.xpose.msra.mxu0 0.0
        %3242 = vmatpush.xpose.msra.mxu0 0.0
        %3243 = vmatpush.xpose.msra.mxu0 0.0
        %3244 = vmatpush.xpose.msra.mxu0 %v3227
        %3245 = vmatmul.f32.gmra.mxu0 %v3224
        %v3246 = vpop.f32.mrf.mxu0
        %v3247 = vadd.f32 0.0, %v3246
        %3248 = vdwg.mxu0
        %v3250 = vsel %vm694, %v2996, 0
        %v3253 = vsel %vm694, %v3042, 0
        %3255 = vmatpush.xpose.msra.mxu0 0.0
        %3256 = vmatpush.xpose.msra.mxu0 0.0
        %3257 = vmatpush.xpose.msra.mxu0 0.0
        %3258 = vmatpush.xpose.msra.mxu0 0.0
        %3259 = vmatpush.xpose.msra.mxu0 0.0
        %3260 = vmatpush.xpose.msra.mxu0 0.0
        %3261 = vmatpush.xpose.msra.mxu0 0.0
        %3262 = vmatpush.xpose.msra.mxu0 0.0
        %3263 = vmatpush.xpose.msra.mxu0 0.0
        %3264 = vmatpush.xpose.msra.mxu0 0.0
        %3265 = vmatpush.xpose.msra.mxu0 0.0
        %3266 = vmatpush.xpose.msra.mxu0 0.0
        %3267 = vmatpush.xpose.msra.mxu0 0.0
        %3268 = vmatpush.xpose.msra.mxu0 0.0
        %3269 = vmatpush.xpose.msra.mxu0 0.0
        %3270 = vmatpush.xpose.msra.mxu0 %v3253
        %3271 = vmatmul.f32.gmra.mxu0 %v3250
        %v3272 = vpop.f32.mrf.mxu0
        %v3273 = vadd.f32 0.0, %v3272
        %3274 = vdwg.mxu0
        %v3276 = vsel %vm694, %v2999, 0
        %v3279 = vsel %vm694, %v3045, 0
        %3281 = vmatpush.xpose.msra.mxu0 0.0
        %3282 = vmatpush.xpose.msra.mxu0 0.0
        %3283 = vmatpush.xpose.msra.mxu0 0.0
        %3284 = vmatpush.xpose.msra.mxu0 0.0
        %3285 = vmatpush.xpose.msra.mxu0 0.0
        %3286 = vmatpush.xpose.msra.mxu0 0.0
        %3287 = vmatpush.xpose.msra.mxu0 0.0
        %3288 = vmatpush.xpose.msra.mxu0 0.0
        %3289 = vmatpush.xpose.msra.mxu0 0.0
        %3290 = vmatpush.xpose.msra.mxu0 0.0
        %3291 = vmatpush.xpose.msra.mxu0 0.0
        %3292 = vmatpush.xpose.msra.mxu0 0.0
        %3293 = vmatpush.xpose.msra.mxu0 0.0
        %3294 = vmatpush.xpose.msra.mxu0 0.0
        %3295 = vmatpush.xpose.msra.mxu0 0.0
        %3296 = vmatpush.xpose.msra.mxu0 %v3279
        %3297 = vmatmul.f32.gmra.mxu0 %v3276
        %v3298 = vpop.f32.mrf.mxu0
        %v3299 = vadd.f32 0.0, %v3298
        %3300 = vdwg.mxu0
        %v3301 = vmul.f32 %v3117, 0.35355338
        %v3302 = vmul.f32 %v3143, 0.35355338
        %v3303 = vmul.f32 %v3169, 0.35355338
        %v3304 = vmul.f32 %v3195, 0.35355338
        %v3305 = vmul.f32 %v3221, 0.35355338
        %v3306 = vmul.f32 %v3247, 0.35355338
        %v3307 = vmul.f32 %v3273, 0.35355338
        %v3308 = vmul.f32 %v3299, 0.35355338
        %v3309 = vsel %vm694, %v3301, -inf
        %3310 = vmax.xlane.f32.xlu0 %v3309
        %v3311 = vpop.xlane.xlu0 %3310
        %v3312 = vsel %vm694, %v3302, -inf
        %3313 = vmax.xlane.f32.xlu0 %v3312
        %v3314 = vpop.xlane.xlu0 %3313
        %v3315 = vsel %vm694, %v3303, -inf
        %3316 = vmax.xlane.f32.xlu0 %v3315
        %v3317 = vpop.xlane.xlu0 %3316
        %v3318 = vsel %vm694, %v3304, -inf
        %3319 = vmax.xlane.f32.xlu0 %v3318
        %v3320 = vpop.xlane.xlu0 %3319
        %v3321 = vsel %vm694, %v3305, -inf
        %3322 = vmax.xlane.f32.xlu0 %v3321
        %v3323 = vpop.xlane.xlu0 %3322
        %v3324 = vsel %vm694, %v3306, -inf
        %3325 = vmax.xlane.f32.xlu0 %v3324
        %v3326 = vpop.xlane.xlu0 %3325
        %v3327 = vsel %vm694, %v3307, -inf
        %3328 = vmax.xlane.f32.xlu0 %v3327
        %v3329 = vpop.xlane.xlu0 %3328
        %v3330 = vsel %vm694, %v3308, -inf
        %3331 = vmax.xlane.f32.xlu0 %v3330
        %v3332 = vpop.xlane.xlu0 %3331
        %v3333 = vsub.f32 %v3301, %v3311
        %v3334 = vsub.f32 %v3302, %v3314
        %v3335 = vsub.f32 %v3303, %v3317
        %v3336 = vsub.f32 %v3304, %v3320
        %v3337 = vsub.f32 %v3305, %v3323
        %v3338 = vsub.f32 %v3306, %v3326
        %v3339 = vsub.f32 %v3307, %v3329
        %v3340 = vsub.f32 %v3308, %v3332
        %v3341 = vmul.f32 %v3333, 1.442695
        %v3342 = vpow.pop %v3341
        %v3343 = vmul.f32 %v3334, 1.442695
        %v3344 = vpow.pop %v3343
        %v3345 = vmul.f32 %v3335, 1.442695
        %v3346 = vpow.pop %v3345
        %v3347 = vmul.f32 %v3336, 1.442695
        %v3348 = vpow.pop %v3347
        %v3349 = vmul.f32 %v3337, 1.442695
        %v3350 = vpow.pop %v3349
        %v3351 = vmul.f32 %v3338, 1.442695
        %v3352 = vpow.pop %v3351
        %v3353 = vmul.f32 %v3339, 1.442695
        %v3354 = vpow.pop %v3353
        %v3355 = vmul.f32 %v3340, 1.442695
        %v3356 = vpow.pop %v3355
        %v3357 = vsel %vm694, %v3342, 0.0
        %3358 = vadd.xlane.f32.xlu0 %v3357
        %v3359 = vpop.xlane.xlu0 %3358
        %v3360 = vsel %vm694, %v3344, 0.0
        %3361 = vadd.xlane.f32.xlu0 %v3360
        %v3362 = vpop.xlane.xlu0 %3361
        %v3363 = vsel %vm694, %v3346, 0.0
        %3364 = vadd.xlane.f32.xlu0 %v3363
        %v3365 = vpop.xlane.xlu0 %3364
        %v3366 = vsel %vm694, %v3348, 0.0
        %3367 = vadd.xlane.f32.xlu0 %v3366
        %v3368 = vpop.xlane.xlu0 %3367
        %v3369 = vsel %vm694, %v3350, 0.0
        %3370 = vadd.xlane.f32.xlu0 %v3369
        %v3371 = vpop.xlane.xlu0 %3370
        %v3372 = vsel %vm694, %v3352, 0.0
        %3373 = vadd.xlane.f32.xlu0 %v3372
        %v3374 = vpop.xlane.xlu0 %3373
        %v3375 = vsel %vm694, %v3354, 0.0
        %3376 = vadd.xlane.f32.xlu0 %v3375
        %v3377 = vpop.xlane.xlu0 %3376
        %v3378 = vsel %vm694, %v3356, 0.0
        %3379 = vadd.xlane.f32.xlu0 %v3378
        %v3380 = vpop.xlane.xlu0 %3379
        %v3381 = vrcp.pop %v3359
        %v3382 = vmul.f32 %v3359, %v3381
        %v3383 = vsub.f32 1.0, %v3382
        %v3384 = vmul.f32 %v3381, %v3383
        %v3385 = vadd.f32 %v3381, %v3384
        %vm3386 = vweird.f32 %v3359
        %vm3387 = vweird.f32 %v3381
        %vm3388 = vmor %vm3386, %vm3387
        %v3389 = vsel %vm3388, %v3381, %v3385
        %v3390 = vand.u32 2147483647, %v3359
        %vm3391 = vcmp.eq.f32.partialorder %v3390, 8.507059e+37
        %v3392 = vand.u32 %v3359, 2147483648
        %v3393 = vor.u32 1.1754944e-38, %v3392
        %v3394 = vsel %vm3391, %v3393, %v3389
        %v3395 = vrcp.pop %v3362
        %v3396 = vmul.f32 %v3362, %v3395
        %v3397 = vsub.f32 1.0, %v3396
        %v3398 = vmul.f32 %v3395, %v3397
        %v3399 = vadd.f32 %v3395, %v3398
        %vm3400 = vweird.f32 %v3362
        %vm3401 = vweird.f32 %v3395
        %vm3402 = vmor %vm3400, %vm3401
        %v3403 = vsel %vm3402, %v3395, %v3399
        %v3404 = vand.u32 2147483647, %v3362
        %vm3405 = vcmp.eq.f32.partialorder %v3404, 8.507059e+37
        %v3406 = vand.u32 %v3362, 2147483648
        %v3407 = vor.u32 1.1754944e-38, %v3406
        %v3408 = vsel %vm3405, %v3407, %v3403
        %v3409 = vrcp.pop %v3365
        %v3410 = vmul.f32 %v3365, %v3409
        %v3411 = vsub.f32 1.0, %v3410
        %v3412 = vmul.f32 %v3409, %v3411
        %v3413 = vadd.f32 %v3409, %v3412
        %vm3414 = vweird.f32 %v3365
        %vm3415 = vweird.f32 %v3409
        %vm3416 = vmor %vm3414, %vm3415
        %v3417 = vsel %vm3416, %v3409, %v3413
        %v3418 = vand.u32 2147483647, %v3365
        %vm3419 = vcmp.eq.f32.partialorder %v3418, 8.507059e+37
        %v3420 = vand.u32 %v3365, 2147483648
        %v3421 = vor.u32 1.1754944e-38, %v3420
        %v3422 = vsel %vm3419, %v3421, %v3417
        %v3423 = vrcp.pop %v3368
        %v3424 = vmul.f32 %v3368, %v3423
        %v3425 = vsub.f32 1.0, %v3424
        %v3426 = vmul.f32 %v3423, %v3425
        %v3427 = vadd.f32 %v3423, %v3426
        %vm3428 = vweird.f32 %v3368
        %vm3429 = vweird.f32 %v3423
        %vm3430 = vmor %vm3428, %vm3429
        %v3431 = vsel %vm3430, %v3423, %v3427
        %v3432 = vand.u32 2147483647, %v3368
        %vm3433 = vcmp.eq.f32.partialorder %v3432, 8.507059e+37
        %v3434 = vand.u32 %v3368, 2147483648
        %v3435 = vor.u32 1.1754944e-38, %v3434
        %v3436 = vsel %vm3433, %v3435, %v3431
        %v3437 = vrcp.pop %v3371
        %v3438 = vmul.f32 %v3371, %v3437
        %v3439 = vsub.f32 1.0, %v3438
        %v3440 = vmul.f32 %v3437, %v3439
        %v3441 = vadd.f32 %v3437, %v3440
        %vm3442 = vweird.f32 %v3371
        %vm3443 = vweird.f32 %v3437
        %vm3444 = vmor %vm3442, %vm3443
        %v3445 = vsel %vm3444, %v3437, %v3441
        %v3446 = vand.u32 2147483647, %v3371
        %vm3447 = vcmp.eq.f32.partialorder %v3446, 8.507059e+37
        %v3448 = vand.u32 %v3371, 2147483648
        %v3449 = vor.u32 1.1754944e-38, %v3448
        %v3450 = vsel %vm3447, %v3449, %v3445
        %v3451 = vrcp.pop %v3374
        %v3452 = vmul.f32 %v3374, %v3451
        %v3453 = vsub.f32 1.0, %v3452
        %v3454 = vmul.f32 %v3451, %v3453
        %v3455 = vadd.f32 %v3451, %v3454
        %vm3456 = vweird.f32 %v3374
        %vm3457 = vweird.f32 %v3451
        %vm3458 = vmor %vm3456, %vm3457
        %v3459 = vsel %vm3458, %v3451, %v3455
        %v3460 = vand.u32 2147483647, %v3374
        %vm3461 = vcmp.eq.f32.partialorder %v3460, 8.507059e+37
        %v3462 = vand.u32 %v3374, 2147483648
        %v3463 = vor.u32 1.1754944e-38, %v3462
        %v3464 = vsel %vm3461, %v3463, %v3459
        %v3465 = vrcp.pop %v3377
        %v3466 = vmul.f32 %v3377, %v3465
        %v3467 = vsub.f32 1.0, %v3466
        %v3468 = vmul.f32 %v3465, %v3467
        %v3469 = vadd.f32 %v3465, %v3468
        %vm3470 = vweird.f32 %v3377
        %vm3471 = vweird.f32 %v3465
        %vm3472 = vmor %vm3470, %vm3471
        %v3473 = vsel %vm3472, %v3465, %v3469
        %v3474 = vand.u32 2147483647, %v3377
        %vm3475 = vcmp.eq.f32.partialorder %v3474, 8.507059e+37
        %v3476 = vand.u32 %v3377, 2147483648
        %v3477 = vor.u32 1.1754944e-38, %v3476
        %v3478 = vsel %vm3475, %v3477, %v3473
        %v3479 = vrcp.pop %v3380
        %v3480 = vmul.f32 %v3380, %v3479
        %v3481 = vsub.f32 1.0, %v3480
        %v3482 = vmul.f32 %v3479, %v3481
        %v3483 = vadd.f32 %v3479, %v3482
        %vm3484 = vweird.f32 %v3380
        %vm3485 = vweird.f32 %v3479
        %vm3486 = vmor %vm3484, %vm3485
        %v3487 = vsel %vm3486, %v3479, %v3483
        %v3488 = vand.u32 2147483647, %v3380
        %vm3489 = vcmp.eq.f32.partialorder %v3488, 8.507059e+37
        %v3490 = vand.u32 %v3380, 2147483648
        %v3491 = vor.u32 1.1754944e-38, %v3490
        %v3492 = vsel %vm3489, %v3491, %v3487
        %v3493 = vmul.f32 %v3342, %v3394
        %v3494 = vmul.f32 %v3344, %v3408
        %v3495 = vmul.f32 %v3346, %v3422
        %v3496 = vmul.f32 %v3348, %v3436
        %v3497 = vmul.f32 %v3350, %v3450
        %v3498 = vmul.f32 %v3352, %v3464
        %v3499 = vmul.f32 %v3354, %v3478
        %v3500 = vmul.f32 %v3356, %v3492
        %v3502 = vsel %vm694, %v3493, 0
        %3504 = vmatpush.msra.mxu0 0.0
        %3505 = vmatpush.msra.mxu0 0.0
        %3506 = vmatpush.msra.mxu0 0.0
        %3507 = vmatpush.msra.mxu0 0.0
        %3508 = vmatpush.msra.mxu0 0.0
        %3509 = vmatpush.msra.mxu0 0.0
        %3510 = vmatpush.msra.mxu0 0.0
        %3511 = vmatpush.msra.mxu0 0.0
        %3512 = vmatpush.msra.mxu0 0.0
        %3513 = vmatpush.msra.mxu0 0.0
        %3514 = vmatpush.msra.mxu0 0.0
        %3515 = vmatpush.msra.mxu0 0.0
        %3516 = vmatpush.msra.mxu0 0.0
        %3517 = vmatpush.msra.mxu0 0.0
        %3518 = vmatpush.msra.mxu0 0.0
        %3519 = vmatpush.msra.mxu0 %v3070
        %3520 = vmatmul.f32.gmra.mxu0 %v3502
        %v3521 = vpop.f32.mrf.mxu0
        %v3522 = vadd.f32 0.0, %v3521
        %3523 = vdwg.mxu0
        %v3525 = vsel %vm694, %v3494, 0
        %3527 = vmatpush.msra.mxu0 0.0
        %3528 = vmatpush.msra.mxu0 0.0
        %3529 = vmatpush.msra.mxu0 0.0
        %3530 = vmatpush.msra.mxu0 0.0
        %3531 = vmatpush.msra.mxu0 0.0
        %3532 = vmatpush.msra.mxu0 0.0
        %3533 = vmatpush.msra.mxu0 0.0
        %3534 = vmatpush.msra.mxu0 0.0
        %3535 = vmatpush.msra.mxu0 0.0
        %3536 = vmatpush.msra.mxu0 0.0
        %3537 = vmatpush.msra.mxu0 0.0
        %3538 = vmatpush.msra.mxu0 0.0
        %3539 = vmatpush.msra.mxu0 0.0
        %3540 = vmatpush.msra.mxu0 0.0
        %3541 = vmatpush.msra.mxu0 0.0
        %3542 = vmatpush.msra.mxu0 %v3073
        %3543 = vmatmul.f32.gmra.mxu0 %v3525
        %v3544 = vpop.f32.mrf.mxu0
        %v3545 = vadd.f32 0.0, %v3544
        %3546 = vdwg.mxu0
        %v3548 = vsel %vm694, %v3495, 0
        %3550 = vmatpush.msra.mxu0 0.0
        %3551 = vmatpush.msra.mxu0 0.0
        %3552 = vmatpush.msra.mxu0 0.0
        %3553 = vmatpush.msra.mxu0 0.0
        %3554 = vmatpush.msra.mxu0 0.0
        %3555 = vmatpush.msra.mxu0 0.0
        %3556 = vmatpush.msra.mxu0 0.0
        %3557 = vmatpush.msra.mxu0 0.0
        %3558 = vmatpush.msra.mxu0 0.0
        %3559 = vmatpush.msra.mxu0 0.0
        %3560 = vmatpush.msra.mxu0 0.0
        %3561 = vmatpush.msra.mxu0 0.0
        %3562 = vmatpush.msra.mxu0 0.0
        %3563 = vmatpush.msra.mxu0 0.0
        %3564 = vmatpush.msra.mxu0 0.0
        %3565 = vmatpush.msra.mxu0 %v3076
        %3566 = vmatmul.f32.gmra.mxu0 %v3548
        %v3567 = vpop.f32.mrf.mxu0
        %v3568 = vadd.f32 0.0, %v3567
        %3569 = vdwg.mxu0
        %v3571 = vsel %vm694, %v3496, 0
        %3573 = vmatpush.msra.mxu0 0.0
        %3574 = vmatpush.msra.mxu0 0.0
        %3575 = vmatpush.msra.mxu0 0.0
        %3576 = vmatpush.msra.mxu0 0.0
        %3577 = vmatpush.msra.mxu0 0.0
        %3578 = vmatpush.msra.mxu0 0.0
        %3579 = vmatpush.msra.mxu0 0.0
        %3580 = vmatpush.msra.mxu0 0.0
        %3581 = vmatpush.msra.mxu0 0.0
        %3582 = vmatpush.msra.mxu0 0.0
        %3583 = vmatpush.msra.mxu0 0.0
        %3584 = vmatpush.msra.mxu0 0.0
        %3585 = vmatpush.msra.mxu0 0.0
        %3586 = vmatpush.msra.mxu0 0.0
        %3587 = vmatpush.msra.mxu0 0.0
        %3588 = vmatpush.msra.mxu0 %v3079
        %3589 = vmatmul.f32.gmra.mxu0 %v3571
        %v3590 = vpop.f32.mrf.mxu0
        %v3591 = vadd.f32 0.0, %v3590
        %3592 = vdwg.mxu0
        %v3594 = vsel %vm694, %v3497, 0
        %3596 = vmatpush.msra.mxu0 0.0
        %3597 = vmatpush.msra.mxu0 0.0
        %3598 = vmatpush.msra.mxu0 0.0
        %3599 = vmatpush.msra.mxu0 0.0
        %3600 = vmatpush.msra.mxu0 0.0
        %3601 = vmatpush.msra.mxu0 0.0
        %3602 = vmatpush.msra.mxu0 0.0
        %3603 = vmatpush.msra.mxu0 0.0
        %3604 = vmatpush.msra.mxu0 0.0
        %3605 = vmatpush.msra.mxu0 0.0
        %3606 = vmatpush.msra.mxu0 0.0
        %3607 = vmatpush.msra.mxu0 0.0
        %3608 = vmatpush.msra.mxu0 0.0
        %3609 = vmatpush.msra.mxu0 0.0
        %3610 = vmatpush.msra.mxu0 0.0
        %3611 = vmatpush.msra.mxu0 %v3082
        %3612 = vmatmul.f32.gmra.mxu0 %v3594
        %v3613 = vpop.f32.mrf.mxu0
        %v3614 = vadd.f32 0.0, %v3613
        %3615 = vdwg.mxu0
        %v3617 = vsel %vm694, %v3498, 0
        %3619 = vmatpush.msra.mxu0 0.0
        %3620 = vmatpush.msra.mxu0 0.0
        %3621 = vmatpush.msra.mxu0 0.0
        %3622 = vmatpush.msra.mxu0 0.0
        %3623 = vmatpush.msra.mxu0 0.0
        %3624 = vmatpush.msra.mxu0 0.0
        %3625 = vmatpush.msra.mxu0 0.0
        %3626 = vmatpush.msra.mxu0 0.0
        %3627 = vmatpush.msra.mxu0 0.0
        %3628 = vmatpush.msra.mxu0 0.0
        %3629 = vmatpush.msra.mxu0 0.0
        %3630 = vmatpush.msra.mxu0 0.0
        %3631 = vmatpush.msra.mxu0 0.0
        %3632 = vmatpush.msra.mxu0 0.0
        %3633 = vmatpush.msra.mxu0 0.0
        %3634 = vmatpush.msra.mxu0 %v3085
        %3635 = vmatmul.f32.gmra.mxu0 %v3617
        %v3636 = vpop.f32.mrf.mxu0
        %v3637 = vadd.f32 0.0, %v3636
        %3638 = vdwg.mxu0
        %v3640 = vsel %vm694, %v3499, 0
        %3642 = vmatpush.msra.mxu0 0.0
        %3643 = vmatpush.msra.mxu0 0.0
        %3644 = vmatpush.msra.mxu0 0.0
        %3645 = vmatpush.msra.mxu0 0.0
        %3646 = vmatpush.msra.mxu0 0.0
        %3647 = vmatpush.msra.mxu0 0.0
        %3648 = vmatpush.msra.mxu0 0.0
        %3649 = vmatpush.msra.mxu0 0.0
        %3650 = vmatpush.msra.mxu0 0.0
        %3651 = vmatpush.msra.mxu0 0.0
        %3652 = vmatpush.msra.mxu0 0.0
        %3653 = vmatpush.msra.mxu0 0.0
        %3654 = vmatpush.msra.mxu0 0.0
        %3655 = vmatpush.msra.mxu0 0.0
        %3656 = vmatpush.msra.mxu0 0.0
        %3657 = vmatpush.msra.mxu0 %v3088
        %3658 = vmatmul.f32.gmra.mxu0 %v3640
        %v3659 = vpop.f32.mrf.mxu0
        %v3660 = vadd.f32 0.0, %v3659
        %3661 = vdwg.mxu0
        %v3663 = vsel %vm694, %v3500, 0
        %3665 = vmatpush.msra.mxu0 0.0
        %3666 = vmatpush.msra.mxu0 0.0
        %3667 = vmatpush.msra.mxu0 0.0
        %3668 = vmatpush.msra.mxu0 0.0
        %3669 = vmatpush.msra.mxu0 0.0
        %3670 = vmatpush.msra.mxu0 0.0
        %3671 = vmatpush.msra.mxu0 0.0
        %3672 = vmatpush.msra.mxu0 0.0
        %3673 = vmatpush.msra.mxu0 0.0
        %3674 = vmatpush.msra.mxu0 0.0
        %3675 = vmatpush.msra.mxu0 0.0
        %3676 = vmatpush.msra.mxu0 0.0
        %3677 = vmatpush.msra.mxu0 0.0
        %3678 = vmatpush.msra.mxu0 0.0
        %3679 = vmatpush.msra.mxu0 0.0
        %3680 = vmatpush.msra.mxu0 %v3091
        %3681 = vmatmul.f32.gmra.mxu0 %v3663
        %v3682 = vpop.f32.mrf.mxu0
        %v3683 = vadd.f32 0.0, %v3682
        %3684 = vdwg.mxu0
        %s3685 = scalar_lea.vmem %s6, 24
        %v3686 = vld [vmem:[%s3685] sm:$0xff]
        %v3688 = vsel %vm694, %v3522, 0
        %v3691 = vsel %vm694, %v3545, 0
        %v3694 = vsel %vm694, %v3568, 0
        %v3697 = vsel %vm694, %v3591, 0
        %v3700 = vsel %vm694, %v3614, 0
        %v3703 = vsel %vm694, %v3637, 0
        %v3706 = vsel %vm694, %v3660, 0
        %v3709 = vsel %vm694, %v3683, 0
        %3711 = vmatpush.msra.mxu0 0.0
        %3712 = vmatpush.msra.mxu0 0.0
        %3713 = vmatpush.msra.mxu0 0.0
        %3714 = vmatpush.msra.mxu0 0.0
        %3715 = vmatpush.msra.mxu0 0.0
        %3716 = vmatpush.msra.mxu0 0.0
        %3717 = vmatpush.msra.mxu0 0.0
        %3718 = vmatpush.msra.mxu0 0.0
        %3719 = vmatpush.msra.mxu0 0.0
        %3720 = vmatpush.msra.mxu0 0.0
        %3721 = vmatpush.msra.mxu0 0.0
        %3722 = vmatpush.msra.mxu0 0.0
        %3723 = vmatpush.msra.mxu0 0.0
        %3724 = vmatpush.msra.mxu0 0.0
        %3725 = vmatpush.msra.mxu0 0.0
        %3726 = vmatpush.msra.mxu0 %v3686
        %3727 = vmatmul.f32.gmra.mxu0 %v3688
        %v3728 = vpop.f32.mrf.mxu0
        %v3729 = vadd.f32 0.0, %v3728
        %3730 = vmatmul.f32.gmra.mxu0 %v3691
        %v3731 = vpop.f32.mrf.mxu0
        %v3732 = vadd.f32 0.0, %v3731
        %3733 = vmatmul.f32.gmra.mxu0 %v3694
        %v3734 = vpop.f32.mrf.mxu0
        %v3735 = vadd.f32 0.0, %v3734
        %3736 = vmatmul.f32.gmra.mxu0 %v3697
        %v3737 = vpop.f32.mrf.mxu0
        %v3738 = vadd.f32 0.0, %v3737
        %3739 = vmatmul.f32.gmra.mxu0 %v3700
        %v3740 = vpop.f32.mrf.mxu0
        %v3741 = vadd.f32 0.0, %v3740
        %3742 = vmatmul.f32.gmra.mxu0 %v3703
        %v3743 = vpop.f32.mrf.mxu0
        %v3744 = vadd.f32 0.0, %v3743
        %3745 = vmatmul.f32.gmra.mxu0 %v3706
        %v3746 = vpop.f32.mrf.mxu0
        %v3747 = vadd.f32 0.0, %v3746
        %3748 = vmatmul.f32.gmra.mxu0 %v3709
        %v3749 = vpop.f32.mrf.mxu0
        %v3750 = vadd.f32 0.0, %v3749
        %3751 = vdwg.mxu0
        %v3752 = vadd.f32 %v2947, %v3729
        %v3753 = vadd.f32 %v2948, %v3732
        %v3754 = vadd.f32 %v2949, %v3735
        %v3755 = vadd.f32 %v2950, %v3738
        %v3756 = vadd.f32 %v2951, %v3741
        %v3757 = vadd.f32 %v2952, %v3744
        %v3758 = vadd.f32 %v2953, %v3747
        %v3759 = vadd.f32 %v2954, %v3750
        %v3760 = vld [vmem:[%s7] sm:$0x1]
        %v3762 = vperm.slane %v3760, 0
        %v3764 = vadd.f32 %v3752, %v3762
        %v3765 = vadd.f32 %v3753, %v3762
        %v3766 = vadd.f32 %v3754, %v3762
        %v3767 = vadd.f32 %v3755, %v3762
        %v3768 = vadd.f32 %v3756, %v3762
        %v3769 = vadd.f32 %v3757, %v3762
        %v3770 = vadd.f32 %v3758, %v3762
        %v3771 = vadd.f32 %v3759, %v3762
        %v3772 = vadd.f32 %v526, %v3764
        %v3773 = vadd.f32 %v527, %v3765
        %v3774 = vadd.f32 %v528, %v3766
        %v3775 = vadd.f32 %v529, %v3767
        %v3776 = vadd.f32 %v530, %v3768
        %v3777 = vadd.f32 %v531, %v3769
        %v3778 = vadd.f32 %v532, %v3770
        %v3779 = vadd.f32 %v533, %v3771
        %v3780 = vld [vmem:[%s8] sm:$0xff]
        %v3781 = vld [vmem:[%s8 + $0x8] sm:$0xff]
        %v3782 = vld [vmem:[%s8 + $0x10] sm:$0xff]
        %v3783 = vld [vmem:[%s8 + $0x18] sm:$0xff]
        %v3784 = vld [vmem:[%s9] sm:$0x1]
        %v3786 = vperm.slane %v3784, 0
        %v3789 = vsel %vm538, %v3772, 0
        %v3792 = vsel %vm538, %v3773, 0
        %v3795 = vsel %vm538, %v3774, 0
        %v3798 = vsel %vm538, %v3775, 0
        %v3801 = vsel %vm538, %v3776, 0
        %v3804 = vsel %vm538, %v3777, 0
        %v3807 = vsel %vm538, %v3778, 0
        %v3810 = vsel %vm538, %v3779, 0
        %3812 = vmatpush.msra.mxu0 0.0
        %3813 = vmatpush.msra.mxu0 0.0
        %3814 = vmatpush.msra.mxu0 0.0
        %3815 = vmatpush.msra.mxu0 0.0
        %3816 = vmatpush.msra.mxu0 0.0
        %3817 = vmatpush.msra.mxu0 0.0
        %3818 = vmatpush.msra.mxu0 0.0
        %3819 = vmatpush.msra.mxu0 0.0
        %3820 = vmatpush.msra.mxu0 0.0
        %3821 = vmatpush.msra.mxu0 0.0
        %3822 = vmatpush.msra.mxu0 0.0
        %3823 = vmatpush.msra.mxu0 0.0
        %3824 = vmatpush.msra.mxu0 %v3783
        %3825 = vmatpush.msra.mxu0 %v3782
        %3826 = vmatpush.msra.mxu0 %v3781
        %3827 = vmatpush.msra.mxu0 %v3780
        %3828 = vmatmul.f32.gmra.mxu0 %v3789
        %v3829 = vpop.f32.mrf.mxu0
        %v3830 = vadd.f32 %v3786, %v3829
        %3831 = vmatmul.f32.gmra.mxu0 %v3792
        %v3832 = vpop.f32.mrf.mxu0
        %v3833 = vadd.f32 %v3786, %v3832
        %3834 = vmatmul.f32.gmra.mxu0 %v3795
        %v3835 = vpop.f32.mrf.mxu0
        %v3836 = vadd.f32 %v3786, %v3835
        %3837 = vmatmul.f32.gmra.mxu0 %v3798
        %v3838 = vpop.f32.mrf.mxu0
        %v3839 = vadd.f32 %v3786, %v3838
        %3840 = vmatmul.f32.gmra.mxu0 %v3801
        %v3841 = vpop.f32.mrf.mxu0
        %v3842 = vadd.f32 %v3786, %v3841
        %3843 = vmatmul.f32.gmra.mxu0 %v3804
        %v3844 = vpop.f32.mrf.mxu0
        %v3845 = vadd.f32 %v3786, %v3844
        %3846 = vmatmul.f32.gmra.mxu0 %v3807
        %v3847 = vpop.f32.mrf.mxu0
        %v3848 = vadd.f32 %v3786, %v3847
        %3849 = vmatmul.f32.gmra.mxu0 %v3810
        %v3850 = vpop.f32.mrf.mxu0
        %v3851 = vadd.f32 %v3786, %v3850
        %3852 = vdwg.mxu0
        %v3853 = vmax.f32 %v3830, 0.0
        %v3854 = vmax.f32 %v3833, 0.0
        %v3855 = vmax.f32 %v3836, 0.0
        %v3856 = vmax.f32 %v3839, 0.0
        %v3857 = vmax.f32 %v3842, 0.0
        %v3858 = vmax.f32 %v3845, 0.0
        %v3859 = vmax.f32 %v3848, 0.0
        %v3860 = vmax.f32 %v3851, 0.0
        %v3861 = vld [vmem:[%s10] sm:$0xff]
        %v3862 = vld [vmem:[%s10 + $0x8] sm:$0xff]
        %v3863 = vld [vmem:[%s10 + $0x10] sm:$0xff]
        %v3864 = vld [vmem:[%s10 + $0x18] sm:$0xff]
        %v3865 = vld [vmem:[%s10 + $0x20] sm:$0xff]
        %v3866 = vld [vmem:[%s10 + $0x28] sm:$0xff]
        %v3867 = vld [vmem:[%s10 + $0x30] sm:$0xff]
        %v3868 = vld [vmem:[%s10 + $0x38] sm:$0xff]
        %v3869 = vld [vmem:[%s11] sm:$0x1]
        %v3871 = vperm.slane %v3869, 0
        %vm3873 = vcmask 523264
        %v3875 = vsel %vm3873, %v3853, 0
        %v3878 = vsel %vm3873, %v3854, 0
        %v3881 = vsel %vm3873, %v3855, 0
        %v3884 = vsel %vm3873, %v3856, 0
        %v3887 = vsel %vm3873, %v3857, 0
        %v3890 = vsel %vm3873, %v3858, 0
        %v3893 = vsel %vm3873, %v3859, 0
        %v3896 = vsel %vm3873, %v3860, 0
        %3898 = vmatpush.msra.mxu0 0.0
        %3899 = vmatpush.msra.mxu0 0.0
        %3900 = vmatpush.msra.mxu0 0.0
        %3901 = vmatpush.msra.mxu0 0.0
        %3902 = vmatpush.msra.mxu0 0.0
        %3903 = vmatpush.msra.mxu0 0.0
        %3904 = vmatpush.msra.mxu0 0.0
        %3905 = vmatpush.msra.mxu0 0.0
        %3906 = vmatpush.msra.mxu0 %v3868
        %3907 = vmatpush.msra.mxu0 %v3867
        %3908 = vmatpush.msra.mxu0 %v3866
        %3909 = vmatpush.msra.mxu0 %v3865
        %3910 = vmatpush.msra.mxu0 %v3864
        %3911 = vmatpush.msra.mxu0 %v3863
        %3912 = vmatpush.msra.mxu0 %v3862
        %3913 = vmatpush.msra.mxu0 %v3861
        %3914 = vmatmul.f32.gmra.mxu0 %v3875
        %v3915 = vpop.f32.mrf.mxu0
        %v3916 = vadd.f32 %v3871, %v3915
        %3917 = vmatmul.f32.gmra.mxu0 %v3878
        %v3918 = vpop.f32.mrf.mxu0
        %v3919 = vadd.f32 %v3871, %v3918
        %3920 = vmatmul.f32.gmra.mxu0 %v3881
        %v3921 = vpop.f32.mrf.mxu0
        %v3922 = vadd.f32 %v3871, %v3921
        %3923 = vmatmul.f32.gmra.mxu0 %v3884
        %v3924 = vpop.f32.mrf.mxu0
        %v3925 = vadd.f32 %v3871, %v3924
        %3926 = vmatmul.f32.gmra.mxu0 %v3887
        %v3927 = vpop.f32.mrf.mxu0
        %v3928 = vadd.f32 %v3871, %v3927
        %3929 = vmatmul.f32.gmra.mxu0 %v3890
        %v3930 = vpop.f32.mrf.mxu0
        %v3931 = vadd.f32 %v3871, %v3930
        %3932 = vmatmul.f32.gmra.mxu0 %v3893
        %v3933 = vpop.f32.mrf.mxu0
        %v3934 = vadd.f32 %v3871, %v3933
        %3935 = vmatmul.f32.gmra.mxu0 %v3896
        %v3936 = vpop.f32.mrf.mxu0
        %v3937 = vadd.f32 %v3871, %v3936
        %3938 = vdwg.mxu0
        %v3939 = vadd.f32 %v3772, %v3916
        %v3940 = vadd.f32 %v3773, %v3919
        %v3941 = vadd.f32 %v3774, %v3922
        %v3942 = vadd.f32 %v3775, %v3925
        %v3943 = vadd.f32 %v3776, %v3928
        %v3944 = vadd.f32 %v3777, %v3931
        %v3945 = vadd.f32 %v3778, %v3934
        %v3946 = vadd.f32 %v3779, %v3937
        %3947 = vst.msk [vmem:[%s407] sm:$0xff] %vm538, %v3939
        %3948 = vst.msk [vmem:[%s407 + $0x8] sm:$0xff] %vm538, %v3940
        %3949 = vst.msk [vmem:[%s407 + $0x10] sm:$0xff] %vm538, %v3941
        %3950 = vst.msk [vmem:[%s407 + $0x18] sm:$0xff] %vm538, %v3942
        %3951 = vst.msk [vmem:[%s407 + $0x20] sm:$0xff] %vm538, %v3943
        %3952 = vst.msk [vmem:[%s407 + $0x28] sm:$0xff] %vm538, %v3944
        %3953 = vst.msk [vmem:[%s407 + $0x30] sm:$0xff] %vm538, %v3945
        %3954 = vst.msk [vmem:[%s407 + $0x38] sm:$0xff] %vm538, %v3946
        %s3955 = sand.u32 %s291, 1
        %s3956 = scalar_lea.sflag [#allocation3], %s3955
        %s3957 = sand.u32 %s291, 1
        %s3958 = smul.addr %s3957, 64
        %s3959 = scalar_lea.vmem [#allocation2], %s3958
        // Predicated region
        $region69: #{tpu_custom_call.1} parent=67 // pred_check
          %p3960 = pneg %p301
        $region70: #{tpu_custom_call.1} parent=67 // pred_check_branch
          %3962 = sbr.rel (%p3960) target = $region72
        $region71: #{tpu_custom_call.1} parent=67 // pred_region
          %s3963 = smul.u32 8, %s26
          %3965 = vsyncadd %s3956, 0
          %s3966 = smul.addr %s3963, 8
          %s3967 = scalar_lea.hbm %s12, %s3966
          %s3968 = sshll.u32 %s3959, 4
          %s3969 = int_to_ptr.vmem [resolvable:$true] %s3968
          %s3970 = sshll.u32 %s3967, 4
          %s3971 = int_to_ptr.hbm [resolvable:$true] %s3970
          %3976 = dma.vmem_to_hbm [thread:$0]  %s3969, 1024, %s3971, %s3956, 128, 128, 8
        $region72: #{tpu_custom_call.1} parent=67 // pred_fallthru
          _
      $region68: #{tpu_custom_call.1} parent=5 // pred_fallthru
        _
      %p3977 = scmp.le.s32.totalorder 2, %s21
      // Predicated region
      $region73: #{tpu_custom_call.1} parent=5 // pred_check
        %p3978 = pneg %p3977
      $region74: #{tpu_custom_call.1} parent=5 // pred_check_branch
        %3980 = sbr.rel (%p3978) target = $region76
      $region75: #{tpu_custom_call.1} parent=5 // pred_region
        %s3981 = ssub.s32 %s21, 2
        // Predicated region
        $region77: #{tpu_custom_call.1} parent=75 // pred_check
          %p3982 = pneg %p307
        $region78: #{tpu_custom_call.1} parent=75 // pred_check_branch
          %3984 = sbr.rel (%p3982) target = $region80
        $region79: #{tpu_custom_call.1} parent=75 // pred_region
          %s3985 = sand.u32 %s292, 1
          %s3986 = scalar_lea.sflag [#allocation3], %s3985
          %s3987 = sand.u32 %s292, 1
          %s3988 = smul.addr %s3987, 64
          %s3989 = scalar_lea.vmem [#allocation2], %s3988
          %3991 = dma.done %s3986, 1024
        $region80: #{tpu_custom_call.1} parent=75 // pred_fallthru
          _
      $region76: #{tpu_custom_call.1} parent=5 // pred_fallthru
        _
    $region6: #{tpu_custom_call.1} parent=1 // loop_footer
      %s25 = sadd.s32 1, %s21
    $region7: #{tpu_custom_call.1} parent=1 // loop_footer_branch
      %20 = sbr.rel target = $region3
    $region8: #{tpu_custom_call.1} parent=1 // loop_exit
      _
    %3992 = vsyncpa [#allocation3], 1
    %s3993 = scalar_lea.sflag [#allocation3], 1
    %3994 = vsyncpa %s3993, 1

</llo_original>
